<compile_context>
chip_gen: v7x
topology: tpu7x:2x2x1
jax: 0.10.0
libtpu: 0.0.40
codegen_flags: <defaults>
</compile_context>

<pallas_src>
import functools

import jax
import jax.numpy as jnp
from jax import lax
from jax.experimental import pallas as pl
from jax.experimental.pallas import tpu as pltpu


def _layer_norm(x, gamma, beta, eps):
    mean = jnp.mean(x, axis=-1, keepdims=True)
    var = jnp.mean(jnp.square(x - mean), axis=-1, keepdims=True)
    return (x - mean) * lax.rsqrt(var + eps) * gamma + beta


def _gelu_tanh(x):
    # matches torch.nn.functional.gelu(..., approximate='tanh')
    c = jnp.sqrt(2.0 / jnp.pi).astype(x.dtype)
    return 0.5 * x * (1.0 + jnp.tanh(c * (x + 0.044715 * x * x * x)))


def encoder_layer_kernel(x_ref, ln1g_ref, ln1b_ref, qkvw_ref, qkvb_ref,
                         ow_ref, ob_ref, ln2g_ref, ln2b_ref,
                         f1w_ref, f1b_ref, f2w_ref, f2b_ref, o_ref,
                         *, num_heads, head_dim, eps):
    f32 = jnp.float32
    bf16 = jnp.bfloat16
    D = num_heads * head_dim

    x = x_ref[0].astype(f32)                                    # (S, D) fp32

    # ---------------- LayerNorm 1 (fp32) ----------------
    h = _layer_norm(x, ln1g_ref[0], ln1b_ref[0], eps)

    # ---------------- Fused QKV projection ----------------
    # bf16 operands, fp32 accumulation; bias added once in fp32.
    # The attention scale is already folded into the Q columns of the weight
    # and bias (done in the wrapper), so no per-score scaling is needed here.
    qkv = jnp.dot(h.astype(bf16), qkvw_ref[...],
                  preferred_element_type=f32) + qkvb_ref[0]     # (S, 3D)

    # ---------------- Multi-head attention ----------------
    ow = ow_ref[...]                                            # (D, D) bf16
    attn = jnp.zeros_like(x)                                    # (S, D) fp32
    for hh in range(num_heads):                                 # static unroll
        r = hh * head_dim
        qh = qkv[:, r:r + head_dim].astype(bf16)                # (S, hd)
        kh = qkv[:, D + r:D + r + head_dim].astype(bf16)        # (S, hd)
        vh = qkv[:, 2 * D + r:2 * D + r + head_dim].astype(bf16)

        # scores = (Q_h * scale) @ K_h^T  (NT matmul: contract last dims)
        s = lax.dot_general(qh, kh, (((1,), (1,)), ((), ())),
                            preferred_element_type=f32)         # (S, S) f32
        s = s - jnp.max(s, axis=-1, keepdims=True)
        p = jnp.exp(s)                                          # unnormalized
        denom = jnp.sum(p, axis=-1, keepdims=True)              # (S, 1)

        # normalize AFTER the PV matmul: (S, hd) multiply instead of (S, S)
        ctx = jnp.dot(p.astype(bf16), vh,
                      preferred_element_type=f32)                # (S, hd)
        ctx = ctx * pl.reciprocal(denom, approx=True)            # EUP slot

        # accumulate the output projection per head (no concat of heads)
        attn = attn + jnp.dot(ctx.astype(bf16), ow[r:r + head_dim, :],
                              preferred_element_type=f32)        # (S, D)

    x = x + attn + ob_ref[0]                                     # residual 1

    # ---------------- LayerNorm 2 + MLP ----------------
    h = _layer_norm(x, ln2g_ref[0], ln2b_ref[0], eps)
    m = jnp.dot(h.astype(bf16), f1w_ref[...],
                preferred_element_type=f32) + f1b_ref[0]         # (S, I)
    m = _gelu_tanh(m)
    m = jnp.dot(m.astype(bf16), f2w_ref[...],
                preferred_element_type=f32) + f2b_ref[0]         # (S, D)

    o_ref[0] = (x + m).astype(o_ref.dtype)                       # residual 2


def siglip_encoder_layer(x, params, *, num_heads, eps=1e-6):
    B, S, D = x.shape
    I = params["fc1_w"].shape[1]
    head_dim = D // num_heads
    scale = head_dim ** -0.5
    f32, bf16 = jnp.float32, jnp.bfloat16

    # Fuse Q/K/V into a single (D, 3D) weight / (1, 3D) bias, folding the
    # attention scale into the Q slice (exactly equivalent to scaling scores).
    # Matmul weights go to HBM as bf16; biases / LN params stay fp32.
    qkv_w = jnp.concatenate([params["q_w"].astype(f32) * scale,
                             params["k_w"].astype(f32),
                             params["v_w"].astype(f32)], axis=1).astype(bf16)
    qkv_b = jnp.concatenate([params["q_b"].astype(f32) * scale,
                             params["k_b"].astype(f32),
                             params["v_b"].astype(f32)], axis=1).astype(f32)
    o_w = params["o_w"].astype(bf16)                             # (D, D)
    fc1_w = params["fc1_w"].astype(bf16)                         # (D, I)
    fc2_w = params["fc2_w"].astype(bf16)                         # (I, D)

    kernel = functools.partial(encoder_layer_kernel, num_heads=num_heads,
                               head_dim=head_dim, eps=eps)

    # Replicated (grid-invariant) operand: full array, constant index map.
    def rep(shape):
        zeros = (0,) * len(shape)
        return pl.BlockSpec(shape, lambda b, _z=zeros: _z)

    in_specs = [
        pl.BlockSpec((1, S, D), lambda b: (b, 0, 0)),   # hidden_states
        rep((1, D)), rep((1, D)),                       # ln1 gamma / beta
        rep((D, 3 * D)), rep((1, 3 * D)),               # fused qkv w / b
        rep((D, D)), rep((1, D)),                       # out_proj w / b
        rep((1, D)), rep((1, D)),                       # ln2 gamma / beta
        rep((D, I)), rep((1, I)),                       # fc1 w / b
        rep((I, D)), rep((1, D)),                       # fc2 w / b
    ]
    out_spec = pl.BlockSpec((1, S, D), lambda b: (b, 0, 0))

    return pl.pallas_call(
        kernel,
        out_shape=jax.ShapeDtypeStruct((B, S, D), x.dtype),
        grid=(B,),
        in_specs=in_specs,
        out_specs=out_spec,
        compiler_params=pltpu.CompilerParams(
            dimension_semantics=("parallel",),          # megacore over batch
            vmem_limit_bytes=64 * 1024 * 1024,
        ),
    )(x.astype(f32),
      params["ln1_g"].astype(f32), params["ln1_b"].astype(f32),
      qkv_w, qkv_b,
      o_w, params["o_b"].astype(f32),
      params["ln2_g"].astype(f32), params["ln2_b"].astype(f32),
      fc1_w, params["fc1_b"].astype(f32),
      fc2_w, params["fc2_b"].astype(f32))


# ---------------- pure-JAX fp32 reference (for correctness check) ----------------
def reference_encoder_layer(x, params, *, num_heads, eps=1e-6):
    B, S, D = x.shape
    hd = D // num_heads
    ln = lambda v, g, b: _layer_norm(v, g, b, eps)

    h = ln(x, params["ln1_g"][0], params["ln1_b"][0])
    q = h @ params["q_w"] + params["q_b"][0]
    k = h @ params["k_w"] + params["k_b"][0]
    v = h @ params["v_w"] + params["v_b"][0]
    q = q.reshape(B, S, num_heads, hd).transpose(0, 2, 1, 3)
    k = k.reshape(B, S, num_heads, hd).transpose(0, 2, 1, 3)
    v = v.reshape(B, S, num_heads, hd).transpose(0, 2, 1, 3)
    s = jnp.einsum("bhqd,bhkd->bhqk", q, k) * (hd ** -0.5)
    p = jax.nn.softmax(s, axis=-1)
    a = jnp.einsum("bhqk,bhkd->bhqd", p, v).transpose(0, 2, 1, 3).reshape(B, S, D)
    a = a @ params["o_w"] + params["o_b"][0]
    x = x + a
    h = ln(x, params["ln2_g"][0], params["ln2_b"][0])
    h = h @ params["fc1_w"] + params["fc1_b"][0]
    h = _gelu_tanh(h)
    h = h @ params["fc2_w"] + params["fc2_b"][0]
    return x + h


if __name__ == "__main__":
    # Small SigLip-style config.  S and D are multiples of 128 so the (S, S)
    # scores and the output stores are lane-dense.
    B, S, D = 2, 128, 128           # batch, seq (num patches), hidden_size
    H, I = 4, 256                   # num_attention_heads, intermediate_size
    eps = 1e-6
    dtype = jnp.float32

    key = jax.random.PRNGKey(0)
    ks = jax.random.split(key, 13)

    def w(k, shape, scale=0.02):
        return (scale * jax.random.normal(k, shape)).astype(dtype)

    params = {
        "ln1_g": jnp.ones((1, D), dtype), "ln1_b": jnp.zeros((1, D), dtype),
        "q_w": w(ks[0], (D, D)), "q_b": w(ks[1], (1, D)),
        "k_w": w(ks[2], (D, D)), "k_b": w(ks[3], (1, D)),
        "v_w": w(ks[4], (D, D)), "v_b": w(ks[5], (1, D)),
        "o_w": w(ks[6], (D, D)), "o_b": w(ks[7], (1, D)),
        "ln2_g": jnp.ones((1, D), dtype), "ln2_b": jnp.zeros((1, D), dtype),
        "fc1_w": w(ks[8], (D, I)), "fc1_b": w(ks[9], (1, I)),
        "fc2_w": w(ks[10], (I, D)), "fc2_b": w(ks[11], (1, D)),
    }
    x = jax.random.normal(ks[12], (B, S, D), dtype)

    out = siglip_encoder_layer(x, params, num_heads=H, eps=eps)
    out = jax.block_until_ready(out)

    ref = reference_encoder_layer(x, params, num_heads=H, eps=eps)
    assert out.shape == (B, S, D)
    max_err = float(jnp.max(jnp.abs(out - ref)))
    # bf16 matmul operands + approx reciprocal in softmax -> relaxed tolerance
    assert jnp.allclose(out, ref, atol=2e-2, rtol=2e-2), max_err

    print("KERNEL_OK")
</pallas_src>

<mosaic_0001>
module attributes {stable_mosaic.version = 11 : i64} {
  func.func @encoder_layer_kernel(%arg0: i32, %arg1: memref<1x128x128xf32, #tpu.memory_space<vmem>>, %arg2: memref<1x128xf32, #tpu.memory_space<vmem>>, %arg3: memref<1x128xf32, #tpu.memory_space<vmem>>, %arg4: memref<128x384xbf16, #tpu.memory_space<vmem>>, %arg5: memref<1x384xf32, #tpu.memory_space<vmem>>, %arg6: memref<128x128xbf16, #tpu.memory_space<vmem>>, %arg7: memref<1x128xf32, #tpu.memory_space<vmem>>, %arg8: memref<1x128xf32, #tpu.memory_space<vmem>>, %arg9: memref<1x128xf32, #tpu.memory_space<vmem>>, %arg10: memref<128x256xbf16, #tpu.memory_space<vmem>>, %arg11: memref<1x256xf32, #tpu.memory_space<vmem>>, %arg12: memref<256x128xbf16, #tpu.memory_space<vmem>>, %arg13: memref<1x128xf32, #tpu.memory_space<vmem>>, %arg14: memref<1x128x128xf32, #tpu.memory_space<vmem>>) attributes {dimension_semantics = [#tpu.dimension_semantics<parallel>], iteration_bounds = array<i64: 2>, scalar_prefetch = 0 : i64, scratch_operands = 0 : i64, tpu.core_type = #tpu.core_type<tc>, window_params = [{transform_indices = @transform_0, window_bounds = array<i64: 1, 128, 128>}, {pipeline_mode = #tpu.pipeline_mode<synchronous>, transform_indices = @transform_1, window_bounds = array<i64: 1, 128>}, {pipeline_mode = #tpu.pipeline_mode<synchronous>, transform_indices = @transform_2, window_bounds = array<i64: 1, 128>}, {pipeline_mode = #tpu.pipeline_mode<synchronous>, transform_indices = @transform_3, window_bounds = array<i64: 128, 384>}, {pipeline_mode = #tpu.pipeline_mode<synchronous>, transform_indices = @transform_4, window_bounds = array<i64: 1, 384>}, {pipeline_mode = #tpu.pipeline_mode<synchronous>, transform_indices = @transform_5, window_bounds = array<i64: 128, 128>}, {pipeline_mode = #tpu.pipeline_mode<synchronous>, transform_indices = @transform_6, window_bounds = array<i64: 1, 128>}, {pipeline_mode = #tpu.pipeline_mode<synchronous>, transform_indices = @transform_7, window_bounds = array<i64: 1, 128>}, {pipeline_mode = #tpu.pipeline_mode<synchronous>, transform_indices = @transform_8, window_bounds = array<i64: 1, 128>}, {pipeline_mode = #tpu.pipeline_mode<synchronous>, transform_indices = @transform_9, window_bounds = array<i64: 128, 256>}, {pipeline_mode = #tpu.pipeline_mode<synchronous>, transform_indices = @transform_10, window_bounds = array<i64: 1, 256>}, {pipeline_mode = #tpu.pipeline_mode<synchronous>, transform_indices = @transform_11, window_bounds = array<i64: 256, 128>}, {pipeline_mode = #tpu.pipeline_mode<synchronous>, transform_indices = @transform_12, window_bounds = array<i64: 1, 128>}, {transform_indices = @transform_13, window_bounds = array<i64: 1, 128, 128>}]} {
    %c0 = arith.constant 0 : index
    %c0_0 = arith.constant 0 : index
    %c0_1 = arith.constant 0 : index
    %0 = vector.load %arg1[%c0, %c0_0, %c0_1] : memref<1x128x128xf32, #tpu.memory_space<vmem>>, vector<1x128x128xf32>
    %1 = vector.shape_cast %0 : vector<1x128x128xf32> to vector<128x128xf32>
    %c0_2 = arith.constant 0 : index
    %c0_3 = arith.constant 0 : index
    %2 = vector.load %arg2[%c0_2, %c0_3] : memref<1x128xf32, #tpu.memory_space<vmem>>, vector<1x128xf32>
    %3 = vector.shape_cast %2 : vector<1x128xf32> to vector<128xf32>
    %c0_4 = arith.constant 0 : index
    %c0_5 = arith.constant 0 : index
    %4 = vector.load %arg3[%c0_4, %c0_5] : memref<1x128xf32, #tpu.memory_space<vmem>>, vector<1x128xf32>
    %5 = vector.shape_cast %4 : vector<1x128xf32> to vector<128xf32>
    %cst = arith.constant dense<0.000000e+00> : vector<128xf32>
    %6 = vector.multi_reduction <add>, %1, %cst [1] : vector<128x128xf32> to vector<128xf32>
    %7 = vector.shape_cast %6 : vector<128xf32> to vector<128x1xf32>
    %cst_6 = arith.constant 1.280000e+02 : f32
    %8 = vector.broadcast %cst_6 : f32 to vector<128x1xf32>
    %9 = arith.divf %7, %8 : vector<128x1xf32>
    %10 = vector.broadcast %9 : vector<128x1xf32> to vector<128x128xf32>
    %11 = arith.subf %1, %10 : vector<128x128xf32>
    %12 = arith.mulf %11, %11 : vector<128x128xf32>
    %cst_7 = arith.constant dense<0.000000e+00> : vector<128xf32>
    %13 = vector.multi_reduction <add>, %12, %cst_7 [1] : vector<128x128xf32> to vector<128xf32>
    %14 = vector.shape_cast %13 : vector<128xf32> to vector<128x1xf32>
    %cst_8 = arith.constant 1.280000e+02 : f32
    %15 = vector.broadcast %cst_8 : f32 to vector<128x1xf32>
    %16 = arith.divf %14, %15 : vector<128x1xf32>
    %17 = vector.broadcast %9 : vector<128x1xf32> to vector<128x128xf32>
    %18 = arith.subf %1, %17 : vector<128x128xf32>
    %cst_9 = arith.constant 9.99999997E-7 : f32
    %19 = vector.broadcast %cst_9 : f32 to vector<128x1xf32>
    %20 = arith.addf %16, %19 : vector<128x1xf32>
    %21 = math.rsqrt %20 : vector<128x1xf32>
    %22 = vector.broadcast %21 : vector<128x1xf32> to vector<128x128xf32>
    %23 = arith.mulf %18, %22 : vector<128x128xf32>
    %24 = vector.shape_cast %3 : vector<128xf32> to vector<1x128xf32>
    %25 = vector.broadcast %24 : vector<1x128xf32> to vector<128x128xf32>
    %26 = arith.mulf %23, %25 : vector<128x128xf32>
    %27 = vector.shape_cast %5 : vector<128xf32> to vector<1x128xf32>
    %28 = vector.broadcast %27 : vector<1x128xf32> to vector<128x128xf32>
    %29 = arith.addf %26, %28 : vector<128x128xf32>
    %30 = arith.truncf %29 : vector<128x128xf32> to vector<128x128xbf16>
    %c0_10 = arith.constant 0 : index
    %c0_11 = arith.constant 0 : index
    %31 = vector.load %arg4[%c0_10, %c0_11] : memref<128x384xbf16, #tpu.memory_space<vmem>>, vector<128x384xbf16>
    %cst_12 = arith.constant dense<0.000000e+00> : vector<128x384xf32>
    %32 = tpu.matmul %30, %31, %cst_12 {dimension_numbers = #tpu.dot_dimension_numbers<[1], [0], [0], [1], [0, 0, 1, 1], [], []>} : vector<128x128xbf16>, vector<128x384xbf16>, vector<128x384xf32> -> vector<128x384xf32>
    %c0_13 = arith.constant 0 : index
    %c0_14 = arith.constant 0 : index
    %33 = vector.load %arg5[%c0_13, %c0_14] : memref<1x384xf32, #tpu.memory_space<vmem>>, vector<1x384xf32>
    %34 = vector.shape_cast %33 : vector<1x384xf32> to vector<384xf32>
    %35 = vector.shape_cast %34 : vector<384xf32> to vector<1x384xf32>
    %36 = vector.broadcast %35 : vector<1x384xf32> to vector<128x384xf32>
    %37 = arith.addf %32, %36 : vector<128x384xf32>
    %c0_15 = arith.constant 0 : index
    %c0_16 = arith.constant 0 : index
    %38 = vector.load %arg6[%c0_15, %c0_16] : memref<128x128xbf16, #tpu.memory_space<vmem>>, vector<128x128xbf16>
    %cst_17 = arith.constant 0.000000e+00 : f32
    %39 = vector.broadcast %cst_17 : f32 to vector<128x128xf32>
    %40 = vector.extract_strided_slice %37 {offsets = [0, 0], sizes = [128, 32], strides = [1, 1]} : vector<128x384xf32> to vector<128x32xf32>
    %41 = arith.truncf %40 : vector<128x32xf32> to vector<128x32xbf16>
    %42 = vector.extract_strided_slice %37 {offsets = [0, 128], sizes = [128, 32], strides = [1, 1]} : vector<128x384xf32> to vector<128x32xf32>
    %43 = arith.truncf %42 : vector<128x32xf32> to vector<128x32xbf16>
    %44 = vector.extract_strided_slice %37 {offsets = [0, 256], sizes = [128, 32], strides = [1, 1]} : vector<128x384xf32> to vector<128x32xf32>
    %45 = arith.truncf %44 : vector<128x32xf32> to vector<128x32xbf16>
    %cst_18 = arith.constant dense<0.000000e+00> : vector<128x128xf32>
    %46 = tpu.matmul %41, %43, %cst_18 {dimension_numbers = #tpu.dot_dimension_numbers<[1], [1], [0], [0], [0, 0, 1, 0], [], []>} : vector<128x32xbf16>, vector<128x32xbf16>, vector<128x128xf32> -> vector<128x128xf32>
    %cst_19 = arith.constant dense<0xFF800000> : vector<128xf32>
    %47 = vector.multi_reduction <maximumf>, %46, %cst_19 [1] : vector<128x128xf32> to vector<128xf32>
    %48 = vector.shape_cast %47 : vector<128xf32> to vector<128x1xf32>
    %49 = vector.broadcast %48 : vector<128x1xf32> to vector<128x128xf32>
    %50 = arith.subf %46, %49 : vector<128x128xf32>
    %51 = math.exp %50 : vector<128x128xf32>
    %cst_20 = arith.constant dense<0.000000e+00> : vector<128xf32>
    %52 = vector.multi_reduction <add>, %51, %cst_20 [1] : vector<128x128xf32> to vector<128xf32>
    %53 = vector.shape_cast %52 : vector<128xf32> to vector<128x1xf32>
    %54 = arith.truncf %51 : vector<128x128xf32> to vector<128x128xbf16>
    %cst_21 = arith.constant dense<0.000000e+00> : vector<128x32xf32>
    %55 = tpu.matmul %54, %45, %cst_21 {dimension_numbers = #tpu.dot_dimension_numbers<[1], [0], [0], [1], [0, 0, 1, 1], [], []>} : vector<128x128xbf16>, vector<128x32xbf16>, vector<128x32xf32> -> vector<128x32xf32>
    %56 = tpu.reciprocal %53 {approx = true} : vector<128x1xf32> -> vector<128x1xf32>
    %57 = vector.broadcast %56 : vector<128x1xf32> to vector<128x32xf32>
    %58 = arith.mulf %55, %57 : vector<128x32xf32>
    %59 = arith.truncf %58 : vector<128x32xf32> to vector<128x32xbf16>
    %60 = vector.extract_strided_slice %38 {offsets = [0, 0], sizes = [32, 128], strides = [1, 1]} : vector<128x128xbf16> to vector<32x128xbf16>
    %cst_22 = arith.constant dense<0.000000e+00> : vector<128x128xf32>
    %61 = tpu.matmul %59, %60, %cst_22 {dimension_numbers = #tpu.dot_dimension_numbers<[1], [0], [0], [1], [0, 0, 1, 1], [], []>} : vector<128x32xbf16>, vector<32x128xbf16>, vector<128x128xf32> -> vector<128x128xf32>
    %62 = arith.addf %39, %61 : vector<128x128xf32>
    %63 = vector.extract_strided_slice %37 {offsets = [0, 32], sizes = [128, 32], strides = [1, 1]} : vector<128x384xf32> to vector<128x32xf32>
    %64 = arith.truncf %63 : vector<128x32xf32> to vector<128x32xbf16>
    %65 = vector.extract_strided_slice %37 {offsets = [0, 160], sizes = [128, 32], strides = [1, 1]} : vector<128x384xf32> to vector<128x32xf32>
    %66 = arith.truncf %65 : vector<128x32xf32> to vector<128x32xbf16>
    %67 = vector.extract_strided_slice %37 {offsets = [0, 288], sizes = [128, 32], strides = [1, 1]} : vector<128x384xf32> to vector<128x32xf32>
    %68 = arith.truncf %67 : vector<128x32xf32> to vector<128x32xbf16>
    %cst_23 = arith.constant dense<0.000000e+00> : vector<128x128xf32>
    %69 = tpu.matmul %64, %66, %cst_23 {dimension_numbers = #tpu.dot_dimension_numbers<[1], [1], [0], [0], [0, 0, 1, 0], [], []>} : vector<128x32xbf16>, vector<128x32xbf16>, vector<128x128xf32> -> vector<128x128xf32>
    %cst_24 = arith.constant dense<0xFF800000> : vector<128xf32>
    %70 = vector.multi_reduction <maximumf>, %69, %cst_24 [1] : vector<128x128xf32> to vector<128xf32>
    %71 = vector.shape_cast %70 : vector<128xf32> to vector<128x1xf32>
    %72 = vector.broadcast %71 : vector<128x1xf32> to vector<128x128xf32>
    %73 = arith.subf %69, %72 : vector<128x128xf32>
    %74 = math.exp %73 : vector<128x128xf32>
    %cst_25 = arith.constant dense<0.000000e+00> : vector<128xf32>
    %75 = vector.multi_reduction <add>, %74, %cst_25 [1] : vector<128x128xf32> to vector<128xf32>
    %76 = vector.shape_cast %75 : vector<128xf32> to vector<128x1xf32>
    %77 = arith.truncf %74 : vector<128x128xf32> to vector<128x128xbf16>
    %cst_26 = arith.constant dense<0.000000e+00> : vector<128x32xf32>
    %78 = tpu.matmul %77, %68, %cst_26 {dimension_numbers = #tpu.dot_dimension_numbers<[1], [0], [0], [1], [0, 0, 1, 1], [], []>} : vector<128x128xbf16>, vector<128x32xbf16>, vector<128x32xf32> -> vector<128x32xf32>
    %79 = tpu.reciprocal %76 {approx = true} : vector<128x1xf32> -> vector<128x1xf32>
    %80 = vector.broadcast %79 : vector<128x1xf32> to vector<128x32xf32>
    %81 = arith.mulf %78, %80 : vector<128x32xf32>
    %82 = arith.truncf %81 : vector<128x32xf32> to vector<128x32xbf16>
    %83 = vector.extract_strided_slice %38 {offsets = [32, 0], sizes = [32, 128], strides = [1, 1]} : vector<128x128xbf16> to vector<32x128xbf16>
    %cst_27 = arith.constant dense<0.000000e+00> : vector<128x128xf32>
    %84 = tpu.matmul %82, %83, %cst_27 {dimension_numbers = #tpu.dot_dimension_numbers<[1], [0], [0], [1], [0, 0, 1, 1], [], []>} : vector<128x32xbf16>, vector<32x128xbf16>, vector<128x128xf32> -> vector<128x128xf32>
    %85 = arith.addf %62, %84 : vector<128x128xf32>
    %86 = vector.extract_strided_slice %37 {offsets = [0, 64], sizes = [128, 32], strides = [1, 1]} : vector<128x384xf32> to vector<128x32xf32>
    %87 = arith.truncf %86 : vector<128x32xf32> to vector<128x32xbf16>
    %88 = vector.extract_strided_slice %37 {offsets = [0, 192], sizes = [128, 32], strides = [1, 1]} : vector<128x384xf32> to vector<128x32xf32>
    %89 = arith.truncf %88 : vector<128x32xf32> to vector<128x32xbf16>
    %90 = vector.extract_strided_slice %37 {offsets = [0, 320], sizes = [128, 32], strides = [1, 1]} : vector<128x384xf32> to vector<128x32xf32>
    %91 = arith.truncf %90 : vector<128x32xf32> to vector<128x32xbf16>
    %cst_28 = arith.constant dense<0.000000e+00> : vector<128x128xf32>
    %92 = tpu.matmul %87, %89, %cst_28 {dimension_numbers = #tpu.dot_dimension_numbers<[1], [1], [0], [0], [0, 0, 1, 0], [], []>} : vector<128x32xbf16>, vector<128x32xbf16>, vector<128x128xf32> -> vector<128x128xf32>
    %cst_29 = arith.constant dense<0xFF800000> : vector<128xf32>
    %93 = vector.multi_reduction <maximumf>, %92, %cst_29 [1] : vector<128x128xf32> to vector<128xf32>
    %94 = vector.shape_cast %93 : vector<128xf32> to vector<128x1xf32>
    %95 = vector.broadcast %94 : vector<128x1xf32> to vector<128x128xf32>
    %96 = arith.subf %92, %95 : vector<128x128xf32>
    %97 = math.exp %96 : vector<128x128xf32>
    %cst_30 = arith.constant dense<0.000000e+00> : vector<128xf32>
    %98 = vector.multi_reduction <add>, %97, %cst_30 [1] : vector<128x128xf32> to vector<128xf32>
    %99 = vector.shape_cast %98 : vector<128xf32> to vector<128x1xf32>
    %100 = arith.truncf %97 : vector<128x128xf32> to vector<128x128xbf16>
    %cst_31 = arith.constant dense<0.000000e+00> : vector<128x32xf32>
    %101 = tpu.matmul %100, %91, %cst_31 {dimension_numbers = #tpu.dot_dimension_numbers<[1], [0], [0], [1], [0, 0, 1, 1], [], []>} : vector<128x128xbf16>, vector<128x32xbf16>, vector<128x32xf32> -> vector<128x32xf32>
    %102 = tpu.reciprocal %99 {approx = true} : vector<128x1xf32> -> vector<128x1xf32>
    %103 = vector.broadcast %102 : vector<128x1xf32> to vector<128x32xf32>
    %104 = arith.mulf %101, %103 : vector<128x32xf32>
    %105 = arith.truncf %104 : vector<128x32xf32> to vector<128x32xbf16>
    %106 = vector.extract_strided_slice %38 {offsets = [64, 0], sizes = [32, 128], strides = [1, 1]} : vector<128x128xbf16> to vector<32x128xbf16>
    %cst_32 = arith.constant dense<0.000000e+00> : vector<128x128xf32>
    %107 = tpu.matmul %105, %106, %cst_32 {dimension_numbers = #tpu.dot_dimension_numbers<[1], [0], [0], [1], [0, 0, 1, 1], [], []>} : vector<128x32xbf16>, vector<32x128xbf16>, vector<128x128xf32> -> vector<128x128xf32>
    %108 = arith.addf %85, %107 : vector<128x128xf32>
    %109 = vector.extract_strided_slice %37 {offsets = [0, 96], sizes = [128, 32], strides = [1, 1]} : vector<128x384xf32> to vector<128x32xf32>
    %110 = arith.truncf %109 : vector<128x32xf32> to vector<128x32xbf16>
    %111 = vector.extract_strided_slice %37 {offsets = [0, 224], sizes = [128, 32], strides = [1, 1]} : vector<128x384xf32> to vector<128x32xf32>
    %112 = arith.truncf %111 : vector<128x32xf32> to vector<128x32xbf16>
    %113 = vector.extract_strided_slice %37 {offsets = [0, 352], sizes = [128, 32], strides = [1, 1]} : vector<128x384xf32> to vector<128x32xf32>
    %114 = arith.truncf %113 : vector<128x32xf32> to vector<128x32xbf16>
    %cst_33 = arith.constant dense<0.000000e+00> : vector<128x128xf32>
    %115 = tpu.matmul %110, %112, %cst_33 {dimension_numbers = #tpu.dot_dimension_numbers<[1], [1], [0], [0], [0, 0, 1, 0], [], []>} : vector<128x32xbf16>, vector<128x32xbf16>, vector<128x128xf32> -> vector<128x128xf32>
    %cst_34 = arith.constant dense<0xFF800000> : vector<128xf32>
    %116 = vector.multi_reduction <maximumf>, %115, %cst_34 [1] : vector<128x128xf32> to vector<128xf32>
    %117 = vector.shape_cast %116 : vector<128xf32> to vector<128x1xf32>
    %118 = vector.broadcast %117 : vector<128x1xf32> to vector<128x128xf32>
    %119 = arith.subf %115, %118 : vector<128x128xf32>
    %120 = math.exp %119 : vector<128x128xf32>
    %cst_35 = arith.constant dense<0.000000e+00> : vector<128xf32>
    %121 = vector.multi_reduction <add>, %120, %cst_35 [1] : vector<128x128xf32> to vector<128xf32>
    %122 = vector.shape_cast %121 : vector<128xf32> to vector<128x1xf32>
    %123 = arith.truncf %120 : vector<128x128xf32> to vector<128x128xbf16>
    %cst_36 = arith.constant dense<0.000000e+00> : vector<128x32xf32>
    %124 = tpu.matmul %123, %114, %cst_36 {dimension_numbers = #tpu.dot_dimension_numbers<[1], [0], [0], [1], [0, 0, 1, 1], [], []>} : vector<128x128xbf16>, vector<128x32xbf16>, vector<128x32xf32> -> vector<128x32xf32>
    %125 = tpu.reciprocal %122 {approx = true} : vector<128x1xf32> -> vector<128x1xf32>
    %126 = vector.broadcast %125 : vector<128x1xf32> to vector<128x32xf32>
    %127 = arith.mulf %124, %126 : vector<128x32xf32>
    %128 = arith.truncf %127 : vector<128x32xf32> to vector<128x32xbf16>
    %129 = vector.extract_strided_slice %38 {offsets = [96, 0], sizes = [32, 128], strides = [1, 1]} : vector<128x128xbf16> to vector<32x128xbf16>
    %cst_37 = arith.constant dense<0.000000e+00> : vector<128x128xf32>
    %130 = tpu.matmul %128, %129, %cst_37 {dimension_numbers = #tpu.dot_dimension_numbers<[1], [0], [0], [1], [0, 0, 1, 1], [], []>} : vector<128x32xbf16>, vector<32x128xbf16>, vector<128x128xf32> -> vector<128x128xf32>
    %131 = arith.addf %108, %130 : vector<128x128xf32>
    %132 = arith.addf %1, %131 : vector<128x128xf32>
    %c0_38 = arith.constant 0 : index
    %c0_39 = arith.constant 0 : index
    %133 = vector.load %arg7[%c0_38, %c0_39] : memref<1x128xf32, #tpu.memory_space<vmem>>, vector<1x128xf32>
    %134 = vector.shape_cast %133 : vector<1x128xf32> to vector<128xf32>
    %135 = vector.shape_cast %134 : vector<128xf32> to vector<1x128xf32>
    %136 = vector.broadcast %135 : vector<1x128xf32> to vector<128x128xf32>
    %137 = arith.addf %132, %136 : vector<128x128xf32>
    %c0_40 = arith.constant 0 : index
    %c0_41 = arith.constant 0 : index
    %138 = vector.load %arg8[%c0_40, %c0_41] : memref<1x128xf32, #tpu.memory_space<vmem>>, vector<1x128xf32>
    %139 = vector.shape_cast %138 : vector<1x128xf32> to vector<128xf32>
    %c0_42 = arith.constant 0 : index
    %c0_43 = arith.constant 0 : index
    %140 = vector.load %arg9[%c0_42, %c0_43] : memref<1x128xf32, #tpu.memory_space<vmem>>, vector<1x128xf32>
    %141 = vector.shape_cast %140 : vector<1x128xf32> to vector<128xf32>
    %cst_44 = arith.constant dense<0.000000e+00> : vector<128xf32>
    %142 = vector.multi_reduction <add>, %137, %cst_44 [1] : vector<128x128xf32> to vector<128xf32>
    %143 = vector.shape_cast %142 : vector<128xf32> to vector<128x1xf32>
    %cst_45 = arith.constant 1.280000e+02 : f32
    %144 = vector.broadcast %cst_45 : f32 to vector<128x1xf32>
    %145 = arith.divf %143, %144 : vector<128x1xf32>
    %146 = vector.broadcast %145 : vector<128x1xf32> to vector<128x128xf32>
    %147 = arith.subf %137, %146 : vector<128x128xf32>
    %148 = arith.mulf %147, %147 : vector<128x128xf32>
    %cst_46 = arith.constant dense<0.000000e+00> : vector<128xf32>
    %149 = vector.multi_reduction <add>, %148, %cst_46 [1] : vector<128x128xf32> to vector<128xf32>
    %150 = vector.shape_cast %149 : vector<128xf32> to vector<128x1xf32>
    %cst_47 = arith.constant 1.280000e+02 : f32
    %151 = vector.broadcast %cst_47 : f32 to vector<128x1xf32>
    %152 = arith.divf %150, %151 : vector<128x1xf32>
    %153 = vector.broadcast %145 : vector<128x1xf32> to vector<128x128xf32>
    %154 = arith.subf %137, %153 : vector<128x128xf32>
    %cst_48 = arith.constant 9.99999997E-7 : f32
    %155 = vector.broadcast %cst_48 : f32 to vector<128x1xf32>
    %156 = arith.addf %152, %155 : vector<128x1xf32>
    %157 = math.rsqrt %156 : vector<128x1xf32>
    %158 = vector.broadcast %157 : vector<128x1xf32> to vector<128x128xf32>
    %159 = arith.mulf %154, %158 : vector<128x128xf32>
    %160 = vector.shape_cast %139 : vector<128xf32> to vector<1x128xf32>
    %161 = vector.broadcast %160 : vector<1x128xf32> to vector<128x128xf32>
    %162 = arith.mulf %159, %161 : vector<128x128xf32>
    %163 = vector.shape_cast %141 : vector<128xf32> to vector<1x128xf32>
    %164 = vector.broadcast %163 : vector<1x128xf32> to vector<128x128xf32>
    %165 = arith.addf %162, %164 : vector<128x128xf32>
    %166 = arith.truncf %165 : vector<128x128xf32> to vector<128x128xbf16>
    %c0_49 = arith.constant 0 : index
    %c0_50 = arith.constant 0 : index
    %167 = vector.load %arg10[%c0_49, %c0_50] : memref<128x256xbf16, #tpu.memory_space<vmem>>, vector<128x256xbf16>
    %cst_51 = arith.constant dense<0.000000e+00> : vector<128x256xf32>
    %168 = tpu.matmul %166, %167, %cst_51 {dimension_numbers = #tpu.dot_dimension_numbers<[1], [0], [0], [1], [0, 0, 1, 1], [], []>} : vector<128x128xbf16>, vector<128x256xbf16>, vector<128x256xf32> -> vector<128x256xf32>
    %c0_52 = arith.constant 0 : index
    %c0_53 = arith.constant 0 : index
    %169 = vector.load %arg11[%c0_52, %c0_53] : memref<1x256xf32, #tpu.memory_space<vmem>>, vector<1x256xf32>
    %170 = vector.shape_cast %169 : vector<1x256xf32> to vector<256xf32>
    %171 = vector.shape_cast %170 : vector<256xf32> to vector<1x256xf32>
    %172 = vector.broadcast %171 : vector<1x256xf32> to vector<128x256xf32>
    %173 = arith.addf %168, %172 : vector<128x256xf32>
    %cst_54 = arith.constant 0.636619746 : f32
    %174 = math.sqrt %cst_54 : f32
    %cst_55 = arith.constant 5.000000e-01 : f32
    %175 = vector.broadcast %cst_55 : f32 to vector<128x256xf32>
    %176 = arith.mulf %175, %173 : vector<128x256xf32>
    %cst_56 = arith.constant 4.471500e-02 : f32
    %177 = vector.broadcast %cst_56 : f32 to vector<128x256xf32>
    %178 = arith.mulf %177, %173 : vector<128x256xf32>
    %179 = arith.mulf %178, %173 : vector<128x256xf32>
    %180 = arith.mulf %179, %173 : vector<128x256xf32>
    %181 = arith.addf %173, %180 : vector<128x256xf32>
    %182 = vector.broadcast %174 : f32 to vector<128x256xf32>
    %183 = arith.mulf %182, %181 : vector<128x256xf32>
    %184 = math.tanh %183 : vector<128x256xf32>
    %cst_57 = arith.constant 1.000000e+00 : f32
    %185 = vector.broadcast %cst_57 : f32 to vector<128x256xf32>
    %186 = arith.addf %185, %184 : vector<128x256xf32>
    %187 = arith.mulf %176, %186 : vector<128x256xf32>
    %188 = arith.truncf %187 : vector<128x256xf32> to vector<128x256xbf16>
    %c0_58 = arith.constant 0 : index
    %c0_59 = arith.constant 0 : index
    %189 = vector.load %arg12[%c0_58, %c0_59] : memref<256x128xbf16, #tpu.memory_space<vmem>>, vector<256x128xbf16>
    %cst_60 = arith.constant dense<0.000000e+00> : vector<128x128xf32>
    %190 = tpu.matmul %188, %189, %cst_60 {dimension_numbers = #tpu.dot_dimension_numbers<[1], [0], [0], [1], [0, 0, 1, 1], [], []>} : vector<128x256xbf16>, vector<256x128xbf16>, vector<128x128xf32> -> vector<128x128xf32>
    %c0_61 = arith.constant 0 : index
    %c0_62 = arith.constant 0 : index
    %191 = vector.load %arg13[%c0_61, %c0_62] : memref<1x128xf32, #tpu.memory_space<vmem>>, vector<1x128xf32>
    %192 = vector.shape_cast %191 : vector<1x128xf32> to vector<128xf32>
    %193 = vector.shape_cast %192 : vector<128xf32> to vector<1x128xf32>
    %194 = vector.broadcast %193 : vector<1x128xf32> to vector<128x128xf32>
    %195 = arith.addf %190, %194 : vector<128x128xf32>
    %196 = arith.addf %137, %195 : vector<128x128xf32>
    %c0_63 = arith.constant 0 : index
    %c0_64 = arith.constant 0 : index
    %c0_65 = arith.constant 0 : index
    %197 = vector.load %arg14[%c0_63, %c0_64, %c0_65] : memref<1x128x128xf32, #tpu.memory_space<vmem>>, vector<1x128x128xf32>
    %198 = vector.shape_cast %197 : vector<1x128x128xf32> to vector<128x128xf32>
    %199 = vector.shape_cast %196 : vector<128x128xf32> to vector<1x128x128xf32>
    tpu.vector_store %arg14[%c0_63, %c0_64, %c0_65], %199 {strides = array<i32>} : memref<1x128x128xf32, #tpu.memory_space<vmem>>, vector<1x128x128xf32>,
    return
  }
  func.func @transform_0(%arg0: i32) -> (i32, i32, i32) {
    %c0_i32 = arith.constant 0 : i32
    %c0_i32_0 = arith.constant 0 : i32
    %c0_i32_1 = arith.constant 0 : i32
    return %arg0, %c0_i32, %c0_i32_0 : i32, i32, i32
  }
  func.func @transform_1(%arg0: i32) -> (i32, i32) {
    %c0_i32 = arith.constant 0 : i32
    %c0_i32_0 = arith.constant 0 : i32
    %c0_i32_1 = arith.constant 0 : i32
    return %c0_i32, %c0_i32_0 : i32, i32
  }
  func.func @transform_2(%arg0: i32) -> (i32, i32) {
    %c0_i32 = arith.constant 0 : i32
    %c0_i32_0 = arith.constant 0 : i32
    %c0_i32_1 = arith.constant 0 : i32
    return %c0_i32, %c0_i32_0 : i32, i32
  }
  func.func @transform_3(%arg0: i32) -> (i32, i32) {
    %c0_i32 = arith.constant 0 : i32
    %c0_i32_0 = arith.constant 0 : i32
    %c0_i32_1 = arith.constant 0 : i32
    return %c0_i32, %c0_i32_0 : i32, i32
  }
  func.func @transform_4(%arg0: i32) -> (i32, i32) {
    %c0_i32 = arith.constant 0 : i32
    %c0_i32_0 = arith.constant 0 : i32
    %c0_i32_1 = arith.constant 0 : i32
    return %c0_i32, %c0_i32_0 : i32, i32
  }
  func.func @transform_5(%arg0: i32) -> (i32, i32) {
    %c0_i32 = arith.constant 0 : i32
    %c0_i32_0 = arith.constant 0 : i32
    %c0_i32_1 = arith.constant 0 : i32
    return %c0_i32, %c0_i32_0 : i32, i32
  }
  func.func @transform_6(%arg0: i32) -> (i32, i32) {
    %c0_i32 = arith.constant 0 : i32
    %c0_i32_0 = arith.constant 0 : i32
    %c0_i32_1 = arith.constant 0 : i32
    return %c0_i32, %c0_i32_0 : i32, i32
  }
  func.func @transform_7(%arg0: i32) -> (i32, i32) {
    %c0_i32 = arith.constant 0 : i32
    %c0_i32_0 = arith.constant 0 : i32
    %c0_i32_1 = arith.constant 0 : i32
    return %c0_i32, %c0_i32_0 : i32, i32
  }
  func.func @transform_8(%arg0: i32) -> (i32, i32) {
    %c0_i32 = arith.constant 0 : i32
    %c0_i32_0 = arith.constant 0 : i32
    %c0_i32_1 = arith.constant 0 : i32
    return %c0_i32, %c0_i32_0 : i32, i32
  }
  func.func @transform_9(%arg0: i32) -> (i32, i32) {
    %c0_i32 = arith.constant 0 : i32
    %c0_i32_0 = arith.constant 0 : i32
    %c0_i32_1 = arith.constant 0 : i32
    return %c0_i32, %c0_i32_0 : i32, i32
  }
  func.func @transform_10(%arg0: i32) -> (i32, i32) {
    %c0_i32 = arith.constant 0 : i32
    %c0_i32_0 = arith.constant 0 : i32
    %c0_i32_1 = arith.constant 0 : i32
    return %c0_i32, %c0_i32_0 : i32, i32
  }
  func.func @transform_11(%arg0: i32) -> (i32, i32) {
    %c0_i32 = arith.constant 0 : i32
    %c0_i32_0 = arith.constant 0 : i32
    %c0_i32_1 = arith.constant 0 : i32
    return %c0_i32, %c0_i32_0 : i32, i32
  }
  func.func @transform_12(%arg0: i32) -> (i32, i32) {
    %c0_i32 = arith.constant 0 : i32
    %c0_i32_0 = arith.constant 0 : i32
    %c0_i32_1 = arith.constant 0 : i32
    return %c0_i32, %c0_i32_0 : i32, i32
  }
  func.func @transform_13(%arg0: i32) -> (i32, i32, i32) {
    %c0_i32 = arith.constant 0 : i32
    %c0_i32_0 = arith.constant 0 : i32
    %c0_i32_1 = arith.constant 0 : i32
    return %arg0, %c0_i32, %c0_i32_0 : i32, i32, i32
  }
}

</mosaic_0001>

<llo_original>
// kernel: tpu_custom_call.1
$region0: #{tpu_custom_call.1}
  #allocation0 [shape = 'u32[]', space=smem, size = 0x4, offset = 0x4, fixed_abs, tag = 'smem constant byte address 0x4 - core index']
  #allocation1 [shape = 'u32[144,128]{1,0:T(1,128)}', space=vmem, size = 0x12000, scoped, tag = 'internal scratch']
  %s0 = inlined_call_operand.hbm [shape: f32[2,128,128], index: 0, kind: input, shape index: {}]
  %s1 = inlined_call_operand.hbm [shape: f32[1,128], index: 1, kind: input, shape index: {}]
  %s2 = inlined_call_operand.hbm [shape: f32[1,128], index: 2, kind: input, shape index: {}]
  %s3 = inlined_call_operand.hbm [shape: bf16[128,384], index: 3, kind: input, shape index: {}]
  %s4 = inlined_call_operand.hbm [shape: f32[1,384], index: 4, kind: input, shape index: {}]
  %s5 = inlined_call_operand.hbm [shape: bf16[128,128], index: 5, kind: input, shape index: {}]
  %s6 = inlined_call_operand.hbm [shape: f32[1,128], index: 6, kind: input, shape index: {}]
  %s7 = inlined_call_operand.hbm [shape: f32[1,128], index: 7, kind: input, shape index: {}]
  %s8 = inlined_call_operand.hbm [shape: f32[1,128], index: 8, kind: input, shape index: {}]
  %s9 = inlined_call_operand.hbm [shape: bf16[128,256], index: 9, kind: input, shape index: {}]
  %s10 = inlined_call_operand.hbm [shape: f32[1,256], index: 10, kind: input, shape index: {}]
  %s11 = inlined_call_operand.hbm [shape: bf16[256,128], index: 11, kind: input, shape index: {}]
  %s12 = inlined_call_operand.hbm [shape: f32[1,128], index: 12, kind: input, shape index: {}]
  %s13 = inlined_call_operand.hbm [shape: f32[2,128,128], index: 13, kind: output, shape index: {}]
  %s14 = sld [smem:[#allocation0]]
  $region137: #{tpu_custom_call.1} parent=0
    _
  %s16 = ssub.s32 1, %s14
  %s17 = scalar_select 0, %s16, %s14
  $region1: #{tpu_custom_call.1} parent=0
    #allocation2 [shape = 'u8[131072]{0}', space=vmem, size = 0x20000, scoped, tag = 'input window, operand 0']
    #allocation3 [shape = 's32[2]{0}', space=sflag, size = 0x8, scoped, tag = 'scoped memory for tpu_custom_call.1']
    #allocation4 [shape = 's32[2]{0}', space=sflag, size = 0x8, scoped, tag = 'scoped memory for tpu_custom_call.1']
    #allocation5 [shape = 'u8[512]{0}', space=vmem, size = 0x400, scoped, tag = 'input window, operand 1, single buffered']
    #allocation6 [shape = 's32[1]{0}', space=sflag, size = 0x4, scoped, tag = 'scoped memory for tpu_custom_call.1']
    #allocation7 [shape = 'u8[512]{0}', space=vmem, size = 0x400, scoped, tag = 'input window, operand 2, single buffered']
    #allocation8 [shape = 'u8[98304]{0}', space=vmem, size = 0x18000, scoped, tag = 'input window, operand 3, single buffered']
    #allocation9 [shape = 's32[1]{0}', space=sflag, size = 0x4, scoped, tag = 'scoped memory for tpu_custom_call.1']
    #allocation10 [shape = 'u8[1536]{0}', space=vmem, size = 0x800, scoped, tag = 'input window, operand 4, single buffered']
    #allocation11 [shape = 'u8[32768]{0}', space=vmem, size = 0x8000, scoped, tag = 'input window, operand 5, single buffered']
    #allocation12 [shape = 's32[1]{0}', space=sflag, size = 0x4, scoped, tag = 'scoped memory for tpu_custom_call.1']
    #allocation13 [shape = 'u8[512]{0}', space=vmem, size = 0x400, scoped, tag = 'input window, operand 6, single buffered']
    #allocation14 [shape = 'u8[512]{0}', space=vmem, size = 0x400, scoped, tag = 'input window, operand 7, single buffered']
    #allocation15 [shape = 's32[1]{0}', space=sflag, size = 0x4, scoped, tag = 'scoped memory for tpu_custom_call.1']
    #allocation16 [shape = 'u8[512]{0}', space=vmem, size = 0x400, scoped, tag = 'input window, operand 8, single buffered']
    #allocation17 [shape = 'u8[65536]{0}', space=vmem, size = 0x10000, scoped, tag = 'input window, operand 9, single buffered']
    #allocation18 [shape = 's32[1]{0}', space=sflag, size = 0x4, scoped, tag = 'scoped memory for tpu_custom_call.1']
    #allocation19 [shape = 'u8[1024]{0}', space=vmem, size = 0x400, scoped, tag = 'input window, operand 10, single buffered']
    #allocation20 [shape = 'u8[65536]{0}', space=vmem, size = 0x10000, scoped, tag = 'input window, operand 11, single buffered']
    #allocation21 [shape = 's32[1]{0}', space=sflag, size = 0x4, scoped, tag = 'scoped memory for tpu_custom_call.1']
    #allocation22 [shape = 'u8[512]{0}', space=vmem, size = 0x400, scoped, tag = 'input window, operand 12, single buffered']
    #allocation23 [shape = 'u8[131072]{0}', space=vmem, size = 0x20000, scoped, tag = 'output window, operand 0']
    %18 = vsyncpa [#allocation3], 0
    %s19 = scalar_lea.sflag [#allocation3], 1
    %20 = vsyncpa %s19, 0
    %21 = vsyncpa [#allocation6], 0
    %22 = vsyncpa [#allocation9], 0
    %23 = vsyncpa [#allocation12], 0
    %24 = vsyncpa [#allocation15], 0
    %25 = vsyncpa [#allocation18], 0
    %26 = vsyncpa [#allocation21], 0
    %27 = vsyncpa [#allocation4], 0
    %s28 = scalar_lea.sflag [#allocation4], 1
    %29 = vsyncpa %s28, 0
    loop: start=0, step=1, limit=4
    $region2: #{tpu_custom_call.1} parent=1 // loop_pre_header
      _
    $region3: #{tpu_custom_call.1} parent=1 // loop_header
      %s31 = sphi 0, %s35
      %p32 = scmp.ge.s32.totalorder %s31, 4
      %s41 = sphi 0, %s43
      %s44 = sphi 0, %s41
      %s45 = sphi 0, %s44
      %s61 = sphi 0, %s45
      %s65 = sphi 0, %s65
      %s67 = sphi 0, %s65
      %s68 = sphi 0, %s67
      %s82 = sphi 0, %s68
      %s86 = sphi 0, %s86
      %s88 = sphi 0, %s86
      %s89 = sphi 0, %s88
      %s103 = sphi 0, %s89
      %s107 = sphi 0, %s107
      %s109 = sphi 0, %s107
      %s110 = sphi 0, %s109
      %s124 = sphi 0, %s110
      %s128 = sphi 0, %s128
      %s130 = sphi 0, %s128
      %s131 = sphi 0, %s130
      %s145 = sphi 0, %s131
      %s149 = sphi 0, %s149
      %s151 = sphi 0, %s149
      %s152 = sphi 0, %s151
      %s166 = sphi 0, %s152
      %s170 = sphi 0, %s170
      %s172 = sphi 0, %s170
      %s173 = sphi 0, %s172
      %s187 = sphi 0, %s173
      %s191 = sphi 0, %s191
      %s193 = sphi 0, %s191
      %s194 = sphi 0, %s193
      %s208 = sphi 0, %s194
      %s212 = sphi 0, %s212
      %s214 = sphi 0, %s212
      %s215 = sphi 0, %s214
      %s229 = sphi 0, %s215
      %s233 = sphi 0, %s233
      %s235 = sphi 0, %s233
      %s236 = sphi 0, %s235
      %s250 = sphi 0, %s236
      %s254 = sphi 0, %s254
      %s256 = sphi 0, %s254
      %s257 = sphi 0, %s256
      %s271 = sphi 0, %s257
      %s275 = sphi 0, %s275
      %s277 = sphi 0, %s275
      %s278 = sphi 0, %s277
      %s292 = sphi 0, %s278
      %s296 = sphi 0, %s296
      %s298 = sphi 0, %s296
      %s299 = sphi 0, %s298
      %s313 = sphi 0, %s299
      %s319 = sphi 0, %s321
      %s322 = sphi 0, %s319
      %s323 = sphi 0, %s322
      %s339 = sphi 0, %s323
    $region4: #{tpu_custom_call.1} parent=1 // loop_header_branch
      %34 = sbr.rel (%p32) target = $region8
    $region5: #{tpu_custom_call.1} parent=1 // loop_body
      %s36 = ssub.s32 %s31, 1
      %s37 = ssub.s32 %s31, 2
      %s38 = sadd.s32 %s31, 1
      %s39 = ssub.s32 %s31, %s38
      %p40 = scmp.eq.s32.totalorder %s39, 0
      %s42 = sadd.s32 %s41, 1
      %s43 = scalar_select %p40, %s41, %s42
      %p46 = pneg %p40
      %p47 = scmp.eq.s32.totalorder %s31, 1
      %p48 = por %p46, %p47
      %p49 = scmp.ne.s32.totalorder %s41, %s44
      %p50 = scmp.eq.s32.totalorder %s31, 0
      %p51 = por %p49, %p50
      %p52 = scmp.ne.s32.totalorder %s41, %s44
      %p53 = scmp.eq.s32.totalorder %s36, 1
      %p54 = por %p52, %p53
      %p55 = scmp.ne.s32.totalorder %s44, %s45
      %p56 = scmp.eq.s32.totalorder %s36, 0
      %p57 = por %p55, %p56
      %p58 = scmp.ne.s32.totalorder %s44, %s45
      %p59 = scmp.eq.s32.totalorder %s37, 1
      %p60 = por %p58, %p59
      %p62 = scmp.ne.s32.totalorder %s45, %s61
      %p63 = scmp.eq.s32.totalorder %s37, 0
      %p64 = por %p62, %p63
      %s66 = sadd.s32 %s65, 1
      %p69 = scmp.eq.s32.totalorder %s31, 1
      %p70 = scmp.ne.s32.totalorder %s65, %s67
      %p71 = scmp.eq.s32.totalorder %s31, 0
      %p72 = por %p70, %p71
      %p73 = scmp.ne.s32.totalorder %s65, %s67
      %p74 = scmp.eq.s32.totalorder %s36, 1
      %p75 = por %p73, %p74
      %p76 = scmp.ne.s32.totalorder %s67, %s68
      %p77 = scmp.eq.s32.totalorder %s36, 0
      %p78 = por %p76, %p77
      %p79 = scmp.ne.s32.totalorder %s67, %s68
      %p80 = scmp.eq.s32.totalorder %s37, 1
      %p81 = por %p79, %p80
      %p83 = scmp.ne.s32.totalorder %s68, %s82
      %p84 = scmp.eq.s32.totalorder %s37, 0
      %p85 = por %p83, %p84
      %s87 = sadd.s32 %s86, 1
      %p90 = scmp.eq.s32.totalorder %s31, 1
      %p91 = scmp.ne.s32.totalorder %s86, %s88
      %p92 = scmp.eq.s32.totalorder %s31, 0
      %p93 = por %p91, %p92
      %p94 = scmp.ne.s32.totalorder %s86, %s88
      %p95 = scmp.eq.s32.totalorder %s36, 1
      %p96 = por %p94, %p95
      %p97 = scmp.ne.s32.totalorder %s88, %s89
      %p98 = scmp.eq.s32.totalorder %s36, 0
      %p99 = por %p97, %p98
      %p100 = scmp.ne.s32.totalorder %s88, %s89
      %p101 = scmp.eq.s32.totalorder %s37, 1
      %p102 = por %p100, %p101
      %p104 = scmp.ne.s32.totalorder %s89, %s103
      %p105 = scmp.eq.s32.totalorder %s37, 0
      %p106 = por %p104, %p105
      %s108 = sadd.s32 %s107, 1
      %p111 = scmp.eq.s32.totalorder %s31, 1
      %p112 = scmp.ne.s32.totalorder %s107, %s109
      %p113 = scmp.eq.s32.totalorder %s31, 0
      %p114 = por %p112, %p113
      %p115 = scmp.ne.s32.totalorder %s107, %s109
      %p116 = scmp.eq.s32.totalorder %s36, 1
      %p117 = por %p115, %p116
      %p118 = scmp.ne.s32.totalorder %s109, %s110
      %p119 = scmp.eq.s32.totalorder %s36, 0
      %p120 = por %p118, %p119
      %p121 = scmp.ne.s32.totalorder %s109, %s110
      %p122 = scmp.eq.s32.totalorder %s37, 1
      %p123 = por %p121, %p122
      %p125 = scmp.ne.s32.totalorder %s110, %s124
      %p126 = scmp.eq.s32.totalorder %s37, 0
      %p127 = por %p125, %p126
      %s129 = sadd.s32 %s128, 1
      %p132 = scmp.eq.s32.totalorder %s31, 1
      %p133 = scmp.ne.s32.totalorder %s128, %s130
      %p134 = scmp.eq.s32.totalorder %s31, 0
      %p135 = por %p133, %p134
      %p136 = scmp.ne.s32.totalorder %s128, %s130
      %p137 = scmp.eq.s32.totalorder %s36, 1
      %p138 = por %p136, %p137
      %p139 = scmp.ne.s32.totalorder %s130, %s131
      %p140 = scmp.eq.s32.totalorder %s36, 0
      %p141 = por %p139, %p140
      %p142 = scmp.ne.s32.totalorder %s130, %s131
      %p143 = scmp.eq.s32.totalorder %s37, 1
      %p144 = por %p142, %p143
      %p146 = scmp.ne.s32.totalorder %s131, %s145
      %p147 = scmp.eq.s32.totalorder %s37, 0
      %p148 = por %p146, %p147
      %s150 = sadd.s32 %s149, 1
      %p153 = scmp.eq.s32.totalorder %s31, 1
      %p154 = scmp.ne.s32.totalorder %s149, %s151
      %p155 = scmp.eq.s32.totalorder %s31, 0
      %p156 = por %p154, %p155
      %p157 = scmp.ne.s32.totalorder %s149, %s151
      %p158 = scmp.eq.s32.totalorder %s36, 1
      %p159 = por %p157, %p158
      %p160 = scmp.ne.s32.totalorder %s151, %s152
      %p161 = scmp.eq.s32.totalorder %s36, 0
      %p162 = por %p160, %p161
      %p163 = scmp.ne.s32.totalorder %s151, %s152
      %p164 = scmp.eq.s32.totalorder %s37, 1
      %p165 = por %p163, %p164
      %p167 = scmp.ne.s32.totalorder %s152, %s166
      %p168 = scmp.eq.s32.totalorder %s37, 0
      %p169 = por %p167, %p168
      %s171 = sadd.s32 %s170, 1
      %p174 = scmp.eq.s32.totalorder %s31, 1
      %p175 = scmp.ne.s32.totalorder %s170, %s172
      %p176 = scmp.eq.s32.totalorder %s31, 0
      %p177 = por %p175, %p176
      %p178 = scmp.ne.s32.totalorder %s170, %s172
      %p179 = scmp.eq.s32.totalorder %s36, 1
      %p180 = por %p178, %p179
      %p181 = scmp.ne.s32.totalorder %s172, %s173
      %p182 = scmp.eq.s32.totalorder %s36, 0
      %p183 = por %p181, %p182
      %p184 = scmp.ne.s32.totalorder %s172, %s173
      %p185 = scmp.eq.s32.totalorder %s37, 1
      %p186 = por %p184, %p185
      %p188 = scmp.ne.s32.totalorder %s173, %s187
      %p189 = scmp.eq.s32.totalorder %s37, 0
      %p190 = por %p188, %p189
      %s192 = sadd.s32 %s191, 1
      %p195 = scmp.eq.s32.totalorder %s31, 1
      %p196 = scmp.ne.s32.totalorder %s191, %s193
      %p197 = scmp.eq.s32.totalorder %s31, 0
      %p198 = por %p196, %p197
      %p199 = scmp.ne.s32.totalorder %s191, %s193
      %p200 = scmp.eq.s32.totalorder %s36, 1
      %p201 = por %p199, %p200
      %p202 = scmp.ne.s32.totalorder %s193, %s194
      %p203 = scmp.eq.s32.totalorder %s36, 0
      %p204 = por %p202, %p203
      %p205 = scmp.ne.s32.totalorder %s193, %s194
      %p206 = scmp.eq.s32.totalorder %s37, 1
      %p207 = por %p205, %p206
      %p209 = scmp.ne.s32.totalorder %s194, %s208
      %p210 = scmp.eq.s32.totalorder %s37, 0
      %p211 = por %p209, %p210
      %s213 = sadd.s32 %s212, 1
      %p216 = scmp.eq.s32.totalorder %s31, 1
      %p217 = scmp.ne.s32.totalorder %s212, %s214
      %p218 = scmp.eq.s32.totalorder %s31, 0
      %p219 = por %p217, %p218
      %p220 = scmp.ne.s32.totalorder %s212, %s214
      %p221 = scmp.eq.s32.totalorder %s36, 1
      %p222 = por %p220, %p221
      %p223 = scmp.ne.s32.totalorder %s214, %s215
      %p224 = scmp.eq.s32.totalorder %s36, 0
      %p225 = por %p223, %p224
      %p226 = scmp.ne.s32.totalorder %s214, %s215
      %p227 = scmp.eq.s32.totalorder %s37, 1
      %p228 = por %p226, %p227
      %p230 = scmp.ne.s32.totalorder %s215, %s229
      %p231 = scmp.eq.s32.totalorder %s37, 0
      %p232 = por %p230, %p231
      %s234 = sadd.s32 %s233, 1
      %p237 = scmp.eq.s32.totalorder %s31, 1
      %p238 = scmp.ne.s32.totalorder %s233, %s235
      %p239 = scmp.eq.s32.totalorder %s31, 0
      %p240 = por %p238, %p239
      %p241 = scmp.ne.s32.totalorder %s233, %s235
      %p242 = scmp.eq.s32.totalorder %s36, 1
      %p243 = por %p241, %p242
      %p244 = scmp.ne.s32.totalorder %s235, %s236
      %p245 = scmp.eq.s32.totalorder %s36, 0
      %p246 = por %p244, %p245
      %p247 = scmp.ne.s32.totalorder %s235, %s236
      %p248 = scmp.eq.s32.totalorder %s37, 1
      %p249 = por %p247, %p248
      %p251 = scmp.ne.s32.totalorder %s236, %s250
      %p252 = scmp.eq.s32.totalorder %s37, 0
      %p253 = por %p251, %p252
      %s255 = sadd.s32 %s254, 1
      %p258 = scmp.eq.s32.totalorder %s31, 1
      %p259 = scmp.ne.s32.totalorder %s254, %s256
      %p260 = scmp.eq.s32.totalorder %s31, 0
      %p261 = por %p259, %p260
      %p262 = scmp.ne.s32.totalorder %s254, %s256
      %p263 = scmp.eq.s32.totalorder %s36, 1
      %p264 = por %p262, %p263
      %p265 = scmp.ne.s32.totalorder %s256, %s257
      %p266 = scmp.eq.s32.totalorder %s36, 0
      %p267 = por %p265, %p266
      %p268 = scmp.ne.s32.totalorder %s256, %s257
      %p269 = scmp.eq.s32.totalorder %s37, 1
      %p270 = por %p268, %p269
      %p272 = scmp.ne.s32.totalorder %s257, %s271
      %p273 = scmp.eq.s32.totalorder %s37, 0
      %p274 = por %p272, %p273
      %s276 = sadd.s32 %s275, 1
      %p279 = scmp.eq.s32.totalorder %s31, 1
      %p280 = scmp.ne.s32.totalorder %s275, %s277
      %p281 = scmp.eq.s32.totalorder %s31, 0
      %p282 = por %p280, %p281
      %p283 = scmp.ne.s32.totalorder %s275, %s277
      %p284 = scmp.eq.s32.totalorder %s36, 1
      %p285 = por %p283, %p284
      %p286 = scmp.ne.s32.totalorder %s277, %s278
      %p287 = scmp.eq.s32.totalorder %s36, 0
      %p288 = por %p286, %p287
      %p289 = scmp.ne.s32.totalorder %s277, %s278
      %p290 = scmp.eq.s32.totalorder %s37, 1
      %p291 = por %p289, %p290
      %p293 = scmp.ne.s32.totalorder %s278, %s292
      %p294 = scmp.eq.s32.totalorder %s37, 0
      %p295 = por %p293, %p294
      %s297 = sadd.s32 %s296, 1
      %p300 = scmp.eq.s32.totalorder %s31, 1
      %p301 = scmp.ne.s32.totalorder %s296, %s298
      %p302 = scmp.eq.s32.totalorder %s31, 0
      %p303 = por %p301, %p302
      %p304 = scmp.ne.s32.totalorder %s296, %s298
      %p305 = scmp.eq.s32.totalorder %s36, 1
      %p306 = por %p304, %p305
      %p307 = scmp.ne.s32.totalorder %s298, %s299
      %p308 = scmp.eq.s32.totalorder %s36, 0
      %p309 = por %p307, %p308
      %p310 = scmp.ne.s32.totalorder %s298, %s299
      %p311 = scmp.eq.s32.totalorder %s37, 1
      %p312 = por %p310, %p311
      %p314 = scmp.ne.s32.totalorder %s299, %s313
      %p315 = scmp.eq.s32.totalorder %s37, 0
      %p316 = por %p314, %p315
      %s317 = ssub.s32 %s31, %s38
      %p318 = scmp.eq.s32.totalorder %s317, 0
      %s320 = sadd.s32 %s319, 1
      %s321 = scalar_select %p318, %s319, %s320
      %p324 = pneg %p318
      %p325 = scmp.eq.s32.totalorder %s31, 1
      %p326 = por %p324, %p325
      %p327 = scmp.ne.s32.totalorder %s319, %s322
      %p328 = scmp.eq.s32.totalorder %s31, 0
      %p329 = por %p327, %p328
      %p330 = scmp.ne.s32.totalorder %s319, %s322
      %p331 = scmp.eq.s32.totalorder %s36, 1
      %p332 = por %p330, %p331
      %p333 = scmp.ne.s32.totalorder %s322, %s323
      %p334 = scmp.eq.s32.totalorder %s36, 0
      %p335 = por %p333, %p334
      %p336 = scmp.ne.s32.totalorder %s322, %s323
      %p337 = scmp.eq.s32.totalorder %s37, 1
      %p338 = por %p336, %p337
      %p340 = scmp.ne.s32.totalorder %s323, %s339
      %p341 = scmp.eq.s32.totalorder %s37, 0
      %p342 = por %p340, %p341
      %p343 = scmp.le.s32.totalorder 1, %s31
      %p344 = scmp.lt.s32.totalorder %s31, 3
      %p345 = pnand %p343, %p344
      %p346 = pneg %p345
      // Predicated region
      $region9: #{tpu_custom_call.1} parent=5 // pred_check
        _
      $region10: #{tpu_custom_call.1} parent=5 // pred_check_branch
        %348 = sbr.rel (%p345) target = $region12
      $region11: #{tpu_custom_call.1} parent=5 // pred_region
        %s349 = ssub.s32 %s31, 1
        // Predicated region
        $region13: #{tpu_custom_call.1} parent=11 // pred_check
          %p350 = pneg %p78
        $region14: #{tpu_custom_call.1} parent=11 // pred_check_branch
          %352 = sbr.rel (%p350) target = $region16
        $region15: #{tpu_custom_call.1} parent=11 // pred_region
          %s354 = ssub.s32 16, 16
          %355 = vsyncadd [#allocation6], %s354
          %s357 = sshll.u32 [#allocation5], 4
          %s358 = int_to_ptr.vmem [resolvable:$true] %s357
          %360 = dma.hbm_to_vmem [thread:$0]  %s1, 16, %s358, [#allocation6]
        $region16: #{tpu_custom_call.1} parent=11 // pred_fallthru
          _
        // Predicated region
        $region17: #{tpu_custom_call.1} parent=11 // pred_check
          %p361 = pneg %p99
        $region18: #{tpu_custom_call.1} parent=11 // pred_check_branch
          %363 = sbr.rel (%p361) target = $region20
        $region19: #{tpu_custom_call.1} parent=11 // pred_region
          %s365 = ssub.s32 16, 16
          %366 = vsyncadd [#allocation6], %s365
          %s368 = sshll.u32 [#allocation7], 4
          %s369 = int_to_ptr.vmem [resolvable:$true] %s368
          %371 = dma.hbm_to_vmem [thread:$0]  %s2, 16, %s369, [#allocation6]
        $region20: #{tpu_custom_call.1} parent=11 // pred_fallthru
          _
        // Predicated region
        $region21: #{tpu_custom_call.1} parent=11 // pred_check
          %p372 = pneg %p120
        $region22: #{tpu_custom_call.1} parent=11 // pred_check_branch
          %374 = sbr.rel (%p372) target = $region24
        $region23: #{tpu_custom_call.1} parent=11 // pred_region
          %s376 = ssub.s32 3072, 3072
          %377 = vsyncadd [#allocation9], %s376
          %s378 = sshll.u32 [#allocation8], 4
          %s379 = int_to_ptr.vmem [resolvable:$true] %s378
          %384 = dma.hbm_to_vmem [thread:$0]  %s3, 3072, %s379, [#allocation9], 192, 192, 12
        $region24: #{tpu_custom_call.1} parent=11 // pred_fallthru
          _
        // Predicated region
        $region25: #{tpu_custom_call.1} parent=11 // pred_check
          %p385 = pneg %p141
        $region26: #{tpu_custom_call.1} parent=11 // pred_check_branch
          %387 = sbr.rel (%p385) target = $region28
        $region27: #{tpu_custom_call.1} parent=11 // pred_region
          %s389 = ssub.s32 48, 48
          %390 = vsyncadd [#allocation9], %s389
          %s392 = sshll.u32 [#allocation10], 4
          %s393 = int_to_ptr.vmem [resolvable:$true] %s392
          %395 = dma.hbm_to_vmem [thread:$0]  %s4, 48, %s393, [#allocation9]
        $region28: #{tpu_custom_call.1} parent=11 // pred_fallthru
          _
        // Predicated region
        $region29: #{tpu_custom_call.1} parent=11 // pred_check
          %p396 = pneg %p162
        $region30: #{tpu_custom_call.1} parent=11 // pred_check_branch
          %398 = sbr.rel (%p396) target = $region32
        $region31: #{tpu_custom_call.1} parent=11 // pred_region
          %s400 = ssub.s32 1024, 1024
          %401 = vsyncadd [#allocation12], %s400
          %s402 = sshll.u32 [#allocation11], 4
          %s403 = int_to_ptr.vmem [resolvable:$true] %s402
          %408 = dma.hbm_to_vmem [thread:$0]  %s5, 1024, %s403, [#allocation12], 64, 64, 4
        $region32: #{tpu_custom_call.1} parent=11 // pred_fallthru
          _
        // Predicated region
        $region33: #{tpu_custom_call.1} parent=11 // pred_check
          %p409 = pneg %p183
        $region34: #{tpu_custom_call.1} parent=11 // pred_check_branch
          %411 = sbr.rel (%p409) target = $region36
        $region35: #{tpu_custom_call.1} parent=11 // pred_region
          %s413 = ssub.s32 16, 16
          %414 = vsyncadd [#allocation12], %s413
          %s416 = sshll.u32 [#allocation13], 4
          %s417 = int_to_ptr.vmem [resolvable:$true] %s416
          %419 = dma.hbm_to_vmem [thread:$0]  %s6, 16, %s417, [#allocation12]
        $region36: #{tpu_custom_call.1} parent=11 // pred_fallthru
          _
        // Predicated region
        $region37: #{tpu_custom_call.1} parent=11 // pred_check
          %p420 = pneg %p204
        $region38: #{tpu_custom_call.1} parent=11 // pred_check_branch
          %422 = sbr.rel (%p420) target = $region40
        $region39: #{tpu_custom_call.1} parent=11 // pred_region
          %s424 = ssub.s32 16, 16
          %425 = vsyncadd [#allocation15], %s424
          %s427 = sshll.u32 [#allocation14], 4
          %s428 = int_to_ptr.vmem [resolvable:$true] %s427
          %430 = dma.hbm_to_vmem [thread:$0]  %s7, 16, %s428, [#allocation15]
        $region40: #{tpu_custom_call.1} parent=11 // pred_fallthru
          _
        // Predicated region
        $region41: #{tpu_custom_call.1} parent=11 // pred_check
          %p431 = pneg %p225
        $region42: #{tpu_custom_call.1} parent=11 // pred_check_branch
          %433 = sbr.rel (%p431) target = $region44
        $region43: #{tpu_custom_call.1} parent=11 // pred_region
          %s435 = ssub.s32 16, 16
          %436 = vsyncadd [#allocation15], %s435
          %s438 = sshll.u32 [#allocation16], 4
          %s439 = int_to_ptr.vmem [resolvable:$true] %s438
          %441 = dma.hbm_to_vmem [thread:$0]  %s8, 16, %s439, [#allocation15]
        $region44: #{tpu_custom_call.1} parent=11 // pred_fallthru
          _
        // Predicated region
        $region45: #{tpu_custom_call.1} parent=11 // pred_check
          %p442 = pneg %p246
        $region46: #{tpu_custom_call.1} parent=11 // pred_check_branch
          %444 = sbr.rel (%p442) target = $region48
        $region47: #{tpu_custom_call.1} parent=11 // pred_region
          %s446 = ssub.s32 2048, 2048
          %447 = vsyncadd [#allocation18], %s446
          %s448 = sshll.u32 [#allocation17], 4
          %s449 = int_to_ptr.vmem [resolvable:$true] %s448
          %454 = dma.hbm_to_vmem [thread:$0]  %s9, 2048, %s449, [#allocation18], 128, 128, 8
        $region48: #{tpu_custom_call.1} parent=11 // pred_fallthru
          _
        // Predicated region
        $region49: #{tpu_custom_call.1} parent=11 // pred_check
          %p455 = pneg %p267
        $region50: #{tpu_custom_call.1} parent=11 // pred_check_branch
          %457 = sbr.rel (%p455) target = $region52
        $region51: #{tpu_custom_call.1} parent=11 // pred_region
          %s459 = ssub.s32 32, 32
          %460 = vsyncadd [#allocation18], %s459
          %s462 = sshll.u32 [#allocation19], 4
          %s463 = int_to_ptr.vmem [resolvable:$true] %s462
          %465 = dma.hbm_to_vmem [thread:$0]  %s10, 32, %s463, [#allocation18]
        $region52: #{tpu_custom_call.1} parent=11 // pred_fallthru
          _
        // Predicated region
        $region53: #{tpu_custom_call.1} parent=11 // pred_check
          %p466 = pneg %p288
        $region54: #{tpu_custom_call.1} parent=11 // pred_check_branch
          %468 = sbr.rel (%p466) target = $region56
        $region55: #{tpu_custom_call.1} parent=11 // pred_region
          %s470 = ssub.s32 2048, 2048
          %471 = vsyncadd [#allocation21], %s470
          %s472 = sshll.u32 [#allocation20], 4
          %s473 = int_to_ptr.vmem [resolvable:$true] %s472
          %478 = dma.hbm_to_vmem [thread:$0]  %s11, 2048, %s473, [#allocation21], 64, 64, 4
        $region56: #{tpu_custom_call.1} parent=11 // pred_fallthru
          _
        // Predicated region
        $region57: #{tpu_custom_call.1} parent=11 // pred_check
          %p479 = pneg %p309
        $region58: #{tpu_custom_call.1} parent=11 // pred_check_branch
          %481 = sbr.rel (%p479) target = $region60
        $region59: #{tpu_custom_call.1} parent=11 // pred_region
          %s483 = ssub.s32 16, 16
          %484 = vsyncadd [#allocation21], %s483
          %s486 = sshll.u32 [#allocation22], 4
          %s487 = int_to_ptr.vmem [resolvable:$true] %s486
          %489 = dma.hbm_to_vmem [thread:$0]  %s12, 16, %s487, [#allocation21]
        $region60: #{tpu_custom_call.1} parent=11 // pred_fallthru
          _
      $region12: #{tpu_custom_call.1} parent=5 // pred_fallthru
        _
      %p490 = scmp.lt.s32.totalorder %s31, 2
      // Predicated region
      $region61: #{tpu_custom_call.1} parent=5 // pred_check
        %p491 = pneg %p490
      $region62: #{tpu_custom_call.1} parent=5 // pred_check_branch
        %493 = sbr.rel (%p491) target = $region64
      $region63: #{tpu_custom_call.1} parent=5 // pred_region
        // Predicated region
        $region65: #{tpu_custom_call.1} parent=63 // pred_check
          %p494 = pneg %p51
        $region66: #{tpu_custom_call.1} parent=63 // pred_check_branch
          %496 = sbr.rel (%p494) target = $region68
        $region67: #{tpu_custom_call.1} parent=63 // pred_region
          %s497 = sand.u32 %s41, 1
          %s498 = scalar_lea.sflag [#allocation3], %s497
          %s499 = sand.u32 %s41, 1
          %s500 = smul.addr %s499, 128
          %s501 = scalar_lea.vmem [#allocation2], %s500
          %s503 = ssub.s32 2048, 2048
          %504 = vsyncadd %s498, %s503
          %s505 = smul.addr %s31, 16
          %s506 = smul.addr %s505, 128
          %s507 = scalar_lea.hbm %s0, %s506
          %s508 = sshll.u32 %s501, 4
          %s509 = int_to_ptr.vmem [resolvable:$true] %s508
          %514 = dma.hbm_to_vmem [thread:$0]  %s507, 2048, %s509, %s498, 128, 128, 8
        $region68: #{tpu_custom_call.1} parent=63 // pred_fallthru
          _
      $region64: #{tpu_custom_call.1} parent=5 // pred_fallthru
        _
      %p515 = scmp.le.s32.totalorder 1, %s31
      %p516 = scmp.lt.s32.totalorder %s31, 3
      %p517 = pnand %p515, %p516
      %p518 = pneg %p517
      // Predicated region
      $region69: #{tpu_custom_call.1} parent=5 // pred_check
        _
      $region70: #{tpu_custom_call.1} parent=5 // pred_check_branch
        %520 = sbr.rel (%p517) target = $region72
      $region71: #{tpu_custom_call.1} parent=5 // pred_region
        %s521 = ssub.s32 %s31, 1
        %s522 = sand.u32 %s44, 1
        %s523 = scalar_lea.sflag [#allocation3], %s522
        %s524 = sand.u32 %s44, 1
        %s525 = smul.addr %s524, 128
        %s526 = scalar_lea.vmem [#allocation2], %s525
        // Predicated region
        $region73: #{tpu_custom_call.1} parent=71 // pred_check
          %p527 = pneg %p57
        $region74: #{tpu_custom_call.1} parent=71 // pred_check_branch
          %529 = sbr.rel (%p527) target = $region76
        $region75: #{tpu_custom_call.1} parent=71 // pred_region
          %530 = dma.done %s523, 2048
        $region76: #{tpu_custom_call.1} parent=71 // pred_fallthru
          _
        // Predicated region
        $region77: #{tpu_custom_call.1} parent=71 // pred_check
          %p531 = pneg %p78
        $region78: #{tpu_custom_call.1} parent=71 // pred_check_branch
          %533 = sbr.rel (%p531) target = $region80
        $region79: #{tpu_custom_call.1} parent=71 // pred_region
          %534 = dma.done [#allocation6], 16
        $region80: #{tpu_custom_call.1} parent=71 // pred_fallthru
          _
        // Predicated region
        $region81: #{tpu_custom_call.1} parent=71 // pred_check
          %p535 = pneg %p99
        $region82: #{tpu_custom_call.1} parent=71 // pred_check_branch
          %537 = sbr.rel (%p535) target = $region84
        $region83: #{tpu_custom_call.1} parent=71 // pred_region
          %538 = dma.done [#allocation6], 16
        $region84: #{tpu_custom_call.1} parent=71 // pred_fallthru
          _
        // Predicated region
        $region85: #{tpu_custom_call.1} parent=71 // pred_check
          %p539 = pneg %p120
        $region86: #{tpu_custom_call.1} parent=71 // pred_check_branch
          %541 = sbr.rel (%p539) target = $region88
        $region87: #{tpu_custom_call.1} parent=71 // pred_region
          %542 = dma.done [#allocation9], 3072
        $region88: #{tpu_custom_call.1} parent=71 // pred_fallthru
          _
        // Predicated region
        $region89: #{tpu_custom_call.1} parent=71 // pred_check
          %p543 = pneg %p141
        $region90: #{tpu_custom_call.1} parent=71 // pred_check_branch
          %545 = sbr.rel (%p543) target = $region92
        $region91: #{tpu_custom_call.1} parent=71 // pred_region
          %546 = dma.done [#allocation9], 48
        $region92: #{tpu_custom_call.1} parent=71 // pred_fallthru
          _
        // Predicated region
        $region93: #{tpu_custom_call.1} parent=71 // pred_check
          %p547 = pneg %p162
        $region94: #{tpu_custom_call.1} parent=71 // pred_check_branch
          %549 = sbr.rel (%p547) target = $region96
        $region95: #{tpu_custom_call.1} parent=71 // pred_region
          %550 = dma.done [#allocation12], 1024
        $region96: #{tpu_custom_call.1} parent=71 // pred_fallthru
          _
        // Predicated region
        $region97: #{tpu_custom_call.1} parent=71 // pred_check
          %p551 = pneg %p183
        $region98: #{tpu_custom_call.1} parent=71 // pred_check_branch
          %553 = sbr.rel (%p551) target = $region100
        $region99: #{tpu_custom_call.1} parent=71 // pred_region
          %554 = dma.done [#allocation12], 16
        $region100: #{tpu_custom_call.1} parent=71 // pred_fallthru
          _
        // Predicated region
        $region101: #{tpu_custom_call.1} parent=71 // pred_check
          %p555 = pneg %p204
        $region102: #{tpu_custom_call.1} parent=71 // pred_check_branch
          %557 = sbr.rel (%p555) target = $region104
        $region103: #{tpu_custom_call.1} parent=71 // pred_region
          %558 = dma.done [#allocation15], 16
        $region104: #{tpu_custom_call.1} parent=71 // pred_fallthru
          _
        // Predicated region
        $region105: #{tpu_custom_call.1} parent=71 // pred_check
          %p559 = pneg %p225
        $region106: #{tpu_custom_call.1} parent=71 // pred_check_branch
          %561 = sbr.rel (%p559) target = $region108
        $region107: #{tpu_custom_call.1} parent=71 // pred_region
          %562 = dma.done [#allocation15], 16
        $region108: #{tpu_custom_call.1} parent=71 // pred_fallthru
          _
        // Predicated region
        $region109: #{tpu_custom_call.1} parent=71 // pred_check
          %p563 = pneg %p246
        $region110: #{tpu_custom_call.1} parent=71 // pred_check_branch
          %565 = sbr.rel (%p563) target = $region112
        $region111: #{tpu_custom_call.1} parent=71 // pred_region
          %566 = dma.done [#allocation18], 2048
        $region112: #{tpu_custom_call.1} parent=71 // pred_fallthru
          _
        // Predicated region
        $region113: #{tpu_custom_call.1} parent=71 // pred_check
          %p567 = pneg %p267
        $region114: #{tpu_custom_call.1} parent=71 // pred_check_branch
          %569 = sbr.rel (%p567) target = $region116
        $region115: #{tpu_custom_call.1} parent=71 // pred_region
          %570 = dma.done [#allocation18], 32
        $region116: #{tpu_custom_call.1} parent=71 // pred_fallthru
          _
        // Predicated region
        $region117: #{tpu_custom_call.1} parent=71 // pred_check
          %p571 = pneg %p288
        $region118: #{tpu_custom_call.1} parent=71 // pred_check_branch
          %573 = sbr.rel (%p571) target = $region120
        $region119: #{tpu_custom_call.1} parent=71 // pred_region
          %574 = dma.done [#allocation21], 2048
        $region120: #{tpu_custom_call.1} parent=71 // pred_fallthru
          _
        // Predicated region
        $region121: #{tpu_custom_call.1} parent=71 // pred_check
          %p575 = pneg %p309
        $region122: #{tpu_custom_call.1} parent=71 // pred_check_branch
          %577 = sbr.rel (%p575) target = $region124
        $region123: #{tpu_custom_call.1} parent=71 // pred_region
          %578 = dma.done [#allocation21], 16
        $region124: #{tpu_custom_call.1} parent=71 // pred_fallthru
          _
        %s579 = sand.u32 %s44, 1
        %s580 = scalar_lea.sflag [#allocation3], %s579
        %s581 = sand.u32 %s44, 1
        %s582 = smul.addr %s581, 128
        %s583 = scalar_lea.vmem [#allocation2], %s582
        %p584 = pneg %p57
        %p585 = pneg %p54
        %p586 = pneg %p78
        %p587 = pneg %p75
        %p588 = pneg %p99
        %p589 = pneg %p96
        %p590 = pneg %p120
        %p591 = pneg %p117
        %p592 = pneg %p141
        %p593 = pneg %p138
        %p594 = pneg %p162
        %p595 = pneg %p159
        %p596 = pneg %p183
        %p597 = pneg %p180
        %p598 = pneg %p204
        %p599 = pneg %p201
        %p600 = pneg %p225
        %p601 = pneg %p222
        %p602 = pneg %p246
        %p603 = pneg %p243
        %p604 = pneg %p267
        %p605 = pneg %p264
        %p606 = pneg %p288
        %p607 = pneg %p285
        %p608 = pneg %p309
        %p609 = pneg %p306
        %p610 = pneg %p335
        %p611 = pneg %p332
        %s612 = sand.u32 %s322, 1
        %s613 = scalar_lea.sflag [#allocation4], %s612
        %s614 = sand.u32 %s322, 1
        %s615 = smul.addr %s614, 128
        %s616 = scalar_lea.vmem [#allocation23], %s615
        %v618 = vld [vmem:[%s526] sm:$0xff]
        %v619 = vld [vmem:[%s526 + $0x8] sm:$0xff]
        %v620 = vld [vmem:[%s526 + $0x10] sm:$0xff]
        %v621 = vld [vmem:[%s526 + $0x18] sm:$0xff]
        %v622 = vld [vmem:[%s526 + $0x20] sm:$0xff]
        %v623 = vld [vmem:[%s526 + $0x28] sm:$0xff]
        %v624 = vld [vmem:[%s526 + $0x30] sm:$0xff]
        %v625 = vld [vmem:[%s526 + $0x38] sm:$0xff]
        %v626 = vld [vmem:[%s526 + $0x40] sm:$0xff]
        %v627 = vld [vmem:[%s526 + $0x48] sm:$0xff]
        %v628 = vld [vmem:[%s526 + $0x50] sm:$0xff]
        %v629 = vld [vmem:[%s526 + $0x58] sm:$0xff]
        %v630 = vld [vmem:[%s526 + $0x60] sm:$0xff]
        %v631 = vld [vmem:[%s526 + $0x68] sm:$0xff]
        %v632 = vld [vmem:[%s526 + $0x70] sm:$0xff]
        %v633 = vld [vmem:[%s526 + $0x78] sm:$0xff]
        %v634 = vld [vmem:[#allocation5] sm:$0x1]
        %v635 = vld [vmem:[#allocation7] sm:$0x1]
        %636 = vadd.xlane.f32.xlu0 %v618
        %v637 = vpop.xlane.xlu0 %636
        %638 = vadd.xlane.f32.xlu0 %v619
        %v639 = vpop.xlane.xlu0 %638
        %640 = vadd.xlane.f32.xlu0 %v620
        %v641 = vpop.xlane.xlu0 %640
        %642 = vadd.xlane.f32.xlu0 %v621
        %v643 = vpop.xlane.xlu0 %642
        %644 = vadd.xlane.f32.xlu0 %v622
        %v645 = vpop.xlane.xlu0 %644
        %646 = vadd.xlane.f32.xlu0 %v623
        %v647 = vpop.xlane.xlu0 %646
        %648 = vadd.xlane.f32.xlu0 %v624
        %v649 = vpop.xlane.xlu0 %648
        %650 = vadd.xlane.f32.xlu0 %v625
        %v651 = vpop.xlane.xlu0 %650
        %652 = vadd.xlane.f32.xlu0 %v626
        %v653 = vpop.xlane.xlu0 %652
        %654 = vadd.xlane.f32.xlu0 %v627
        %v655 = vpop.xlane.xlu0 %654
        %656 = vadd.xlane.f32.xlu0 %v628
        %v657 = vpop.xlane.xlu0 %656
        %658 = vadd.xlane.f32.xlu0 %v629
        %v659 = vpop.xlane.xlu0 %658
        %660 = vadd.xlane.f32.xlu0 %v630
        %v661 = vpop.xlane.xlu0 %660
        %662 = vadd.xlane.f32.xlu0 %v631
        %v663 = vpop.xlane.xlu0 %662
        %664 = vadd.xlane.f32.xlu0 %v632
        %v665 = vpop.xlane.xlu0 %664
        %666 = vadd.xlane.f32.xlu0 %v633
        %v667 = vpop.xlane.xlu0 %666
        %v668 = vrcp.pop 128.0
        %v669 = vmul.f32 %v637, %v668
        %v670 = vmul.f32 %v639, %v668
        %v671 = vmul.f32 %v641, %v668
        %v672 = vmul.f32 %v643, %v668
        %v673 = vmul.f32 %v645, %v668
        %v674 = vmul.f32 %v647, %v668
        %v675 = vmul.f32 %v649, %v668
        %v676 = vmul.f32 %v651, %v668
        %v677 = vmul.f32 %v653, %v668
        %v678 = vmul.f32 %v655, %v668
        %v679 = vmul.f32 %v657, %v668
        %v680 = vmul.f32 %v659, %v668
        %v681 = vmul.f32 %v661, %v668
        %v682 = vmul.f32 %v663, %v668
        %v683 = vmul.f32 %v665, %v668
        %v684 = vmul.f32 %v667, %v668
        %v685 = vsub.f32 %v618, %v669
        %v686 = vsub.f32 %v619, %v670
        %v687 = vsub.f32 %v620, %v671
        %v688 = vsub.f32 %v621, %v672
        %v689 = vsub.f32 %v622, %v673
        %v690 = vsub.f32 %v623, %v674
        %v691 = vsub.f32 %v624, %v675
        %v692 = vsub.f32 %v625, %v676
        %v693 = vsub.f32 %v626, %v677
        %v694 = vsub.f32 %v627, %v678
        %v695 = vsub.f32 %v628, %v679
        %v696 = vsub.f32 %v629, %v680
        %v697 = vsub.f32 %v630, %v681
        %v698 = vsub.f32 %v631, %v682
        %v699 = vsub.f32 %v632, %v683
        %v700 = vsub.f32 %v633, %v684
        %v701 = vmul.f32 %v685, %v685
        %v702 = vmul.f32 %v686, %v686
        %v703 = vmul.f32 %v687, %v687
        %v704 = vmul.f32 %v688, %v688
        %v705 = vmul.f32 %v689, %v689
        %v706 = vmul.f32 %v690, %v690
        %v707 = vmul.f32 %v691, %v691
        %v708 = vmul.f32 %v692, %v692
        %v709 = vmul.f32 %v693, %v693
        %v710 = vmul.f32 %v694, %v694
        %v711 = vmul.f32 %v695, %v695
        %v712 = vmul.f32 %v696, %v696
        %v713 = vmul.f32 %v697, %v697
        %v714 = vmul.f32 %v698, %v698
        %v715 = vmul.f32 %v699, %v699
        %v716 = vmul.f32 %v700, %v700
        %717 = vadd.xlane.f32.xlu0 %v701
        %v718 = vpop.xlane.xlu0 %717
        %719 = vadd.xlane.f32.xlu0 %v702
        %v720 = vpop.xlane.xlu0 %719
        %721 = vadd.xlane.f32.xlu0 %v703
        %v722 = vpop.xlane.xlu0 %721
        %723 = vadd.xlane.f32.xlu0 %v704
        %v724 = vpop.xlane.xlu0 %723
        %725 = vadd.xlane.f32.xlu0 %v705
        %v726 = vpop.xlane.xlu0 %725
        %727 = vadd.xlane.f32.xlu0 %v706
        %v728 = vpop.xlane.xlu0 %727
        %729 = vadd.xlane.f32.xlu0 %v707
        %v730 = vpop.xlane.xlu0 %729
        %731 = vadd.xlane.f32.xlu0 %v708
        %v732 = vpop.xlane.xlu0 %731
        %733 = vadd.xlane.f32.xlu0 %v709
        %v734 = vpop.xlane.xlu0 %733
        %735 = vadd.xlane.f32.xlu0 %v710
        %v736 = vpop.xlane.xlu0 %735
        %737 = vadd.xlane.f32.xlu0 %v711
        %v738 = vpop.xlane.xlu0 %737
        %739 = vadd.xlane.f32.xlu0 %v712
        %v740 = vpop.xlane.xlu0 %739
        %741 = vadd.xlane.f32.xlu0 %v713
        %v742 = vpop.xlane.xlu0 %741
        %743 = vadd.xlane.f32.xlu0 %v714
        %v744 = vpop.xlane.xlu0 %743
        %745 = vadd.xlane.f32.xlu0 %v715
        %v746 = vpop.xlane.xlu0 %745
        %747 = vadd.xlane.f32.xlu0 %v716
        %v748 = vpop.xlane.xlu0 %747
        %v749 = vmul.f32 %v718, %v668
        %v750 = vmul.f32 %v720, %v668
        %v751 = vmul.f32 %v722, %v668
        %v752 = vmul.f32 %v724, %v668
        %v753 = vmul.f32 %v726, %v668
        %v754 = vmul.f32 %v728, %v668
        %v755 = vmul.f32 %v730, %v668
        %v756 = vmul.f32 %v732, %v668
        %v757 = vmul.f32 %v734, %v668
        %v758 = vmul.f32 %v736, %v668
        %v759 = vmul.f32 %v738, %v668
        %v760 = vmul.f32 %v740, %v668
        %v761 = vmul.f32 %v742, %v668
        %v762 = vmul.f32 %v744, %v668
        %v763 = vmul.f32 %v746, %v668
        %v764 = vmul.f32 %v748, %v668
        %v765 = vadd.f32 %v749, 1e-06
        %v766 = vadd.f32 %v750, 1e-06
        %v767 = vadd.f32 %v751, 1e-06
        %v768 = vadd.f32 %v752, 1e-06
        %v769 = vadd.f32 %v753, 1e-06
        %v770 = vadd.f32 %v754, 1e-06
        %v771 = vadd.f32 %v755, 1e-06
        %v772 = vadd.f32 %v756, 1e-06
        %v773 = vadd.f32 %v757, 1e-06
        %v774 = vadd.f32 %v758, 1e-06
        %v775 = vadd.f32 %v759, 1e-06
        %v776 = vadd.f32 %v760, 1e-06
        %v777 = vadd.f32 %v761, 1e-06
        %v778 = vadd.f32 %v762, 1e-06
        %v779 = vadd.f32 %v763, 1e-06
        %v780 = vadd.f32 %v764, 1e-06
        %v781 = vrsqrt.pop %v765
        %v782 = vrsqrt.pop %v766
        %v783 = vrsqrt.pop %v767
        %v784 = vrsqrt.pop %v768
        %v785 = vrsqrt.pop %v769
        %v786 = vrsqrt.pop %v770
        %v787 = vrsqrt.pop %v771
        %v788 = vrsqrt.pop %v772
        %v789 = vrsqrt.pop %v773
        %v790 = vrsqrt.pop %v774
        %v791 = vrsqrt.pop %v775
        %v792 = vrsqrt.pop %v776
        %v793 = vrsqrt.pop %v777
        %v794 = vrsqrt.pop %v778
        %v795 = vrsqrt.pop %v779
        %v796 = vrsqrt.pop %v780
        %v797 = vmul.f32 %v685, %v781
        %v798 = vmul.f32 %v686, %v782
        %v799 = vmul.f32 %v687, %v783
        %v800 = vmul.f32 %v688, %v784
        %v801 = vmul.f32 %v689, %v785
        %v802 = vmul.f32 %v690, %v786
        %v803 = vmul.f32 %v691, %v787
        %v804 = vmul.f32 %v692, %v788
        %v805 = vmul.f32 %v693, %v789
        %v806 = vmul.f32 %v694, %v790
        %v807 = vmul.f32 %v695, %v791
        %v808 = vmul.f32 %v696, %v792
        %v809 = vmul.f32 %v697, %v793
        %v810 = vmul.f32 %v698, %v794
        %v811 = vmul.f32 %v699, %v795
        %v812 = vmul.f32 %v700, %v796
        %v814 = vlaneseq
        %v815 = vshrl.u32 %v814, 7
        %v816 = vsub.s32 0, %v815
        %v817 = vrot.slane %v634, %v816
        %v819 = vmul.f32 %v797, %v817
        %v820 = vmul.f32 %v798, %v817
        %v821 = vmul.f32 %v799, %v817
        %v822 = vmul.f32 %v800, %v817
        %v823 = vmul.f32 %v801, %v817
        %v824 = vmul.f32 %v802, %v817
        %v825 = vmul.f32 %v803, %v817
        %v826 = vmul.f32 %v804, %v817
        %v827 = vmul.f32 %v805, %v817
        %v828 = vmul.f32 %v806, %v817
        %v829 = vmul.f32 %v807, %v817
        %v830 = vmul.f32 %v808, %v817
        %v831 = vmul.f32 %v809, %v817
        %v832 = vmul.f32 %v810, %v817
        %v833 = vmul.f32 %v811, %v817
        %v834 = vmul.f32 %v812, %v817
        %v836 = vlaneseq
        %v837 = vshrl.u32 %v836, 7
        %v838 = vsub.s32 0, %v837
        %v839 = vrot.slane %v635, %v838
        %v841 = vadd.f32 %v819, %v839
        %v842 = vadd.f32 %v820, %v839
        %v843 = vadd.f32 %v821, %v839
        %v844 = vadd.f32 %v822, %v839
        %v845 = vadd.f32 %v823, %v839
        %v846 = vadd.f32 %v824, %v839
        %v847 = vadd.f32 %v825, %v839
        %v848 = vadd.f32 %v826, %v839
        %v849 = vadd.f32 %v827, %v839
        %v850 = vadd.f32 %v828, %v839
        %v851 = vadd.f32 %v829, %v839
        %v852 = vadd.f32 %v830, %v839
        %v853 = vadd.f32 %v831, %v839
        %v854 = vadd.f32 %v832, %v839
        %v855 = vadd.f32 %v833, %v839
        %v856 = vadd.f32 %v834, %v839
        %v857 = vpack.c.bf16 %v842, %v841
        %v858 = vpack.c.bf16 %v844, %v843
        %v859 = vpack.c.bf16 %v846, %v845
        %v860 = vpack.c.bf16 %v848, %v847
        %v861 = vpack.c.bf16 %v850, %v849
        %v862 = vpack.c.bf16 %v852, %v851
        %v863 = vpack.c.bf16 %v854, %v853
        %v864 = vpack.c.bf16 %v856, %v855
        %v865 = vld [vmem:[#allocation8] sm:$0xff]
        %v866 = vld [vmem:[#allocation8 + $0x8] sm:$0xf]
        %v867 = vld [vmem:[#allocation8 + $0xc] sm:$0xff]
        %v868 = vld [vmem:[#allocation8 + $0x14] sm:$0xf]
        %v869 = vld [vmem:[#allocation8 + $0x18] sm:$0xff]
        %v870 = vld [vmem:[#allocation8 + $0x20] sm:$0xf]
        %v871 = vld [vmem:[#allocation8 + $0x24] sm:$0xff]
        %v872 = vld [vmem:[#allocation8 + $0x2c] sm:$0xf]
        %v873 = vld [vmem:[#allocation8 + $0x30] sm:$0xff]
        %v874 = vld [vmem:[#allocation8 + $0x38] sm:$0xf]
        %v875 = vld [vmem:[#allocation8 + $0x3c] sm:$0xff]
        %v876 = vld [vmem:[#allocation8 + $0x44] sm:$0xf]
        %v877 = vld [vmem:[#allocation8 + $0x48] sm:$0xff]
        %v878 = vld [vmem:[#allocation8 + $0x50] sm:$0xf]
        %v879 = vld [vmem:[#allocation8 + $0x54] sm:$0xff]
        %v880 = vld [vmem:[#allocation8 + $0x5c] sm:$0xf]
        %v881 = vld [vmem:[#allocation8 + $0x60] sm:$0xff]
        %v882 = vld [vmem:[#allocation8 + $0x68] sm:$0xf]
        %v883 = vld [vmem:[#allocation8 + $0x6c] sm:$0xff]
        %v884 = vld [vmem:[#allocation8 + $0x74] sm:$0xf]
        %v885 = vld [vmem:[#allocation8 + $0x78] sm:$0xff]
        %v886 = vld [vmem:[#allocation8 + $0x80] sm:$0xf]
        %v887 = vld [vmem:[#allocation8 + $0x84] sm:$0xff]
        %v888 = vld [vmem:[#allocation8 + $0x8c] sm:$0xf]
        %v889 = vld [vmem:[#allocation8 + $0x90] sm:$0xff]
        %v890 = vld [vmem:[#allocation8 + $0x98] sm:$0xf]
        %v891 = vld [vmem:[#allocation8 + $0x9c] sm:$0xff]
        %v892 = vld [vmem:[#allocation8 + $0xa4] sm:$0xf]
        %v893 = vld [vmem:[#allocation8 + $0xa8] sm:$0xff]
        %v894 = vld [vmem:[#allocation8 + $0xb0] sm:$0xf]
        %v895 = vld [vmem:[#allocation8 + $0xb4] sm:$0xff]
        %v896 = vld [vmem:[#allocation8 + $0xbc] sm:$0xf]
        %v897 = vld [vmem:[#allocation10] sm:$0x7]
        %v899 = vlaneseq
        %v900 = vshrl.u32 %v899, 7
        %v901 = vsub.s32 0, %v900
        %v902 = vrot.slane %v897, %v901
        %v903 = vlaneseq
        %v904 = vshrl.u32 %v903, 7
        %v905 = vsub.s32 1, %v904
        %v906 = vrot.slane %v897, %v905
        %v907 = vlaneseq
        %v908 = vshrl.u32 %v907, 7
        %v909 = vsub.s32 2, %v908
        %v910 = vrot.slane %v897, %v909
        %v946 = vunpack.c.l.b16 %v865
        %v947 = vunpack.c.h.b16 %v865
        %v948 = vunpack.c.l.b16 %v866
        %v949 = vunpack.c.l.b16 %v867
        %v950 = vunpack.c.h.b16 %v867
        %v951 = vunpack.c.l.b16 %v868
        %v952 = vunpack.c.l.b16 %v869
        %v953 = vunpack.c.h.b16 %v869
        %v954 = vunpack.c.l.b16 %v870
        %v955 = vunpack.c.l.b16 %v871
        %v956 = vunpack.c.h.b16 %v871
        %v957 = vunpack.c.l.b16 %v872
        %v958 = vunpack.c.l.b16 %v873
        %v959 = vunpack.c.h.b16 %v873
        %v960 = vunpack.c.l.b16 %v874
        %v961 = vunpack.c.l.b16 %v875
        %v962 = vunpack.c.h.b16 %v875
        %v963 = vunpack.c.l.b16 %v876
        %v964 = vunpack.c.l.b16 %v877
        %v965 = vunpack.c.h.b16 %v877
        %v966 = vunpack.c.l.b16 %v878
        %v967 = vunpack.c.l.b16 %v879
        %v968 = vunpack.c.h.b16 %v879
        %v969 = vunpack.c.l.b16 %v880
        %v970 = vunpack.c.l.b16 %v881
        %v971 = vunpack.c.h.b16 %v881
        %v972 = vunpack.c.l.b16 %v882
        %v973 = vunpack.c.l.b16 %v883
        %v974 = vunpack.c.h.b16 %v883
        %v975 = vunpack.c.l.b16 %v884
        %v976 = vunpack.c.l.b16 %v885
        %v977 = vunpack.c.h.b16 %v885
        %v978 = vunpack.c.l.b16 %v886
        %v979 = vunpack.c.l.b16 %v887
        %v980 = vunpack.c.h.b16 %v887
        %v981 = vunpack.c.l.b16 %v888
        %v982 = vunpack.c.l.b16 %v889
        %v983 = vunpack.c.h.b16 %v889
        %v984 = vunpack.c.l.b16 %v890
        %v985 = vunpack.c.l.b16 %v891
        %v986 = vunpack.c.h.b16 %v891
        %v987 = vunpack.c.l.b16 %v892
        %v988 = vunpack.c.l.b16 %v893
        %v989 = vunpack.c.h.b16 %v893
        %v990 = vunpack.c.l.b16 %v894
        %v991 = vunpack.c.l.b16 %v895
        %v992 = vunpack.c.h.b16 %v895
        %v993 = vunpack.c.l.b16 %v896
        %v994 = vpack.c.b16 %v949, %v946
        %v995 = vpack.c.b16 %v950, %v947
        %v996 = vpack.c.b16 %v951, %v948
        %v997 = vpack.c.b16 %v955, %v952
        %v998 = vpack.c.b16 %v956, %v953
        %v999 = vpack.c.b16 %v957, %v954
        %v1000 = vpack.c.b16 %v961, %v958
        %v1001 = vpack.c.b16 %v962, %v959
        %v1002 = vpack.c.b16 %v963, %v960
        %v1003 = vpack.c.b16 %v967, %v964
        %v1004 = vpack.c.b16 %v968, %v965
        %v1005 = vpack.c.b16 %v969, %v966
        %v1006 = vpack.c.b16 %v973, %v970
        %v1007 = vpack.c.b16 %v974, %v971
        %v1008 = vpack.c.b16 %v975, %v972
        %v1009 = vpack.c.b16 %v979, %v976
        %v1010 = vpack.c.b16 %v980, %v977
        %v1011 = vpack.c.b16 %v981, %v978
        %v1012 = vpack.c.b16 %v985, %v982
        %v1013 = vpack.c.b16 %v986, %v983
        %v1014 = vpack.c.b16 %v987, %v984
        %v1015 = vpack.c.b16 %v991, %v988
        %v1016 = vpack.c.b16 %v992, %v989
        %v1017 = vpack.c.b16 %v993, %v990
        %1042 = vmatprep.subr.bf16.mxu0 %v995
        %1043 = vmatpush1.bf16.msra.mxu0 %v994
        %1044 = vmatprep.subr.bf16.mxu0 %v998
        %1045 = vmatpush1.bf16.msra.mxu0 %v997
        %1046 = vmatprep.subr.bf16.mxu0 %v1001
        %1047 = vmatpush1.bf16.msra.mxu0 %v1000
        %1048 = vmatprep.subr.bf16.mxu0 %v1004
        %1049 = vmatpush1.bf16.msra.mxu0 %v1003
        %1050 = vmatprep.subr.bf16.mxu0 %v1007
        %1051 = vmatpush1.bf16.msra.mxu0 %v1006
        %1052 = vmatprep.subr.bf16.mxu0 %v1010
        %1053 = vmatpush1.bf16.msra.mxu0 %v1009
        %1054 = vmatprep.subr.bf16.mxu0 %v1013
        %1055 = vmatpush1.bf16.msra.mxu0 %v1012
        %1056 = vmatprep.subr.bf16.mxu0 %v1016
        %1057 = vmatpush1.bf16.msra.mxu0 %v1015
        %1058 = vmatprep.subr.bf16.mxu0 0
        %1059 = vmatpush1.bf16.msra.mxu0 0
        %1060 = vmatprep.subr.bf16.mxu0 0
        %1061 = vmatpush1.bf16.msra.mxu0 0
        %1062 = vmatprep.subr.bf16.mxu0 0
        %1063 = vmatpush1.bf16.msra.mxu0 0
        %1064 = vmatprep.subr.bf16.mxu0 0
        %1065 = vmatpush1.bf16.msra.mxu0 0
        %1066 = vmatprep.subr.bf16.mxu0 0
        %1067 = vmatpush1.bf16.msra.mxu0 0
        %1068 = vmatprep.subr.bf16.mxu0 0
        %1069 = vmatpush1.bf16.msra.mxu0 0
        %1070 = vmatprep.subr.bf16.mxu0 0
        %1071 = vmatpush1.bf16.msra.mxu0 0
        %1072 = vmatprep.subr.bf16.mxu0 0
        %1073 = vmatpush1.bf16.msra.mxu0 0
        %1074 = vmatprep.mubr.bf16.mxu0 0
        %1075 = vmatmul.mubr.bf16.gmra.mrb[0].mxu0 %v857
        %v1076 = vpop.f32.mrb[0].mxu0
        %v1077 = vadd.f32 %v902, %v1076
        %v1078 = vpop.f32.mrb[0].mxu0
        %v1079 = vadd.f32 %v906, %v1078
        %v1080 = vpop.f32.mrb[0].mxu0
        %v1081 = vadd.f32 %v902, %v1080
        %v1082 = vpop.f32.mrb[0].mxu0
        %v1083 = vadd.f32 %v906, %v1082
        %1084 = vmatprep.mubr.bf16.mxu0 0
        %1085 = vmatmul.mubr.bf16.gmra.mrb[0].mxu0 %v858
        %v1086 = vpop.f32.mrb[0].mxu0
        %v1087 = vadd.f32 %v902, %v1086
        %v1088 = vpop.f32.mrb[0].mxu0
        %v1089 = vadd.f32 %v906, %v1088
        %v1090 = vpop.f32.mrb[0].mxu0
        %v1091 = vadd.f32 %v902, %v1090
        %v1092 = vpop.f32.mrb[0].mxu0
        %v1093 = vadd.f32 %v906, %v1092
        %1094 = vmatprep.mubr.bf16.mxu0 0
        %1095 = vmatmul.mubr.bf16.gmra.mrb[0].mxu0 %v859
        %v1096 = vpop.f32.mrb[0].mxu0
        %v1097 = vadd.f32 %v902, %v1096
        %v1098 = vpop.f32.mrb[0].mxu0
        %v1099 = vadd.f32 %v906, %v1098
        %v1100 = vpop.f32.mrb[0].mxu0
        %v1101 = vadd.f32 %v902, %v1100
        %v1102 = vpop.f32.mrb[0].mxu0
        %v1103 = vadd.f32 %v906, %v1102
        %1104 = vmatprep.mubr.bf16.mxu0 0
        %1105 = vmatmul.mubr.bf16.gmra.mrb[0].mxu0 %v860
        %v1106 = vpop.f32.mrb[0].mxu0
        %v1107 = vadd.f32 %v902, %v1106
        %v1108 = vpop.f32.mrb[0].mxu0
        %v1109 = vadd.f32 %v906, %v1108
        %v1110 = vpop.f32.mrb[0].mxu0
        %v1111 = vadd.f32 %v902, %v1110
        %v1112 = vpop.f32.mrb[0].mxu0
        %v1113 = vadd.f32 %v906, %v1112
        %1114 = vmatprep.mubr.bf16.mxu0 0
        %1115 = vmatmul.mubr.bf16.gmra.mrb[0].mxu0 %v861
        %v1116 = vpop.f32.mrb[0].mxu0
        %v1117 = vadd.f32 %v902, %v1116
        %v1118 = vpop.f32.mrb[0].mxu0
        %v1119 = vadd.f32 %v906, %v1118
        %v1120 = vpop.f32.mrb[0].mxu0
        %v1121 = vadd.f32 %v902, %v1120
        %v1122 = vpop.f32.mrb[0].mxu0
        %v1123 = vadd.f32 %v906, %v1122
        %1124 = vmatprep.mubr.bf16.mxu0 0
        %1125 = vmatmul.mubr.bf16.gmra.mrb[0].mxu0 %v862
        %v1126 = vpop.f32.mrb[0].mxu0
        %v1127 = vadd.f32 %v902, %v1126
        %v1128 = vpop.f32.mrb[0].mxu0
        %v1129 = vadd.f32 %v906, %v1128
        %v1130 = vpop.f32.mrb[0].mxu0
        %v1131 = vadd.f32 %v902, %v1130
        %v1132 = vpop.f32.mrb[0].mxu0
        %v1133 = vadd.f32 %v906, %v1132
        %1134 = vmatprep.mubr.bf16.mxu0 0
        %1135 = vmatmul.mubr.bf16.gmra.mrb[0].mxu0 %v863
        %v1136 = vpop.f32.mrb[0].mxu0
        %v1137 = vadd.f32 %v902, %v1136
        %v1138 = vpop.f32.mrb[0].mxu0
        %v1139 = vadd.f32 %v906, %v1138
        %v1140 = vpop.f32.mrb[0].mxu0
        %v1141 = vadd.f32 %v902, %v1140
        %v1142 = vpop.f32.mrb[0].mxu0
        %v1143 = vadd.f32 %v906, %v1142
        %1144 = vmatprep.mubr.bf16.mxu0 0
        %1145 = vmatmul.mubr.bf16.gmra.mrb[0].mxu0 %v864
        %v1146 = vpop.f32.mrb[0].mxu0
        %v1147 = vadd.f32 %v902, %v1146
        %v1148 = vpop.f32.mrb[0].mxu0
        %v1149 = vadd.f32 %v906, %v1148
        %v1150 = vpop.f32.mrb[0].mxu0
        %v1151 = vadd.f32 %v902, %v1150
        %v1152 = vpop.f32.mrb[0].mxu0
        %v1153 = vadd.f32 %v906, %v1152
        %1154 = vdwg.mxu0
        %1155 = vmatprep.subr.bf16.mxu0 0
        %1156 = vmatpush1.bf16.msra.mxu0 %v996
        %1157 = vmatprep.subr.bf16.mxu0 0
        %1158 = vmatpush1.bf16.msra.mxu0 %v999
        %1159 = vmatprep.subr.bf16.mxu0 0
        %1160 = vmatpush1.bf16.msra.mxu0 %v1002
        %1161 = vmatprep.subr.bf16.mxu0 0
        %1162 = vmatpush1.bf16.msra.mxu0 %v1005
        %1163 = vmatprep.subr.bf16.mxu0 0
        %1164 = vmatpush1.bf16.msra.mxu0 %v1008
        %1165 = vmatprep.subr.bf16.mxu0 0
        %1166 = vmatpush1.bf16.msra.mxu0 %v1011
        %1167 = vmatprep.subr.bf16.mxu0 0
        %1168 = vmatpush1.bf16.msra.mxu0 %v1014
        %1169 = vmatprep.subr.bf16.mxu0 0
        %1170 = vmatpush1.bf16.msra.mxu0 %v1017
        %1171 = vmatprep.subr.bf16.mxu0 0
        %1172 = vmatpush1.bf16.msra.mxu0 0
        %1173 = vmatprep.subr.bf16.mxu0 0
        %1174 = vmatpush1.bf16.msra.mxu0 0
        %1175 = vmatprep.subr.bf16.mxu0 0
        %1176 = vmatpush1.bf16.msra.mxu0 0
        %1177 = vmatprep.subr.bf16.mxu0 0
        %1178 = vmatpush1.bf16.msra.mxu0 0
        %1179 = vmatprep.subr.bf16.mxu0 0
        %1180 = vmatpush1.bf16.msra.mxu0 0
        %1181 = vmatprep.subr.bf16.mxu0 0
        %1182 = vmatpush1.bf16.msra.mxu0 0
        %1183 = vmatprep.subr.bf16.mxu0 0
        %1184 = vmatpush1.bf16.msra.mxu0 0
        %1185 = vmatprep.subr.bf16.mxu0 0
        %1186 = vmatpush1.bf16.msra.mxu0 0
        %1187 = vmatprep.mubr.bf16.mxu0 0
        %1188 = vmatmul.mubr.bf16.gmra.mrb[0].mxu0 %v857
        %v1189 = vpop.f32.mrb[0].mxu0
        %v1190 = vadd.f32 %v910, %v1189
        %v1191 = vpop.f32.mrb[0].mxu0
        %v1192 = vpop.f32.mrb[0].mxu0
        %v1193 = vadd.f32 %v910, %v1192
        %v1194 = vpop.f32.mrb[0].mxu0
        %1195 = vmatprep.mubr.bf16.mxu0 0
        %1196 = vmatmul.mubr.bf16.gmra.mrb[0].mxu0 %v858
        %v1197 = vpop.f32.mrb[0].mxu0
        %v1198 = vadd.f32 %v910, %v1197
        %v1199 = vpop.f32.mrb[0].mxu0
        %v1200 = vpop.f32.mrb[0].mxu0
        %v1201 = vadd.f32 %v910, %v1200
        %v1202 = vpop.f32.mrb[0].mxu0
        %1203 = vmatprep.mubr.bf16.mxu0 0
        %1204 = vmatmul.mubr.bf16.gmra.mrb[0].mxu0 %v859
        %v1205 = vpop.f32.mrb[0].mxu0
        %v1206 = vadd.f32 %v910, %v1205
        %v1207 = vpop.f32.mrb[0].mxu0
        %v1208 = vpop.f32.mrb[0].mxu0
        %v1209 = vadd.f32 %v910, %v1208
        %v1210 = vpop.f32.mrb[0].mxu0
        %1211 = vmatprep.mubr.bf16.mxu0 0
        %1212 = vmatmul.mubr.bf16.gmra.mrb[0].mxu0 %v860
        %v1213 = vpop.f32.mrb[0].mxu0
        %v1214 = vadd.f32 %v910, %v1213
        %v1215 = vpop.f32.mrb[0].mxu0
        %v1216 = vpop.f32.mrb[0].mxu0
        %v1217 = vadd.f32 %v910, %v1216
        %v1218 = vpop.f32.mrb[0].mxu0
        %1219 = vmatprep.mubr.bf16.mxu0 0
        %1220 = vmatmul.mubr.bf16.gmra.mrb[0].mxu0 %v861
        %v1221 = vpop.f32.mrb[0].mxu0
        %v1222 = vadd.f32 %v910, %v1221
        %v1223 = vpop.f32.mrb[0].mxu0
        %v1224 = vpop.f32.mrb[0].mxu0
        %v1225 = vadd.f32 %v910, %v1224
        %v1226 = vpop.f32.mrb[0].mxu0
        %1227 = vmatprep.mubr.bf16.mxu0 0
        %1228 = vmatmul.mubr.bf16.gmra.mrb[0].mxu0 %v862
        %v1229 = vpop.f32.mrb[0].mxu0
        %v1230 = vadd.f32 %v910, %v1229
        %v1231 = vpop.f32.mrb[0].mxu0
        %v1232 = vpop.f32.mrb[0].mxu0
        %v1233 = vadd.f32 %v910, %v1232
        %v1234 = vpop.f32.mrb[0].mxu0
        %1235 = vmatprep.mubr.bf16.mxu0 0
        %1236 = vmatmul.mubr.bf16.gmra.mrb[0].mxu0 %v863
        %v1237 = vpop.f32.mrb[0].mxu0
        %v1238 = vadd.f32 %v910, %v1237
        %v1239 = vpop.f32.mrb[0].mxu0
        %v1240 = vpop.f32.mrb[0].mxu0
        %v1241 = vadd.f32 %v910, %v1240
        %v1242 = vpop.f32.mrb[0].mxu0
        %1243 = vmatprep.mubr.bf16.mxu0 0
        %1244 = vmatmul.mubr.bf16.gmra.mrb[0].mxu0 %v864
        %v1245 = vpop.f32.mrb[0].mxu0
        %v1246 = vadd.f32 %v910, %v1245
        %v1247 = vpop.f32.mrb[0].mxu0
        %v1248 = vpop.f32.mrb[0].mxu0
        %v1249 = vadd.f32 %v910, %v1248
        %v1250 = vpop.f32.mrb[0].mxu0
        %1251 = vdwg.mxu0
        %v1252 = vld [vmem:[#allocation11] sm:$0xf]
        %v1253 = vld [vmem:[#allocation11 + $0x4] sm:$0xf]
        %v1254 = vld [vmem:[#allocation11 + $0x8] sm:$0xf]
        %v1255 = vld [vmem:[#allocation11 + $0xc] sm:$0xf]
        %v1256 = vld [vmem:[#allocation11 + $0x10] sm:$0xf]
        %v1257 = vld [vmem:[#allocation11 + $0x14] sm:$0xf]
        %v1258 = vld [vmem:[#allocation11 + $0x18] sm:$0xf]
        %v1259 = vld [vmem:[#allocation11 + $0x1c] sm:$0xf]
        %v1260 = vld [vmem:[#allocation11 + $0x20] sm:$0xf]
        %v1261 = vld [vmem:[#allocation11 + $0x24] sm:$0xf]
        %v1262 = vld [vmem:[#allocation11 + $0x28] sm:$0xf]
        %v1263 = vld [vmem:[#allocation11 + $0x2c] sm:$0xf]
        %v1264 = vld [vmem:[#allocation11 + $0x30] sm:$0xf]
        %v1265 = vld [vmem:[#allocation11 + $0x34] sm:$0xf]
        %v1266 = vld [vmem:[#allocation11 + $0x38] sm:$0xf]
        %v1267 = vld [vmem:[#allocation11 + $0x3c] sm:$0xf]
        %v1268 = vpack.c.bf16 %v1081, %v1077
        %v1269 = vpack.c.bf16 %v1091, %v1087
        %v1270 = vpack.c.bf16 %v1101, %v1097
        %v1271 = vpack.c.bf16 %v1111, %v1107
        %v1272 = vpack.c.bf16 %v1121, %v1117
        %v1273 = vpack.c.bf16 %v1131, %v1127
        %v1274 = vpack.c.bf16 %v1141, %v1137
        %v1275 = vpack.c.bf16 %v1151, %v1147
        %v1276 = vpack.c.bf16 %v1083, %v1079
        %v1277 = vpack.c.bf16 %v1093, %v1089
        %v1278 = vpack.c.bf16 %v1103, %v1099
        %v1279 = vpack.c.bf16 %v1113, %v1109
        %v1280 = vpack.c.bf16 %v1123, %v1119
        %v1281 = vpack.c.bf16 %v1133, %v1129
        %v1282 = vpack.c.bf16 %v1143, %v1139
        %v1283 = vpack.c.bf16 %v1153, %v1149
        %v1284 = vpack.c.bf16 %v1193, %v1190
        %v1285 = vpack.c.bf16 %v1201, %v1198
        %v1286 = vpack.c.bf16 %v1209, %v1206
        %v1287 = vpack.c.bf16 %v1217, %v1214
        %v1288 = vpack.c.bf16 %v1225, %v1222
        %v1289 = vpack.c.bf16 %v1233, %v1230
        %v1290 = vpack.c.bf16 %v1241, %v1238
        %v1291 = vpack.c.bf16 %v1249, %v1246
        %vm1292 = vcmask 261120
        %v1294 = vsel %vm1292, %v1268, 0
        %v1297 = vsel %vm1292, %v1269, 0
        %v1300 = vsel %vm1292, %v1270, 0
        %v1303 = vsel %vm1292, %v1271, 0
        %v1306 = vsel %vm1292, %v1272, 0
        %v1309 = vsel %vm1292, %v1273, 0
        %v1312 = vsel %vm1292, %v1274, 0
        %v1315 = vsel %vm1292, %v1275, 0
        %v1318 = vsel %vm1292, %v1276, 0
        %v1321 = vsel %vm1292, %v1277, 0
        %v1324 = vsel %vm1292, %v1278, 0
        %v1327 = vsel %vm1292, %v1279, 0
        %v1330 = vsel %vm1292, %v1280, 0
        %v1333 = vsel %vm1292, %v1281, 0
        %v1336 = vsel %vm1292, %v1282, 0
        %v1339 = vsel %vm1292, %v1283, 0
        %1341 = vmatprep.subr.bf16.mxu0 0
        %1342 = vmatpush1.bf16.xpose.msra.mxu0 %v1318
        %1343 = vmatprep.subr.bf16.mxu0 0
        %1344 = vmatpush1.bf16.xpose.msra.mxu0 %v1321
        %1345 = vmatprep.subr.bf16.mxu0 0
        %1346 = vmatpush1.bf16.xpose.msra.mxu0 %v1324
        %1347 = vmatprep.subr.bf16.mxu0 0
        %1348 = vmatpush1.bf16.xpose.msra.mxu0 %v1327
        %1349 = vmatprep.subr.bf16.mxu0 0
        %1350 = vmatpush1.bf16.xpose.msra.mxu0 %v1330
        %1351 = vmatprep.subr.bf16.mxu0 0
        %1352 = vmatpush1.bf16.xpose.msra.mxu0 %v1333
        %1353 = vmatprep.subr.bf16.mxu0 0
        %1354 = vmatpush1.bf16.xpose.msra.mxu0 %v1336
        %1355 = vmatprep.subr.bf16.mxu0 0
        %1356 = vmatpush1.bf16.xpose.msra.mxu0 %v1339
        %1357 = vmatprep.subr.bf16.mxu0 0
        %1358 = vmatpush1.bf16.xpose.msra.mxu0 0
        %1359 = vmatprep.subr.bf16.mxu0 0
        %1360 = vmatpush1.bf16.xpose.msra.mxu0 0
        %1361 = vmatprep.subr.bf16.mxu0 0
        %1362 = vmatpush1.bf16.xpose.msra.mxu0 0
        %1363 = vmatprep.subr.bf16.mxu0 0
        %1364 = vmatpush1.bf16.xpose.msra.mxu0 0
        %1365 = vmatprep.subr.bf16.mxu0 0
        %1366 = vmatpush1.bf16.xpose.msra.mxu0 0
        %1367 = vmatprep.subr.bf16.mxu0 0
        %1368 = vmatpush1.bf16.xpose.msra.mxu0 0
        %1369 = vmatprep.subr.bf16.mxu0 0
        %1370 = vmatpush1.bf16.xpose.msra.mxu0 0
        %1371 = vmatprep.subr.bf16.mxu0 0
        %1372 = vmatpush1.bf16.xpose.msra.mxu0 0
        %1373 = vmatprep.mubr.bf16.mxu0 0
        %1374 = vmatmul.mubr.bf16.gmra.mrb[0].mxu0 %v1294
        %v1375 = vpop.f32.mrb[0].mxu0
        %v1376 = vadd.f32 0.0, %v1375
        %v1377 = vpop.f32.mrb[0].mxu0
        %v1378 = vpop.f32.mrb[0].mxu0
        %v1379 = vadd.f32 0.0, %v1378
        %v1380 = vpop.f32.mrb[0].mxu0
        %1381 = vmatprep.mubr.bf16.mxu0 0
        %1382 = vmatmul.mubr.bf16.gmra.mrb[0].mxu0 %v1297
        %v1383 = vpop.f32.mrb[0].mxu0
        %v1384 = vadd.f32 0.0, %v1383
        %v1385 = vpop.f32.mrb[0].mxu0
        %v1386 = vpop.f32.mrb[0].mxu0
        %v1387 = vadd.f32 0.0, %v1386
        %v1388 = vpop.f32.mrb[0].mxu0
        %1389 = vmatprep.mubr.bf16.mxu0 0
        %1390 = vmatmul.mubr.bf16.gmra.mrb[0].mxu0 %v1300
        %v1391 = vpop.f32.mrb[0].mxu0
        %v1392 = vadd.f32 0.0, %v1391
        %v1393 = vpop.f32.mrb[0].mxu0
        %v1394 = vpop.f32.mrb[0].mxu0
        %v1395 = vadd.f32 0.0, %v1394
        %v1396 = vpop.f32.mrb[0].mxu0
        %1397 = vmatprep.mubr.bf16.mxu0 0
        %1398 = vmatmul.mubr.bf16.gmra.mrb[0].mxu0 %v1303
        %v1399 = vpop.f32.mrb[0].mxu0
        %v1400 = vadd.f32 0.0, %v1399
        %v1401 = vpop.f32.mrb[0].mxu0
        %v1402 = vpop.f32.mrb[0].mxu0
        %v1403 = vadd.f32 0.0, %v1402
        %v1404 = vpop.f32.mrb[0].mxu0
        %1405 = vmatprep.mubr.bf16.mxu0 0
        %1406 = vmatmul.mubr.bf16.gmra.mrb[0].mxu0 %v1306
        %v1407 = vpop.f32.mrb[0].mxu0
        %v1408 = vadd.f32 0.0, %v1407
        %v1409 = vpop.f32.mrb[0].mxu0
        %v1410 = vpop.f32.mrb[0].mxu0
        %v1411 = vadd.f32 0.0, %v1410
        %v1412 = vpop.f32.mrb[0].mxu0
        %1413 = vmatprep.mubr.bf16.mxu0 0
        %1414 = vmatmul.mubr.bf16.gmra.mrb[0].mxu0 %v1309
        %v1415 = vpop.f32.mrb[0].mxu0
        %v1416 = vadd.f32 0.0, %v1415
        %v1417 = vpop.f32.mrb[0].mxu0
        %v1418 = vpop.f32.mrb[0].mxu0
        %v1419 = vadd.f32 0.0, %v1418
        %v1420 = vpop.f32.mrb[0].mxu0
        %1421 = vmatprep.mubr.bf16.mxu0 0
        %1422 = vmatmul.mubr.bf16.gmra.mrb[0].mxu0 %v1312
        %v1423 = vpop.f32.mrb[0].mxu0
        %v1424 = vadd.f32 0.0, %v1423
        %v1425 = vpop.f32.mrb[0].mxu0
        %v1426 = vpop.f32.mrb[0].mxu0
        %v1427 = vadd.f32 0.0, %v1426
        %v1428 = vpop.f32.mrb[0].mxu0
        %1429 = vmatprep.mubr.bf16.mxu0 0
        %1430 = vmatmul.mubr.bf16.gmra.mrb[0].mxu0 %v1315
        %v1431 = vpop.f32.mrb[0].mxu0
        %v1432 = vadd.f32 0.0, %v1431
        %v1433 = vpop.f32.mrb[0].mxu0
        %v1434 = vpop.f32.mrb[0].mxu0
        %v1435 = vadd.f32 0.0, %v1434
        %v1436 = vpop.f32.mrb[0].mxu0
        %1437 = vdwg.mxu0
        %1438 = vmax.xlane.f32.xlu0 %v1376
        %v1439 = vpop.xlane.xlu0 %1438
        %1440 = vmax.xlane.f32.xlu0 %v1379
        %v1441 = vpop.xlane.xlu0 %1440
        %1442 = vmax.xlane.f32.xlu0 %v1384
        %v1443 = vpop.xlane.xlu0 %1442
        %1444 = vmax.xlane.f32.xlu0 %v1387
        %v1445 = vpop.xlane.xlu0 %1444
        %1446 = vmax.xlane.f32.xlu0 %v1392
        %v1447 = vpop.xlane.xlu0 %1446
        %1448 = vmax.xlane.f32.xlu0 %v1395
        %v1449 = vpop.xlane.xlu0 %1448
        %1450 = vmax.xlane.f32.xlu0 %v1400
        %v1451 = vpop.xlane.xlu0 %1450
        %1452 = vmax.xlane.f32.xlu0 %v1403
        %v1453 = vpop.xlane.xlu0 %1452
        %1454 = vmax.xlane.f32.xlu0 %v1408
        %v1455 = vpop.xlane.xlu0 %1454
        %1456 = vmax.xlane.f32.xlu0 %v1411
        %v1457 = vpop.xlane.xlu0 %1456
        %1458 = vmax.xlane.f32.xlu0 %v1416
        %v1459 = vpop.xlane.xlu0 %1458
        %1460 = vmax.xlane.f32.xlu0 %v1419
        %v1461 = vpop.xlane.xlu0 %1460
        %1462 = vmax.xlane.f32.xlu0 %v1424
        %v1463 = vpop.xlane.xlu0 %1462
        %1464 = vmax.xlane.f32.xlu0 %v1427
        %v1465 = vpop.xlane.xlu0 %1464
        %1466 = vmax.xlane.f32.xlu0 %v1432
        %v1467 = vpop.xlane.xlu0 %1466
        %1468 = vmax.xlane.f32.xlu0 %v1435
        %v1469 = vpop.xlane.xlu0 %1468
        %v1470 = vsub.f32 %v1376, %v1439
        %v1471 = vsub.f32 %v1379, %v1441
        %v1472 = vsub.f32 %v1384, %v1443
        %v1473 = vsub.f32 %v1387, %v1445
        %v1474 = vsub.f32 %v1392, %v1447
        %v1475 = vsub.f32 %v1395, %v1449
        %v1476 = vsub.f32 %v1400, %v1451
        %v1477 = vsub.f32 %v1403, %v1453
        %v1478 = vsub.f32 %v1408, %v1455
        %v1479 = vsub.f32 %v1411, %v1457
        %v1480 = vsub.f32 %v1416, %v1459
        %v1481 = vsub.f32 %v1419, %v1461
        %v1482 = vsub.f32 %v1424, %v1463
        %v1483 = vsub.f32 %v1427, %v1465
        %v1484 = vsub.f32 %v1432, %v1467
        %v1485 = vsub.f32 %v1435, %v1469
        %v1486 = vmul.f32 %v1470, 1.442695
        %v1487 = vpow.pop %v1486
        %v1488 = vmul.f32 %v1471, 1.442695
        %v1489 = vpow.pop %v1488
        %v1490 = vmul.f32 %v1472, 1.442695
        %v1491 = vpow.pop %v1490
        %v1492 = vmul.f32 %v1473, 1.442695
        %v1493 = vpow.pop %v1492
        %v1494 = vmul.f32 %v1474, 1.442695
        %v1495 = vpow.pop %v1494
        %v1496 = vmul.f32 %v1475, 1.442695
        %v1497 = vpow.pop %v1496
        %v1498 = vmul.f32 %v1476, 1.442695
        %v1499 = vpow.pop %v1498
        %v1500 = vmul.f32 %v1477, 1.442695
        %v1501 = vpow.pop %v1500
        %v1502 = vmul.f32 %v1478, 1.442695
        %v1503 = vpow.pop %v1502
        %v1504 = vmul.f32 %v1479, 1.442695
        %v1505 = vpow.pop %v1504
        %v1506 = vmul.f32 %v1480, 1.442695
        %v1507 = vpow.pop %v1506
        %v1508 = vmul.f32 %v1481, 1.442695
        %v1509 = vpow.pop %v1508
        %v1510 = vmul.f32 %v1482, 1.442695
        %v1511 = vpow.pop %v1510
        %v1512 = vmul.f32 %v1483, 1.442695
        %v1513 = vpow.pop %v1512
        %v1514 = vmul.f32 %v1484, 1.442695
        %v1515 = vpow.pop %v1514
        %v1516 = vmul.f32 %v1485, 1.442695
        %v1517 = vpow.pop %v1516
        %1518 = vadd.xlane.f32.xlu0 %v1487
        %v1519 = vpop.xlane.xlu0 %1518
        %1520 = vadd.xlane.f32.xlu0 %v1489
        %v1521 = vpop.xlane.xlu0 %1520
        %1522 = vadd.xlane.f32.xlu0 %v1491
        %v1523 = vpop.xlane.xlu0 %1522
        %1524 = vadd.xlane.f32.xlu0 %v1493
        %v1525 = vpop.xlane.xlu0 %1524
        %1526 = vadd.xlane.f32.xlu0 %v1495
        %v1527 = vpop.xlane.xlu0 %1526
        %1528 = vadd.xlane.f32.xlu0 %v1497
        %v1529 = vpop.xlane.xlu0 %1528
        %1530 = vadd.xlane.f32.xlu0 %v1499
        %v1531 = vpop.xlane.xlu0 %1530
        %1532 = vadd.xlane.f32.xlu0 %v1501
        %v1533 = vpop.xlane.xlu0 %1532
        %1534 = vadd.xlane.f32.xlu0 %v1503
        %v1535 = vpop.xlane.xlu0 %1534
        %1536 = vadd.xlane.f32.xlu0 %v1505
        %v1537 = vpop.xlane.xlu0 %1536
        %1538 = vadd.xlane.f32.xlu0 %v1507
        %v1539 = vpop.xlane.xlu0 %1538
        %1540 = vadd.xlane.f32.xlu0 %v1509
        %v1541 = vpop.xlane.xlu0 %1540
        %1542 = vadd.xlane.f32.xlu0 %v1511
        %v1543 = vpop.xlane.xlu0 %1542
        %1544 = vadd.xlane.f32.xlu0 %v1513
        %v1545 = vpop.xlane.xlu0 %1544
        %1546 = vadd.xlane.f32.xlu0 %v1515
        %v1547 = vpop.xlane.xlu0 %1546
        %1548 = vadd.xlane.f32.xlu0 %v1517
        %v1549 = vpop.xlane.xlu0 %1548
        %v1550 = vpack.c.bf16 %v1489, %v1487
        %v1551 = vpack.c.bf16 %v1493, %v1491
        %v1552 = vpack.c.bf16 %v1497, %v1495
        %v1553 = vpack.c.bf16 %v1501, %v1499
        %v1554 = vpack.c.bf16 %v1505, %v1503
        %v1555 = vpack.c.bf16 %v1509, %v1507
        %v1556 = vpack.c.bf16 %v1513, %v1511
        %v1557 = vpack.c.bf16 %v1517, %v1515
        %1558 = vmatprep.subr.bf16.mxu0 0
        %1559 = vmatpush1.bf16.msra.mxu0 %v1284
        %1560 = vmatprep.subr.bf16.mxu0 0
        %1561 = vmatpush1.bf16.msra.mxu0 %v1285
        %1562 = vmatprep.subr.bf16.mxu0 0
        %1563 = vmatpush1.bf16.msra.mxu0 %v1286
        %1564 = vmatprep.subr.bf16.mxu0 0
        %1565 = vmatpush1.bf16.msra.mxu0 %v1287
        %1566 = vmatprep.subr.bf16.mxu0 0
        %1567 = vmatpush1.bf16.msra.mxu0 %v1288
        %1568 = vmatprep.subr.bf16.mxu0 0
        %1569 = vmatpush1.bf16.msra.mxu0 %v1289
        %1570 = vmatprep.subr.bf16.mxu0 0
        %1571 = vmatpush1.bf16.msra.mxu0 %v1290
        %1572 = vmatprep.subr.bf16.mxu0 0
        %1573 = vmatpush1.bf16.msra.mxu0 %v1291
        %1574 = vmatprep.subr.bf16.mxu0 0
        %1575 = vmatpush1.bf16.msra.mxu0 0
        %1576 = vmatprep.subr.bf16.mxu0 0
        %1577 = vmatpush1.bf16.msra.mxu0 0
        %1578 = vmatprep.subr.bf16.mxu0 0
        %1579 = vmatpush1.bf16.msra.mxu0 0
        %1580 = vmatprep.subr.bf16.mxu0 0
        %1581 = vmatpush1.bf16.msra.mxu0 0
        %1582 = vmatprep.subr.bf16.mxu0 0
        %1583 = vmatpush1.bf16.msra.mxu0 0
        %1584 = vmatprep.subr.bf16.mxu0 0
        %1585 = vmatpush1.bf16.msra.mxu0 0
        %1586 = vmatprep.subr.bf16.mxu0 0
        %1587 = vmatpush1.bf16.msra.mxu0 0
        %1588 = vmatprep.subr.bf16.mxu0 0
        %1589 = vmatpush1.bf16.msra.mxu0 0
        %1590 = vmatprep.mubr.bf16.mxu0 0
        %1591 = vmatmul.mubr.bf16.gmra.mrb[0].mxu0 %v1550
        %v1592 = vpop.f32.mrb[0].mxu0
        %v1593 = vadd.f32 0.0, %v1592
        %v1594 = vpop.f32.mrb[0].mxu0
        %v1595 = vpop.f32.mrb[0].mxu0
        %v1596 = vadd.f32 0.0, %v1595
        %v1597 = vpop.f32.mrb[0].mxu0
        %1598 = vmatprep.mubr.bf16.mxu0 0
        %1599 = vmatmul.mubr.bf16.gmra.mrb[0].mxu0 %v1551
        %v1600 = vpop.f32.mrb[0].mxu0
        %v1601 = vadd.f32 0.0, %v1600
        %v1602 = vpop.f32.mrb[0].mxu0
        %v1603 = vpop.f32.mrb[0].mxu0
        %v1604 = vadd.f32 0.0, %v1603
        %v1605 = vpop.f32.mrb[0].mxu0
        %1606 = vmatprep.mubr.bf16.mxu0 0
        %1607 = vmatmul.mubr.bf16.gmra.mrb[0].mxu0 %v1552
        %v1608 = vpop.f32.mrb[0].mxu0
        %v1609 = vadd.f32 0.0, %v1608
        %v1610 = vpop.f32.mrb[0].mxu0
        %v1611 = vpop.f32.mrb[0].mxu0
        %v1612 = vadd.f32 0.0, %v1611
        %v1613 = vpop.f32.mrb[0].mxu0
        %1614 = vmatprep.mubr.bf16.mxu0 0
        %1615 = vmatmul.mubr.bf16.gmra.mrb[0].mxu0 %v1553
        %v1616 = vpop.f32.mrb[0].mxu0
        %v1617 = vadd.f32 0.0, %v1616
        %v1618 = vpop.f32.mrb[0].mxu0
        %v1619 = vpop.f32.mrb[0].mxu0
        %v1620 = vadd.f32 0.0, %v1619
        %v1621 = vpop.f32.mrb[0].mxu0
        %1622 = vmatprep.mubr.bf16.mxu0 0
        %1623 = vmatmul.mubr.bf16.gmra.mrb[0].mxu0 %v1554
        %v1624 = vpop.f32.mrb[0].mxu0
        %v1625 = vadd.f32 0.0, %v1624
        %v1626 = vpop.f32.mrb[0].mxu0
        %v1627 = vpop.f32.mrb[0].mxu0
        %v1628 = vadd.f32 0.0, %v1627
        %v1629 = vpop.f32.mrb[0].mxu0
        %1630 = vmatprep.mubr.bf16.mxu0 0
        %1631 = vmatmul.mubr.bf16.gmra.mrb[0].mxu0 %v1555
        %v1632 = vpop.f32.mrb[0].mxu0
        %v1633 = vadd.f32 0.0, %v1632
        %v1634 = vpop.f32.mrb[0].mxu0
        %v1635 = vpop.f32.mrb[0].mxu0
        %v1636 = vadd.f32 0.0, %v1635
        %v1637 = vpop.f32.mrb[0].mxu0
        %1638 = vmatprep.mubr.bf16.mxu0 0
        %1639 = vmatmul.mubr.bf16.gmra.mrb[0].mxu0 %v1556
        %v1640 = vpop.f32.mrb[0].mxu0
        %v1641 = vadd.f32 0.0, %v1640
        %v1642 = vpop.f32.mrb[0].mxu0
        %v1643 = vpop.f32.mrb[0].mxu0
        %v1644 = vadd.f32 0.0, %v1643
        %v1645 = vpop.f32.mrb[0].mxu0
        %1646 = vmatprep.mubr.bf16.mxu0 0
        %1647 = vmatmul.mubr.bf16.gmra.mrb[0].mxu0 %v1557
        %v1648 = vpop.f32.mrb[0].mxu0
        %v1649 = vadd.f32 0.0, %v1648
        %v1650 = vpop.f32.mrb[0].mxu0
        %v1651 = vpop.f32.mrb[0].mxu0
        %v1652 = vadd.f32 0.0, %v1651
        %v1653 = vpop.f32.mrb[0].mxu0
        %1654 = vdwg.mxu0
        %v1655 = vrcp.pop %v1519
        %v1656 = vrcp.pop %v1521
        %v1657 = vrcp.pop %v1523
        %v1658 = vrcp.pop %v1525
        %v1659 = vrcp.pop %v1527
        %v1660 = vrcp.pop %v1529
        %v1661 = vrcp.pop %v1531
        %v1662 = vrcp.pop %v1533
        %v1663 = vrcp.pop %v1535
        %v1664 = vrcp.pop %v1537
        %v1665 = vrcp.pop %v1539
        %v1666 = vrcp.pop %v1541
        %v1667 = vrcp.pop %v1543
        %v1668 = vrcp.pop %v1545
        %v1669 = vrcp.pop %v1547
        %v1670 = vrcp.pop %v1549
        %v1671 = vmul.f32 %v1593, %v1655
        %v1672 = vmul.f32 %v1596, %v1656
        %v1673 = vmul.f32 %v1601, %v1657
        %v1674 = vmul.f32 %v1604, %v1658
        %v1675 = vmul.f32 %v1609, %v1659
        %v1676 = vmul.f32 %v1612, %v1660
        %v1677 = vmul.f32 %v1617, %v1661
        %v1678 = vmul.f32 %v1620, %v1662
        %v1679 = vmul.f32 %v1625, %v1663
        %v1680 = vmul.f32 %v1628, %v1664
        %v1681 = vmul.f32 %v1633, %v1665
        %v1682 = vmul.f32 %v1636, %v1666
        %v1683 = vmul.f32 %v1641, %v1667
        %v1684 = vmul.f32 %v1644, %v1668
        %v1685 = vmul.f32 %v1649, %v1669
        %v1686 = vmul.f32 %v1652, %v1670
        %v1687 = vpack.c.bf16 %v1672, %v1671
        %v1688 = vpack.c.bf16 %v1674, %v1673
        %v1689 = vpack.c.bf16 %v1676, %v1675
        %v1690 = vpack.c.bf16 %v1678, %v1677
        %v1691 = vpack.c.bf16 %v1680, %v1679
        %v1692 = vpack.c.bf16 %v1682, %v1681
        %v1693 = vpack.c.bf16 %v1684, %v1683
        %v1694 = vpack.c.bf16 %v1686, %v1685
        %1703 = vrot.lane.b32.xlu0 %v1268, 96
        %v1704 = vpop.permute.xlu0 %1703
        %1705 = vrot.lane.b32.xlu0 %v1269, 96
        %v1706 = vpop.permute.xlu0 %1705
        %1707 = vrot.lane.b32.xlu0 %v1270, 96
        %v1708 = vpop.permute.xlu0 %1707
        %1709 = vrot.lane.b32.xlu0 %v1271, 96
        %v1710 = vpop.permute.xlu0 %1709
        %1711 = vrot.lane.b32.xlu0 %v1272, 96
        %v1712 = vpop.permute.xlu0 %1711
        %1713 = vrot.lane.b32.xlu0 %v1273, 96
        %v1714 = vpop.permute.xlu0 %1713
        %1715 = vrot.lane.b32.xlu0 %v1274, 96
        %v1716 = vpop.permute.xlu0 %1715
        %1717 = vrot.lane.b32.xlu0 %v1275, 96
        %v1718 = vpop.permute.xlu0 %1717
        %1727 = vrot.lane.b32.xlu0 %v1276, 96
        %v1728 = vpop.permute.xlu0 %1727
        %1729 = vrot.lane.b32.xlu0 %v1277, 96
        %v1730 = vpop.permute.xlu0 %1729
        %1731 = vrot.lane.b32.xlu0 %v1278, 96
        %v1732 = vpop.permute.xlu0 %1731
        %1733 = vrot.lane.b32.xlu0 %v1279, 96
        %v1734 = vpop.permute.xlu0 %1733
        %1735 = vrot.lane.b32.xlu0 %v1280, 96
        %v1736 = vpop.permute.xlu0 %1735
        %1737 = vrot.lane.b32.xlu0 %v1281, 96
        %v1738 = vpop.permute.xlu0 %1737
        %1739 = vrot.lane.b32.xlu0 %v1282, 96
        %v1740 = vpop.permute.xlu0 %1739
        %1741 = vrot.lane.b32.xlu0 %v1283, 96
        %v1742 = vpop.permute.xlu0 %1741
        %v1744 = vsel %vm1292, %v1704, 0
        %v1747 = vsel %vm1292, %v1706, 0
        %v1750 = vsel %vm1292, %v1708, 0
        %v1753 = vsel %vm1292, %v1710, 0
        %v1756 = vsel %vm1292, %v1712, 0
        %v1759 = vsel %vm1292, %v1714, 0
        %v1762 = vsel %vm1292, %v1716, 0
        %v1765 = vsel %vm1292, %v1718, 0
        %v1768 = vsel %vm1292, %v1728, 0
        %v1771 = vsel %vm1292, %v1730, 0
        %v1774 = vsel %vm1292, %v1732, 0
        %v1777 = vsel %vm1292, %v1734, 0
        %v1780 = vsel %vm1292, %v1736, 0
        %v1783 = vsel %vm1292, %v1738, 0
        %v1786 = vsel %vm1292, %v1740, 0
        %v1789 = vsel %vm1292, %v1742, 0
        %1791 = vmatprep.subr.bf16.mxu0 0
        %1792 = vmatpush1.bf16.xpose.msra.mxu0 %v1768
        %1793 = vmatprep.subr.bf16.mxu0 0
        %1794 = vmatpush1.bf16.xpose.msra.mxu0 %v1771
        %1795 = vmatprep.subr.bf16.mxu0 0
        %1796 = vmatpush1.bf16.xpose.msra.mxu0 %v1774
        %1797 = vmatprep.subr.bf16.mxu0 0
        %1798 = vmatpush1.bf16.xpose.msra.mxu0 %v1777
        %1799 = vmatprep.subr.bf16.mxu0 0
        %1800 = vmatpush1.bf16.xpose.msra.mxu0 %v1780
        %1801 = vmatprep.subr.bf16.mxu0 0
        %1802 = vmatpush1.bf16.xpose.msra.mxu0 %v1783
        %1803 = vmatprep.subr.bf16.mxu0 0
        %1804 = vmatpush1.bf16.xpose.msra.mxu0 %v1786
        %1805 = vmatprep.subr.bf16.mxu0 0
        %1806 = vmatpush1.bf16.xpose.msra.mxu0 %v1789
        %1807 = vmatprep.subr.bf16.mxu0 0
        %1808 = vmatpush1.bf16.xpose.msra.mxu0 0
        %1809 = vmatprep.subr.bf16.mxu0 0
        %1810 = vmatpush1.bf16.xpose.msra.mxu0 0
        %1811 = vmatprep.subr.bf16.mxu0 0
        %1812 = vmatpush1.bf16.xpose.msra.mxu0 0
        %1813 = vmatprep.subr.bf16.mxu0 0
        %1814 = vmatpush1.bf16.xpose.msra.mxu0 0
        %1815 = vmatprep.subr.bf16.mxu0 0
        %1816 = vmatpush1.bf16.xpose.msra.mxu0 0
        %1817 = vmatprep.subr.bf16.mxu0 0
        %1818 = vmatpush1.bf16.xpose.msra.mxu0 0
        %1819 = vmatprep.subr.bf16.mxu0 0
        %1820 = vmatpush1.bf16.xpose.msra.mxu0 0
        %1821 = vmatprep.subr.bf16.mxu0 0
        %1822 = vmatpush1.bf16.xpose.msra.mxu0 0
        %1823 = vmatprep.mubr.bf16.mxu0 0
        %1824 = vmatmul.mubr.bf16.gmra.mrb[0].mxu0 %v1744
        %v1825 = vpop.f32.mrb[0].mxu0
        %v1826 = vadd.f32 0.0, %v1825
        %v1827 = vpop.f32.mrb[0].mxu0
        %v1828 = vpop.f32.mrb[0].mxu0
        %v1829 = vadd.f32 0.0, %v1828
        %v1830 = vpop.f32.mrb[0].mxu0
        %1831 = vmatprep.mubr.bf16.mxu0 0
        %1832 = vmatmul.mubr.bf16.gmra.mrb[0].mxu0 %v1747
        %v1833 = vpop.f32.mrb[0].mxu0
        %v1834 = vadd.f32 0.0, %v1833
        %v1835 = vpop.f32.mrb[0].mxu0
        %v1836 = vpop.f32.mrb[0].mxu0
        %v1837 = vadd.f32 0.0, %v1836
        %v1838 = vpop.f32.mrb[0].mxu0
        %1839 = vmatprep.mubr.bf16.mxu0 0
        %1840 = vmatmul.mubr.bf16.gmra.mrb[0].mxu0 %v1750
        %v1841 = vpop.f32.mrb[0].mxu0
        %v1842 = vadd.f32 0.0, %v1841
        %v1843 = vpop.f32.mrb[0].mxu0
        %v1844 = vpop.f32.mrb[0].mxu0
        %v1845 = vadd.f32 0.0, %v1844
        %v1846 = vpop.f32.mrb[0].mxu0
        %1847 = vmatprep.mubr.bf16.mxu0 0
        %1848 = vmatmul.mubr.bf16.gmra.mrb[0].mxu0 %v1753
        %v1849 = vpop.f32.mrb[0].mxu0
        %v1850 = vadd.f32 0.0, %v1849
        %v1851 = vpop.f32.mrb[0].mxu0
        %v1852 = vpop.f32.mrb[0].mxu0
        %v1853 = vadd.f32 0.0, %v1852
        %v1854 = vpop.f32.mrb[0].mxu0
        %1855 = vmatprep.mubr.bf16.mxu0 0
        %1856 = vmatmul.mubr.bf16.gmra.mrb[0].mxu0 %v1756
        %v1857 = vpop.f32.mrb[0].mxu0
        %v1858 = vadd.f32 0.0, %v1857
        %v1859 = vpop.f32.mrb[0].mxu0
        %v1860 = vpop.f32.mrb[0].mxu0
        %v1861 = vadd.f32 0.0, %v1860
        %v1862 = vpop.f32.mrb[0].mxu0
        %1863 = vmatprep.mubr.bf16.mxu0 0
        %1864 = vmatmul.mubr.bf16.gmra.mrb[0].mxu0 %v1759
        %v1865 = vpop.f32.mrb[0].mxu0
        %v1866 = vadd.f32 0.0, %v1865
        %v1867 = vpop.f32.mrb[0].mxu0
        %v1868 = vpop.f32.mrb[0].mxu0
        %v1869 = vadd.f32 0.0, %v1868
        %v1870 = vpop.f32.mrb[0].mxu0
        %1871 = vmatprep.mubr.bf16.mxu0 0
        %1872 = vmatmul.mubr.bf16.gmra.mrb[0].mxu0 %v1762
        %v1873 = vpop.f32.mrb[0].mxu0
        %v1874 = vadd.f32 0.0, %v1873
        %v1875 = vpop.f32.mrb[0].mxu0
        %v1876 = vpop.f32.mrb[0].mxu0
        %v1877 = vadd.f32 0.0, %v1876
        %v1878 = vpop.f32.mrb[0].mxu0
        %1879 = vmatprep.mubr.bf16.mxu0 0
        %1880 = vmatmul.mubr.bf16.gmra.mrb[0].mxu0 %v1765
        %v1881 = vpop.f32.mrb[0].mxu0
        %v1882 = vadd.f32 0.0, %v1881
        %v1883 = vpop.f32.mrb[0].mxu0
        %v1884 = vpop.f32.mrb[0].mxu0
        %v1885 = vadd.f32 0.0, %v1884
        %v1886 = vpop.f32.mrb[0].mxu0
        %1887 = vdwg.mxu0
        %1888 = vmax.xlane.f32.xlu0 %v1826
        %v1889 = vpop.xlane.xlu0 %1888
        %1890 = vmax.xlane.f32.xlu0 %v1829
        %v1891 = vpop.xlane.xlu0 %1890
        %1892 = vmax.xlane.f32.xlu0 %v1834
        %v1893 = vpop.xlane.xlu0 %1892
        %1894 = vmax.xlane.f32.xlu0 %v1837
        %v1895 = vpop.xlane.xlu0 %1894
        %1896 = vmax.xlane.f32.xlu0 %v1842
        %v1897 = vpop.xlane.xlu0 %1896
        %1898 = vmax.xlane.f32.xlu0 %v1845
        %v1899 = vpop.xlane.xlu0 %1898
        %1900 = vmax.xlane.f32.xlu0 %v1850
        %v1901 = vpop.xlane.xlu0 %1900
        %1902 = vmax.xlane.f32.xlu0 %v1853
        %v1903 = vpop.xlane.xlu0 %1902
        %1904 = vmax.xlane.f32.xlu0 %v1858
        %v1905 = vpop.xlane.xlu0 %1904
        %1906 = vmax.xlane.f32.xlu0 %v1861
        %v1907 = vpop.xlane.xlu0 %1906
        %1908 = vmax.xlane.f32.xlu0 %v1866
        %v1909 = vpop.xlane.xlu0 %1908
        %1910 = vmax.xlane.f32.xlu0 %v1869
        %v1911 = vpop.xlane.xlu0 %1910
        %1912 = vmax.xlane.f32.xlu0 %v1874
        %v1913 = vpop.xlane.xlu0 %1912
        %1914 = vmax.xlane.f32.xlu0 %v1877
        %v1915 = vpop.xlane.xlu0 %1914
        %1916 = vmax.xlane.f32.xlu0 %v1882
        %v1917 = vpop.xlane.xlu0 %1916
        %1918 = vmax.xlane.f32.xlu0 %v1885
        %v1919 = vpop.xlane.xlu0 %1918
        %v1920 = vsub.f32 %v1826, %v1889
        %v1921 = vsub.f32 %v1829, %v1891
        %v1922 = vsub.f32 %v1834, %v1893
        %v1923 = vsub.f32 %v1837, %v1895
        %v1924 = vsub.f32 %v1842, %v1897
        %v1925 = vsub.f32 %v1845, %v1899
        %v1926 = vsub.f32 %v1850, %v1901
        %v1927 = vsub.f32 %v1853, %v1903
        %v1928 = vsub.f32 %v1858, %v1905
        %v1929 = vsub.f32 %v1861, %v1907
        %v1930 = vsub.f32 %v1866, %v1909
        %v1931 = vsub.f32 %v1869, %v1911
        %v1932 = vsub.f32 %v1874, %v1913
        %v1933 = vsub.f32 %v1877, %v1915
        %v1934 = vsub.f32 %v1882, %v1917
        %v1935 = vsub.f32 %v1885, %v1919
        %v1936 = vmul.f32 %v1920, 1.442695
        %v1937 = vpow.pop %v1936
        %v1938 = vmul.f32 %v1921, 1.442695
        %v1939 = vpow.pop %v1938
        %v1940 = vmul.f32 %v1922, 1.442695
        %v1941 = vpow.pop %v1940
        %v1942 = vmul.f32 %v1923, 1.442695
        %v1943 = vpow.pop %v1942
        %v1944 = vmul.f32 %v1924, 1.442695
        %v1945 = vpow.pop %v1944
        %v1946 = vmul.f32 %v1925, 1.442695
        %v1947 = vpow.pop %v1946
        %v1948 = vmul.f32 %v1926, 1.442695
        %v1949 = vpow.pop %v1948
        %v1950 = vmul.f32 %v1927, 1.442695
        %v1951 = vpow.pop %v1950
        %v1952 = vmul.f32 %v1928, 1.442695
        %v1953 = vpow.pop %v1952
        %v1954 = vmul.f32 %v1929, 1.442695
        %v1955 = vpow.pop %v1954
        %v1956 = vmul.f32 %v1930, 1.442695
        %v1957 = vpow.pop %v1956
        %v1958 = vmul.f32 %v1931, 1.442695
        %v1959 = vpow.pop %v1958
        %v1960 = vmul.f32 %v1932, 1.442695
        %v1961 = vpow.pop %v1960
        %v1962 = vmul.f32 %v1933, 1.442695
        %v1963 = vpow.pop %v1962
        %v1964 = vmul.f32 %v1934, 1.442695
        %v1965 = vpow.pop %v1964
        %v1966 = vmul.f32 %v1935, 1.442695
        %v1967 = vpow.pop %v1966
        %1968 = vadd.xlane.f32.xlu0 %v1937
        %v1969 = vpop.xlane.xlu0 %1968
        %1970 = vadd.xlane.f32.xlu0 %v1939
        %v1971 = vpop.xlane.xlu0 %1970
        %1972 = vadd.xlane.f32.xlu0 %v1941
        %v1973 = vpop.xlane.xlu0 %1972
        %1974 = vadd.xlane.f32.xlu0 %v1943
        %v1975 = vpop.xlane.xlu0 %1974
        %1976 = vadd.xlane.f32.xlu0 %v1945
        %v1977 = vpop.xlane.xlu0 %1976
        %1978 = vadd.xlane.f32.xlu0 %v1947
        %v1979 = vpop.xlane.xlu0 %1978
        %1980 = vadd.xlane.f32.xlu0 %v1949
        %v1981 = vpop.xlane.xlu0 %1980
        %1982 = vadd.xlane.f32.xlu0 %v1951
        %v1983 = vpop.xlane.xlu0 %1982
        %1984 = vadd.xlane.f32.xlu0 %v1953
        %v1985 = vpop.xlane.xlu0 %1984
        %1986 = vadd.xlane.f32.xlu0 %v1955
        %v1987 = vpop.xlane.xlu0 %1986
        %1988 = vadd.xlane.f32.xlu0 %v1957
        %v1989 = vpop.xlane.xlu0 %1988
        %1990 = vadd.xlane.f32.xlu0 %v1959
        %v1991 = vpop.xlane.xlu0 %1990
        %1992 = vadd.xlane.f32.xlu0 %v1961
        %v1993 = vpop.xlane.xlu0 %1992
        %1994 = vadd.xlane.f32.xlu0 %v1963
        %v1995 = vpop.xlane.xlu0 %1994
        %1996 = vadd.xlane.f32.xlu0 %v1965
        %v1997 = vpop.xlane.xlu0 %1996
        %1998 = vadd.xlane.f32.xlu0 %v1967
        %v1999 = vpop.xlane.xlu0 %1998
        %v2000 = vpack.c.bf16 %v1939, %v1937
        %v2001 = vpack.c.bf16 %v1943, %v1941
        %v2002 = vpack.c.bf16 %v1947, %v1945
        %v2003 = vpack.c.bf16 %v1951, %v1949
        %v2004 = vpack.c.bf16 %v1955, %v1953
        %v2005 = vpack.c.bf16 %v1959, %v1957
        %v2006 = vpack.c.bf16 %v1963, %v1961
        %v2007 = vpack.c.bf16 %v1967, %v1965
        %2016 = vrot.lane.b32.xlu0 %v1284, 96
        %v2017 = vpop.permute.xlu0 %2016
        %2018 = vrot.lane.b32.xlu0 %v1285, 96
        %v2019 = vpop.permute.xlu0 %2018
        %2020 = vrot.lane.b32.xlu0 %v1286, 96
        %v2021 = vpop.permute.xlu0 %2020
        %2022 = vrot.lane.b32.xlu0 %v1287, 96
        %v2023 = vpop.permute.xlu0 %2022
        %2024 = vrot.lane.b32.xlu0 %v1288, 96
        %v2025 = vpop.permute.xlu0 %2024
        %2026 = vrot.lane.b32.xlu0 %v1289, 96
        %v2027 = vpop.permute.xlu0 %2026
        %2028 = vrot.lane.b32.xlu0 %v1290, 96
        %v2029 = vpop.permute.xlu0 %2028
        %2030 = vrot.lane.b32.xlu0 %v1291, 96
        %v2031 = vpop.permute.xlu0 %2030
        %2040 = vmatprep.subr.bf16.mxu0 0
        %2041 = vmatpush1.bf16.msra.mxu0 %v2017
        %2042 = vmatprep.subr.bf16.mxu0 0
        %2043 = vmatpush1.bf16.msra.mxu0 %v2019
        %2044 = vmatprep.subr.bf16.mxu0 0
        %2045 = vmatpush1.bf16.msra.mxu0 %v2021
        %2046 = vmatprep.subr.bf16.mxu0 0
        %2047 = vmatpush1.bf16.msra.mxu0 %v2023
        %2048 = vmatprep.subr.bf16.mxu0 0
        %2049 = vmatpush1.bf16.msra.mxu0 %v2025
        %2050 = vmatprep.subr.bf16.mxu0 0
        %2051 = vmatpush1.bf16.msra.mxu0 %v2027
        %2052 = vmatprep.subr.bf16.mxu0 0
        %2053 = vmatpush1.bf16.msra.mxu0 %v2029
        %2054 = vmatprep.subr.bf16.mxu0 0
        %2055 = vmatpush1.bf16.msra.mxu0 %v2031
        %2056 = vmatprep.subr.bf16.mxu0 0
        %2057 = vmatpush1.bf16.msra.mxu0 0
        %2058 = vmatprep.subr.bf16.mxu0 0
        %2059 = vmatpush1.bf16.msra.mxu0 0
        %2060 = vmatprep.subr.bf16.mxu0 0
        %2061 = vmatpush1.bf16.msra.mxu0 0
        %2062 = vmatprep.subr.bf16.mxu0 0
        %2063 = vmatpush1.bf16.msra.mxu0 0
        %2064 = vmatprep.subr.bf16.mxu0 0
        %2065 = vmatpush1.bf16.msra.mxu0 0
        %2066 = vmatprep.subr.bf16.mxu0 0
        %2067 = vmatpush1.bf16.msra.mxu0 0
        %2068 = vmatprep.subr.bf16.mxu0 0
        %2069 = vmatpush1.bf16.msra.mxu0 0
        %2070 = vmatprep.subr.bf16.mxu0 0
        %2071 = vmatpush1.bf16.msra.mxu0 0
        %2072 = vmatprep.mubr.bf16.mxu0 0
        %2073 = vmatmul.mubr.bf16.gmra.mrb[0].mxu0 %v2000
        %v2074 = vpop.f32.mrb[0].mxu0
        %v2075 = vadd.f32 0.0, %v2074
        %v2076 = vpop.f32.mrb[0].mxu0
        %v2077 = vpop.f32.mrb[0].mxu0
        %v2078 = vadd.f32 0.0, %v2077
        %v2079 = vpop.f32.mrb[0].mxu0
        %2080 = vmatprep.mubr.bf16.mxu0 0
        %2081 = vmatmul.mubr.bf16.gmra.mrb[0].mxu0 %v2001
        %v2082 = vpop.f32.mrb[0].mxu0
        %v2083 = vadd.f32 0.0, %v2082
        %v2084 = vpop.f32.mrb[0].mxu0
        %v2085 = vpop.f32.mrb[0].mxu0
        %v2086 = vadd.f32 0.0, %v2085
        %v2087 = vpop.f32.mrb[0].mxu0
        %2088 = vmatprep.mubr.bf16.mxu0 0
        %2089 = vmatmul.mubr.bf16.gmra.mrb[0].mxu0 %v2002
        %v2090 = vpop.f32.mrb[0].mxu0
        %v2091 = vadd.f32 0.0, %v2090
        %v2092 = vpop.f32.mrb[0].mxu0
        %v2093 = vpop.f32.mrb[0].mxu0
        %v2094 = vadd.f32 0.0, %v2093
        %v2095 = vpop.f32.mrb[0].mxu0
        %2096 = vmatprep.mubr.bf16.mxu0 0
        %2097 = vmatmul.mubr.bf16.gmra.mrb[0].mxu0 %v2003
        %v2098 = vpop.f32.mrb[0].mxu0
        %v2099 = vadd.f32 0.0, %v2098
        %v2100 = vpop.f32.mrb[0].mxu0
        %v2101 = vpop.f32.mrb[0].mxu0
        %v2102 = vadd.f32 0.0, %v2101
        %v2103 = vpop.f32.mrb[0].mxu0
        %2104 = vmatprep.mubr.bf16.mxu0 0
        %2105 = vmatmul.mubr.bf16.gmra.mrb[0].mxu0 %v2004
        %v2106 = vpop.f32.mrb[0].mxu0
        %v2107 = vadd.f32 0.0, %v2106
        %v2108 = vpop.f32.mrb[0].mxu0
        %v2109 = vpop.f32.mrb[0].mxu0
        %v2110 = vadd.f32 0.0, %v2109
        %v2111 = vpop.f32.mrb[0].mxu0
        %2112 = vmatprep.mubr.bf16.mxu0 0
        %2113 = vmatmul.mubr.bf16.gmra.mrb[0].mxu0 %v2005
        %v2114 = vpop.f32.mrb[0].mxu0
        %v2115 = vadd.f32 0.0, %v2114
        %v2116 = vpop.f32.mrb[0].mxu0
        %v2117 = vpop.f32.mrb[0].mxu0
        %v2118 = vadd.f32 0.0, %v2117
        %v2119 = vpop.f32.mrb[0].mxu0
        %2120 = vmatprep.mubr.bf16.mxu0 0
        %2121 = vmatmul.mubr.bf16.gmra.mrb[0].mxu0 %v2006
        %v2122 = vpop.f32.mrb[0].mxu0
        %v2123 = vadd.f32 0.0, %v2122
        %v2124 = vpop.f32.mrb[0].mxu0
        %v2125 = vpop.f32.mrb[0].mxu0
        %v2126 = vadd.f32 0.0, %v2125
        %v2127 = vpop.f32.mrb[0].mxu0
        %2128 = vmatprep.mubr.bf16.mxu0 0
        %2129 = vmatmul.mubr.bf16.gmra.mrb[0].mxu0 %v2007
        %v2130 = vpop.f32.mrb[0].mxu0
        %v2131 = vadd.f32 0.0, %v2130
        %v2132 = vpop.f32.mrb[0].mxu0
        %v2133 = vpop.f32.mrb[0].mxu0
        %v2134 = vadd.f32 0.0, %v2133
        %v2135 = vpop.f32.mrb[0].mxu0
        %2136 = vdwg.mxu0
        %v2137 = vrcp.pop %v1969
        %v2138 = vrcp.pop %v1971
        %v2139 = vrcp.pop %v1973
        %v2140 = vrcp.pop %v1975
        %v2141 = vrcp.pop %v1977
        %v2142 = vrcp.pop %v1979
        %v2143 = vrcp.pop %v1981
        %v2144 = vrcp.pop %v1983
        %v2145 = vrcp.pop %v1985
        %v2146 = vrcp.pop %v1987
        %v2147 = vrcp.pop %v1989
        %v2148 = vrcp.pop %v1991
        %v2149 = vrcp.pop %v1993
        %v2150 = vrcp.pop %v1995
        %v2151 = vrcp.pop %v1997
        %v2152 = vrcp.pop %v1999
        %v2153 = vmul.f32 %v2075, %v2137
        %v2154 = vmul.f32 %v2078, %v2138
        %v2155 = vmul.f32 %v2083, %v2139
        %v2156 = vmul.f32 %v2086, %v2140
        %v2157 = vmul.f32 %v2091, %v2141
        %v2158 = vmul.f32 %v2094, %v2142
        %v2159 = vmul.f32 %v2099, %v2143
        %v2160 = vmul.f32 %v2102, %v2144
        %v2161 = vmul.f32 %v2107, %v2145
        %v2162 = vmul.f32 %v2110, %v2146
        %v2163 = vmul.f32 %v2115, %v2147
        %v2164 = vmul.f32 %v2118, %v2148
        %v2165 = vmul.f32 %v2123, %v2149
        %v2166 = vmul.f32 %v2126, %v2150
        %v2167 = vmul.f32 %v2131, %v2151
        %v2168 = vmul.f32 %v2134, %v2152
        %v2169 = vpack.c.bf16 %v2154, %v2153
        %v2170 = vpack.c.bf16 %v2156, %v2155
        %v2171 = vpack.c.bf16 %v2158, %v2157
        %v2172 = vpack.c.bf16 %v2160, %v2159
        %v2173 = vpack.c.bf16 %v2162, %v2161
        %v2174 = vpack.c.bf16 %v2164, %v2163
        %v2175 = vpack.c.bf16 %v2166, %v2165
        %v2176 = vpack.c.bf16 %v2168, %v2167
        %v2181 = vunpack.c.l.b16 %v1256
        %v2182 = vunpack.c.l.b16 %v1257
        %v2183 = vunpack.c.l.b16 %v1258
        %v2184 = vunpack.c.l.b16 %v1259
        %v2185 = vpack.c.b16 %v2182, %v2181
        %v2186 = vpack.c.b16 %v2184, %v2183
        %v2190 = vsel %vm1292, %v2169, 0
        %v2193 = vsel %vm1292, %v2170, 0
        %v2196 = vsel %vm1292, %v2171, 0
        %v2199 = vsel %vm1292, %v2172, 0
        %v2202 = vsel %vm1292, %v2173, 0
        %v2205 = vsel %vm1292, %v2174, 0
        %v2208 = vsel %vm1292, %v2175, 0
        %v2211 = vsel %vm1292, %v2176, 0
        %2213 = vmatprep.subr.bf16.mxu0 0
        %2214 = vmatpush1.bf16.msra.mxu0 %v2185
        %2215 = vmatprep.subr.bf16.mxu0 0
        %2216 = vmatpush1.bf16.msra.mxu0 %v2186
        %2217 = vmatprep.subr.bf16.mxu0 0
        %2218 = vmatpush1.bf16.msra.mxu0 0
        %2219 = vmatprep.subr.bf16.mxu0 0
        %2220 = vmatpush1.bf16.msra.mxu0 0
        %2221 = vmatprep.subr.bf16.mxu0 0
        %2222 = vmatpush1.bf16.msra.mxu0 0
        %2223 = vmatprep.subr.bf16.mxu0 0
        %2224 = vmatpush1.bf16.msra.mxu0 0
        %2225 = vmatprep.subr.bf16.mxu0 0
        %2226 = vmatpush1.bf16.msra.mxu0 0
        %2227 = vmatprep.subr.bf16.mxu0 0
        %2228 = vmatpush1.bf16.msra.mxu0 0
        %2229 = vmatprep.subr.bf16.mxu0 0
        %2230 = vmatpush1.bf16.msra.mxu0 0
        %2231 = vmatprep.subr.bf16.mxu0 0
        %2232 = vmatpush1.bf16.msra.mxu0 0
        %2233 = vmatprep.subr.bf16.mxu0 0
        %2234 = vmatpush1.bf16.msra.mxu0 0
        %2235 = vmatprep.subr.bf16.mxu0 0
        %2236 = vmatpush1.bf16.msra.mxu0 0
        %2237 = vmatprep.subr.bf16.mxu0 0
        %2238 = vmatpush1.bf16.msra.mxu0 0
        %2239 = vmatprep.subr.bf16.mxu0 0
        %2240 = vmatpush1.bf16.msra.mxu0 0
        %2241 = vmatprep.subr.bf16.mxu0 0
        %2242 = vmatpush1.bf16.msra.mxu0 0
        %2243 = vmatprep.subr.bf16.mxu0 0
        %2244 = vmatpush1.bf16.msra.mxu0 0
        %2245 = vmatprep.mubr.bf16.mxu0 0
        %2246 = vmatmul.mubr.bf16.gmra.mrb[0].mxu0 %v2190
        %v2247 = vpop.f32.mrb[0].mxu0
        %v2248 = vadd.f32 0.0, %v2247
        %v2249 = vpop.f32.mrb[0].mxu0
        %v2250 = vpop.f32.mrb[0].mxu0
        %v2251 = vadd.f32 0.0, %v2250
        %v2252 = vpop.f32.mrb[0].mxu0
        %2253 = vmatprep.mubr.bf16.mxu0 0
        %2254 = vmatmul.mubr.bf16.gmra.mrb[0].mxu0 %v2193
        %v2255 = vpop.f32.mrb[0].mxu0
        %v2256 = vadd.f32 0.0, %v2255
        %v2257 = vpop.f32.mrb[0].mxu0
        %v2258 = vpop.f32.mrb[0].mxu0
        %v2259 = vadd.f32 0.0, %v2258
        %v2260 = vpop.f32.mrb[0].mxu0
        %2261 = vmatprep.mubr.bf16.mxu0 0
        %2262 = vmatmul.mubr.bf16.gmra.mrb[0].mxu0 %v2196
        %v2263 = vpop.f32.mrb[0].mxu0
        %v2264 = vadd.f32 0.0, %v2263
        %v2265 = vpop.f32.mrb[0].mxu0
        %v2266 = vpop.f32.mrb[0].mxu0
        %v2267 = vadd.f32 0.0, %v2266
        %v2268 = vpop.f32.mrb[0].mxu0
        %2269 = vmatprep.mubr.bf16.mxu0 0
        %2270 = vmatmul.mubr.bf16.gmra.mrb[0].mxu0 %v2199
        %v2271 = vpop.f32.mrb[0].mxu0
        %v2272 = vadd.f32 0.0, %v2271
        %v2273 = vpop.f32.mrb[0].mxu0
        %v2274 = vpop.f32.mrb[0].mxu0
        %v2275 = vadd.f32 0.0, %v2274
        %v2276 = vpop.f32.mrb[0].mxu0
        %2277 = vmatprep.mubr.bf16.mxu0 0
        %2278 = vmatmul.mubr.bf16.gmra.mrb[0].mxu0 %v2202
        %v2279 = vpop.f32.mrb[0].mxu0
        %v2280 = vadd.f32 0.0, %v2279
        %v2281 = vpop.f32.mrb[0].mxu0
        %v2282 = vpop.f32.mrb[0].mxu0
        %v2283 = vadd.f32 0.0, %v2282
        %v2284 = vpop.f32.mrb[0].mxu0
        %2285 = vmatprep.mubr.bf16.mxu0 0
        %2286 = vmatmul.mubr.bf16.gmra.mrb[0].mxu0 %v2205
        %v2287 = vpop.f32.mrb[0].mxu0
        %v2288 = vadd.f32 0.0, %v2287
        %v2289 = vpop.f32.mrb[0].mxu0
        %v2290 = vpop.f32.mrb[0].mxu0
        %v2291 = vadd.f32 0.0, %v2290
        %v2292 = vpop.f32.mrb[0].mxu0
        %2293 = vmatprep.mubr.bf16.mxu0 0
        %2294 = vmatmul.mubr.bf16.gmra.mrb[0].mxu0 %v2208
        %v2295 = vpop.f32.mrb[0].mxu0
        %v2296 = vadd.f32 0.0, %v2295
        %v2297 = vpop.f32.mrb[0].mxu0
        %v2298 = vpop.f32.mrb[0].mxu0
        %v2299 = vadd.f32 0.0, %v2298
        %v2300 = vpop.f32.mrb[0].mxu0
        %2301 = vmatprep.mubr.bf16.mxu0 0
        %2302 = vmatmul.mubr.bf16.gmra.mrb[0].mxu0 %v2211
        %v2303 = vpop.f32.mrb[0].mxu0
        %v2304 = vadd.f32 0.0, %v2303
        %v2305 = vpop.f32.mrb[0].mxu0
        %v2306 = vpop.f32.mrb[0].mxu0
        %v2307 = vadd.f32 0.0, %v2306
        %v2308 = vpop.f32.mrb[0].mxu0
        %2309 = vdwg.mxu0
        %v2314 = vunpack.c.l.b16 %v1252
        %v2315 = vunpack.c.l.b16 %v1253
        %v2316 = vunpack.c.l.b16 %v1254
        %v2317 = vunpack.c.l.b16 %v1255
        %v2318 = vpack.c.b16 %v2315, %v2314
        %v2319 = vpack.c.b16 %v2317, %v2316
        %v2323 = vsel %vm1292, %v1687, 0
        %v2326 = vsel %vm1292, %v1688, 0
        %v2329 = vsel %vm1292, %v1689, 0
        %v2332 = vsel %vm1292, %v1690, 0
        %v2335 = vsel %vm1292, %v1691, 0
        %v2338 = vsel %vm1292, %v1692, 0
        %v2341 = vsel %vm1292, %v1693, 0
        %v2344 = vsel %vm1292, %v1694, 0
        %2346 = vmatprep.subr.bf16.mxu0 0
        %2347 = vmatpush1.bf16.msra.mxu0 %v2318
        %2348 = vmatprep.subr.bf16.mxu0 0
        %2349 = vmatpush1.bf16.msra.mxu0 %v2319
        %2350 = vmatprep.subr.bf16.mxu0 0
        %2351 = vmatpush1.bf16.msra.mxu0 0
        %2352 = vmatprep.subr.bf16.mxu0 0
        %2353 = vmatpush1.bf16.msra.mxu0 0
        %2354 = vmatprep.subr.bf16.mxu0 0
        %2355 = vmatpush1.bf16.msra.mxu0 0
        %2356 = vmatprep.subr.bf16.mxu0 0
        %2357 = vmatpush1.bf16.msra.mxu0 0
        %2358 = vmatprep.subr.bf16.mxu0 0
        %2359 = vmatpush1.bf16.msra.mxu0 0
        %2360 = vmatprep.subr.bf16.mxu0 0
        %2361 = vmatpush1.bf16.msra.mxu0 0
        %2362 = vmatprep.subr.bf16.mxu0 0
        %2363 = vmatpush1.bf16.msra.mxu0 0
        %2364 = vmatprep.subr.bf16.mxu0 0
        %2365 = vmatpush1.bf16.msra.mxu0 0
        %2366 = vmatprep.subr.bf16.mxu0 0
        %2367 = vmatpush1.bf16.msra.mxu0 0
        %2368 = vmatprep.subr.bf16.mxu0 0
        %2369 = vmatpush1.bf16.msra.mxu0 0
        %2370 = vmatprep.subr.bf16.mxu0 0
        %2371 = vmatpush1.bf16.msra.mxu0 0
        %2372 = vmatprep.subr.bf16.mxu0 0
        %2373 = vmatpush1.bf16.msra.mxu0 0
        %2374 = vmatprep.subr.bf16.mxu0 0
        %2375 = vmatpush1.bf16.msra.mxu0 0
        %2376 = vmatprep.subr.bf16.mxu0 0
        %2377 = vmatpush1.bf16.msra.mxu0 0
        %2378 = vmatprep.mubr.bf16.mxu0 0
        %2379 = vmatmul.mubr.bf16.gmra.mrb[0].mxu0 %v2323
        %v2380 = vpop.f32.mrb[0].mxu0
        %v2381 = vadd.f32 %v2248, %v2380
        %v2382 = vpop.f32.mrb[0].mxu0
        %v2383 = vpop.f32.mrb[0].mxu0
        %v2384 = vadd.f32 %v2251, %v2383
        %v2385 = vpop.f32.mrb[0].mxu0
        %2386 = vmatprep.mubr.bf16.mxu0 0
        %2387 = vmatmul.mubr.bf16.gmra.mrb[0].mxu0 %v2326
        %v2388 = vpop.f32.mrb[0].mxu0
        %v2389 = vadd.f32 %v2256, %v2388
        %v2390 = vpop.f32.mrb[0].mxu0
        %v2391 = vpop.f32.mrb[0].mxu0
        %v2392 = vadd.f32 %v2259, %v2391
        %v2393 = vpop.f32.mrb[0].mxu0
        %2394 = vmatprep.mubr.bf16.mxu0 0
        %2395 = vmatmul.mubr.bf16.gmra.mrb[0].mxu0 %v2329
        %v2396 = vpop.f32.mrb[0].mxu0
        %v2397 = vadd.f32 %v2264, %v2396
        %v2398 = vpop.f32.mrb[0].mxu0
        %v2399 = vpop.f32.mrb[0].mxu0
        %v2400 = vadd.f32 %v2267, %v2399
        %v2401 = vpop.f32.mrb[0].mxu0
        %2402 = vmatprep.mubr.bf16.mxu0 0
        %2403 = vmatmul.mubr.bf16.gmra.mrb[0].mxu0 %v2332
        %v2404 = vpop.f32.mrb[0].mxu0
        %v2405 = vadd.f32 %v2272, %v2404
        %v2406 = vpop.f32.mrb[0].mxu0
        %v2407 = vpop.f32.mrb[0].mxu0
        %v2408 = vadd.f32 %v2275, %v2407
        %v2409 = vpop.f32.mrb[0].mxu0
        %2410 = vmatprep.mubr.bf16.mxu0 0
        %2411 = vmatmul.mubr.bf16.gmra.mrb[0].mxu0 %v2335
        %v2412 = vpop.f32.mrb[0].mxu0
        %v2413 = vadd.f32 %v2280, %v2412
        %v2414 = vpop.f32.mrb[0].mxu0
        %v2415 = vpop.f32.mrb[0].mxu0
        %v2416 = vadd.f32 %v2283, %v2415
        %v2417 = vpop.f32.mrb[0].mxu0
        %2418 = vmatprep.mubr.bf16.mxu0 0
        %2419 = vmatmul.mubr.bf16.gmra.mrb[0].mxu0 %v2338
        %v2420 = vpop.f32.mrb[0].mxu0
        %v2421 = vadd.f32 %v2288, %v2420
        %v2422 = vpop.f32.mrb[0].mxu0
        %v2423 = vpop.f32.mrb[0].mxu0
        %v2424 = vadd.f32 %v2291, %v2423
        %v2425 = vpop.f32.mrb[0].mxu0
        %2426 = vmatprep.mubr.bf16.mxu0 0
        %2427 = vmatmul.mubr.bf16.gmra.mrb[0].mxu0 %v2341
        %v2428 = vpop.f32.mrb[0].mxu0
        %v2429 = vadd.f32 %v2296, %v2428
        %v2430 = vpop.f32.mrb[0].mxu0
        %v2431 = vpop.f32.mrb[0].mxu0
        %v2432 = vadd.f32 %v2299, %v2431
        %v2433 = vpop.f32.mrb[0].mxu0
        %2434 = vmatprep.mubr.bf16.mxu0 0
        %2435 = vmatmul.mubr.bf16.gmra.mrb[0].mxu0 %v2344
        %v2436 = vpop.f32.mrb[0].mxu0
        %v2437 = vadd.f32 %v2304, %v2436
        %v2438 = vpop.f32.mrb[0].mxu0
        %v2439 = vpop.f32.mrb[0].mxu0
        %v2440 = vadd.f32 %v2307, %v2439
        %v2441 = vpop.f32.mrb[0].mxu0
        %2442 = vdwg.mxu0
        %2443 = vrot.lane.b32.xlu0 %v1268, 64
        %v2444 = vpop.permute.xlu0 %2443
        %2445 = vrot.lane.b32.xlu0 %v1269, 64
        %v2446 = vpop.permute.xlu0 %2445
        %2447 = vrot.lane.b32.xlu0 %v1270, 64
        %v2448 = vpop.permute.xlu0 %2447
        %2449 = vrot.lane.b32.xlu0 %v1271, 64
        %v2450 = vpop.permute.xlu0 %2449
        %2451 = vrot.lane.b32.xlu0 %v1272, 64
        %v2452 = vpop.permute.xlu0 %2451
        %2453 = vrot.lane.b32.xlu0 %v1273, 64
        %v2454 = vpop.permute.xlu0 %2453
        %2455 = vrot.lane.b32.xlu0 %v1274, 64
        %v2456 = vpop.permute.xlu0 %2455
        %2457 = vrot.lane.b32.xlu0 %v1275, 64
        %v2458 = vpop.permute.xlu0 %2457
        %2459 = vrot.lane.b32.xlu0 %v1276, 64
        %v2460 = vpop.permute.xlu0 %2459
        %2461 = vrot.lane.b32.xlu0 %v1277, 64
        %v2462 = vpop.permute.xlu0 %2461
        %2463 = vrot.lane.b32.xlu0 %v1278, 64
        %v2464 = vpop.permute.xlu0 %2463
        %2465 = vrot.lane.b32.xlu0 %v1279, 64
        %v2466 = vpop.permute.xlu0 %2465
        %2467 = vrot.lane.b32.xlu0 %v1280, 64
        %v2468 = vpop.permute.xlu0 %2467
        %2469 = vrot.lane.b32.xlu0 %v1281, 64
        %v2470 = vpop.permute.xlu0 %2469
        %2471 = vrot.lane.b32.xlu0 %v1282, 64
        %v2472 = vpop.permute.xlu0 %2471
        %2473 = vrot.lane.b32.xlu0 %v1283, 64
        %v2474 = vpop.permute.xlu0 %2473
        %v2476 = vsel %vm1292, %v2444, 0
        %v2479 = vsel %vm1292, %v2446, 0
        %v2482 = vsel %vm1292, %v2448, 0
        %v2485 = vsel %vm1292, %v2450, 0
        %v2488 = vsel %vm1292, %v2452, 0
        %v2491 = vsel %vm1292, %v2454, 0
        %v2494 = vsel %vm1292, %v2456, 0
        %v2497 = vsel %vm1292, %v2458, 0
        %v2500 = vsel %vm1292, %v2460, 0
        %v2503 = vsel %vm1292, %v2462, 0
        %v2506 = vsel %vm1292, %v2464, 0
        %v2509 = vsel %vm1292, %v2466, 0
        %v2512 = vsel %vm1292, %v2468, 0
        %v2515 = vsel %vm1292, %v2470, 0
        %v2518 = vsel %vm1292, %v2472, 0
        %v2521 = vsel %vm1292, %v2474, 0
        %2523 = vmatprep.subr.bf16.mxu0 0
        %2524 = vmatpush1.bf16.xpose.msra.mxu0 %v2500
        %2525 = vmatprep.subr.bf16.mxu0 0
        %2526 = vmatpush1.bf16.xpose.msra.mxu0 %v2503
        %2527 = vmatprep.subr.bf16.mxu0 0
        %2528 = vmatpush1.bf16.xpose.msra.mxu0 %v2506
        %2529 = vmatprep.subr.bf16.mxu0 0
        %2530 = vmatpush1.bf16.xpose.msra.mxu0 %v2509
        %2531 = vmatprep.subr.bf16.mxu0 0
        %2532 = vmatpush1.bf16.xpose.msra.mxu0 %v2512
        %2533 = vmatprep.subr.bf16.mxu0 0
        %2534 = vmatpush1.bf16.xpose.msra.mxu0 %v2515
        %2535 = vmatprep.subr.bf16.mxu0 0
        %2536 = vmatpush1.bf16.xpose.msra.mxu0 %v2518
        %2537 = vmatprep.subr.bf16.mxu0 0
        %2538 = vmatpush1.bf16.xpose.msra.mxu0 %v2521
        %2539 = vmatprep.subr.bf16.mxu0 0
        %2540 = vmatpush1.bf16.xpose.msra.mxu0 0
        %2541 = vmatprep.subr.bf16.mxu0 0
        %2542 = vmatpush1.bf16.xpose.msra.mxu0 0
        %2543 = vmatprep.subr.bf16.mxu0 0
        %2544 = vmatpush1.bf16.xpose.msra.mxu0 0
        %2545 = vmatprep.subr.bf16.mxu0 0
        %2546 = vmatpush1.bf16.xpose.msra.mxu0 0
        %2547 = vmatprep.subr.bf16.mxu0 0
        %2548 = vmatpush1.bf16.xpose.msra.mxu0 0
        %2549 = vmatprep.subr.bf16.mxu0 0
        %2550 = vmatpush1.bf16.xpose.msra.mxu0 0
        %2551 = vmatprep.subr.bf16.mxu0 0
        %2552 = vmatpush1.bf16.xpose.msra.mxu0 0
        %2553 = vmatprep.subr.bf16.mxu0 0
        %2554 = vmatpush1.bf16.xpose.msra.mxu0 0
        %2555 = vmatprep.mubr.bf16.mxu0 0
        %2556 = vmatmul.mubr.bf16.gmra.mrb[0].mxu0 %v2476
        %v2557 = vpop.f32.mrb[0].mxu0
        %v2558 = vadd.f32 0.0, %v2557
        %v2559 = vpop.f32.mrb[0].mxu0
        %v2560 = vpop.f32.mrb[0].mxu0
        %v2561 = vadd.f32 0.0, %v2560
        %v2562 = vpop.f32.mrb[0].mxu0
        %2563 = vmatprep.mubr.bf16.mxu0 0
        %2564 = vmatmul.mubr.bf16.gmra.mrb[0].mxu0 %v2479
        %v2565 = vpop.f32.mrb[0].mxu0
        %v2566 = vadd.f32 0.0, %v2565
        %v2567 = vpop.f32.mrb[0].mxu0
        %v2568 = vpop.f32.mrb[0].mxu0
        %v2569 = vadd.f32 0.0, %v2568
        %v2570 = vpop.f32.mrb[0].mxu0
        %2571 = vmatprep.mubr.bf16.mxu0 0
        %2572 = vmatmul.mubr.bf16.gmra.mrb[0].mxu0 %v2482
        %v2573 = vpop.f32.mrb[0].mxu0
        %v2574 = vadd.f32 0.0, %v2573
        %v2575 = vpop.f32.mrb[0].mxu0
        %v2576 = vpop.f32.mrb[0].mxu0
        %v2577 = vadd.f32 0.0, %v2576
        %v2578 = vpop.f32.mrb[0].mxu0
        %2579 = vmatprep.mubr.bf16.mxu0 0
        %2580 = vmatmul.mubr.bf16.gmra.mrb[0].mxu0 %v2485
        %v2581 = vpop.f32.mrb[0].mxu0
        %v2582 = vadd.f32 0.0, %v2581
        %v2583 = vpop.f32.mrb[0].mxu0
        %v2584 = vpop.f32.mrb[0].mxu0
        %v2585 = vadd.f32 0.0, %v2584
        %v2586 = vpop.f32.mrb[0].mxu0
        %2587 = vmatprep.mubr.bf16.mxu0 0
        %2588 = vmatmul.mubr.bf16.gmra.mrb[0].mxu0 %v2488
        %v2589 = vpop.f32.mrb[0].mxu0
        %v2590 = vadd.f32 0.0, %v2589
        %v2591 = vpop.f32.mrb[0].mxu0
        %v2592 = vpop.f32.mrb[0].mxu0
        %v2593 = vadd.f32 0.0, %v2592
        %v2594 = vpop.f32.mrb[0].mxu0
        %2595 = vmatprep.mubr.bf16.mxu0 0
        %2596 = vmatmul.mubr.bf16.gmra.mrb[0].mxu0 %v2491
        %v2597 = vpop.f32.mrb[0].mxu0
        %v2598 = vadd.f32 0.0, %v2597
        %v2599 = vpop.f32.mrb[0].mxu0
        %v2600 = vpop.f32.mrb[0].mxu0
        %v2601 = vadd.f32 0.0, %v2600
        %v2602 = vpop.f32.mrb[0].mxu0
        %2603 = vmatprep.mubr.bf16.mxu0 0
        %2604 = vmatmul.mubr.bf16.gmra.mrb[0].mxu0 %v2494
        %v2605 = vpop.f32.mrb[0].mxu0
        %v2606 = vadd.f32 0.0, %v2605
        %v2607 = vpop.f32.mrb[0].mxu0
        %v2608 = vpop.f32.mrb[0].mxu0
        %v2609 = vadd.f32 0.0, %v2608
        %v2610 = vpop.f32.mrb[0].mxu0
        %2611 = vmatprep.mubr.bf16.mxu0 0
        %2612 = vmatmul.mubr.bf16.gmra.mrb[0].mxu0 %v2497
        %v2613 = vpop.f32.mrb[0].mxu0
        %v2614 = vadd.f32 0.0, %v2613
        %v2615 = vpop.f32.mrb[0].mxu0
        %v2616 = vpop.f32.mrb[0].mxu0
        %v2617 = vadd.f32 0.0, %v2616
        %v2618 = vpop.f32.mrb[0].mxu0
        %2619 = vdwg.mxu0
        %2620 = vmax.xlane.f32.xlu0 %v2558
        %v2621 = vpop.xlane.xlu0 %2620
        %2622 = vmax.xlane.f32.xlu0 %v2561
        %v2623 = vpop.xlane.xlu0 %2622
        %2624 = vmax.xlane.f32.xlu0 %v2566
        %v2625 = vpop.xlane.xlu0 %2624
        %2626 = vmax.xlane.f32.xlu0 %v2569
        %v2627 = vpop.xlane.xlu0 %2626
        %2628 = vmax.xlane.f32.xlu0 %v2574
        %v2629 = vpop.xlane.xlu0 %2628
        %2630 = vmax.xlane.f32.xlu0 %v2577
        %v2631 = vpop.xlane.xlu0 %2630
        %2632 = vmax.xlane.f32.xlu0 %v2582
        %v2633 = vpop.xlane.xlu0 %2632
        %2634 = vmax.xlane.f32.xlu0 %v2585
        %v2635 = vpop.xlane.xlu0 %2634
        %2636 = vmax.xlane.f32.xlu0 %v2590
        %v2637 = vpop.xlane.xlu0 %2636
        %2638 = vmax.xlane.f32.xlu0 %v2593
        %v2639 = vpop.xlane.xlu0 %2638
        %2640 = vmax.xlane.f32.xlu0 %v2598
        %v2641 = vpop.xlane.xlu0 %2640
        %2642 = vmax.xlane.f32.xlu0 %v2601
        %v2643 = vpop.xlane.xlu0 %2642
        %2644 = vmax.xlane.f32.xlu0 %v2606
        %v2645 = vpop.xlane.xlu0 %2644
        %2646 = vmax.xlane.f32.xlu0 %v2609
        %v2647 = vpop.xlane.xlu0 %2646
        %2648 = vmax.xlane.f32.xlu0 %v2614
        %v2649 = vpop.xlane.xlu0 %2648
        %2650 = vmax.xlane.f32.xlu0 %v2617
        %v2651 = vpop.xlane.xlu0 %2650
        %v2652 = vsub.f32 %v2558, %v2621
        %v2653 = vsub.f32 %v2561, %v2623
        %v2654 = vsub.f32 %v2566, %v2625
        %v2655 = vsub.f32 %v2569, %v2627
        %v2656 = vsub.f32 %v2574, %v2629
        %v2657 = vsub.f32 %v2577, %v2631
        %v2658 = vsub.f32 %v2582, %v2633
        %v2659 = vsub.f32 %v2585, %v2635
        %v2660 = vsub.f32 %v2590, %v2637
        %v2661 = vsub.f32 %v2593, %v2639
        %v2662 = vsub.f32 %v2598, %v2641
        %v2663 = vsub.f32 %v2601, %v2643
        %v2664 = vsub.f32 %v2606, %v2645
        %v2665 = vsub.f32 %v2609, %v2647
        %v2666 = vsub.f32 %v2614, %v2649
        %v2667 = vsub.f32 %v2617, %v2651
        %v2668 = vmul.f32 %v2652, 1.442695
        %v2669 = vpow.pop %v2668
        %v2670 = vmul.f32 %v2653, 1.442695
        %v2671 = vpow.pop %v2670
        %v2672 = vmul.f32 %v2654, 1.442695
        %v2673 = vpow.pop %v2672
        %v2674 = vmul.f32 %v2655, 1.442695
        %v2675 = vpow.pop %v2674
        %v2676 = vmul.f32 %v2656, 1.442695
        %v2677 = vpow.pop %v2676
        %v2678 = vmul.f32 %v2657, 1.442695
        %v2679 = vpow.pop %v2678
        %v2680 = vmul.f32 %v2658, 1.442695
        %v2681 = vpow.pop %v2680
        %v2682 = vmul.f32 %v2659, 1.442695
        %v2683 = vpow.pop %v2682
        %v2684 = vmul.f32 %v2660, 1.442695
        %v2685 = vpow.pop %v2684
        %v2686 = vmul.f32 %v2661, 1.442695
        %v2687 = vpow.pop %v2686
        %v2688 = vmul.f32 %v2662, 1.442695
        %v2689 = vpow.pop %v2688
        %v2690 = vmul.f32 %v2663, 1.442695
        %v2691 = vpow.pop %v2690
        %v2692 = vmul.f32 %v2664, 1.442695
        %v2693 = vpow.pop %v2692
        %v2694 = vmul.f32 %v2665, 1.442695
        %v2695 = vpow.pop %v2694
        %v2696 = vmul.f32 %v2666, 1.442695
        %v2697 = vpow.pop %v2696
        %v2698 = vmul.f32 %v2667, 1.442695
        %v2699 = vpow.pop %v2698
        %2700 = vadd.xlane.f32.xlu0 %v2669
        %v2701 = vpop.xlane.xlu0 %2700
        %2702 = vadd.xlane.f32.xlu0 %v2671
        %v2703 = vpop.xlane.xlu0 %2702
        %2704 = vadd.xlane.f32.xlu0 %v2673
        %v2705 = vpop.xlane.xlu0 %2704
        %2706 = vadd.xlane.f32.xlu0 %v2675
        %v2707 = vpop.xlane.xlu0 %2706
        %2708 = vadd.xlane.f32.xlu0 %v2677
        %v2709 = vpop.xlane.xlu0 %2708
        %2710 = vadd.xlane.f32.xlu0 %v2679
        %v2711 = vpop.xlane.xlu0 %2710
        %2712 = vadd.xlane.f32.xlu0 %v2681
        %v2713 = vpop.xlane.xlu0 %2712
        %2714 = vadd.xlane.f32.xlu0 %v2683
        %v2715 = vpop.xlane.xlu0 %2714
        %2716 = vadd.xlane.f32.xlu0 %v2685
        %v2717 = vpop.xlane.xlu0 %2716
        %2718 = vadd.xlane.f32.xlu0 %v2687
        %v2719 = vpop.xlane.xlu0 %2718
        %2720 = vadd.xlane.f32.xlu0 %v2689
        %v2721 = vpop.xlane.xlu0 %2720
        %2722 = vadd.xlane.f32.xlu0 %v2691
        %v2723 = vpop.xlane.xlu0 %2722
        %2724 = vadd.xlane.f32.xlu0 %v2693
        %v2725 = vpop.xlane.xlu0 %2724
        %2726 = vadd.xlane.f32.xlu0 %v2695
        %v2727 = vpop.xlane.xlu0 %2726
        %2728 = vadd.xlane.f32.xlu0 %v2697
        %v2729 = vpop.xlane.xlu0 %2728
        %2730 = vadd.xlane.f32.xlu0 %v2699
        %v2731 = vpop.xlane.xlu0 %2730
        %v2732 = vpack.c.bf16 %v2671, %v2669
        %v2733 = vpack.c.bf16 %v2675, %v2673
        %v2734 = vpack.c.bf16 %v2679, %v2677
        %v2735 = vpack.c.bf16 %v2683, %v2681
        %v2736 = vpack.c.bf16 %v2687, %v2685
        %v2737 = vpack.c.bf16 %v2691, %v2689
        %v2738 = vpack.c.bf16 %v2695, %v2693
        %v2739 = vpack.c.bf16 %v2699, %v2697
        %2740 = vrot.lane.b32.xlu0 %v1284, 64
        %v2741 = vpop.permute.xlu0 %2740
        %2742 = vrot.lane.b32.xlu0 %v1285, 64
        %v2743 = vpop.permute.xlu0 %2742
        %2744 = vrot.lane.b32.xlu0 %v1286, 64
        %v2745 = vpop.permute.xlu0 %2744
        %2746 = vrot.lane.b32.xlu0 %v1287, 64
        %v2747 = vpop.permute.xlu0 %2746
        %2748 = vrot.lane.b32.xlu0 %v1288, 64
        %v2749 = vpop.permute.xlu0 %2748
        %2750 = vrot.lane.b32.xlu0 %v1289, 64
        %v2751 = vpop.permute.xlu0 %2750
        %2752 = vrot.lane.b32.xlu0 %v1290, 64
        %v2753 = vpop.permute.xlu0 %2752
        %2754 = vrot.lane.b32.xlu0 %v1291, 64
        %v2755 = vpop.permute.xlu0 %2754
        %2764 = vmatprep.subr.bf16.mxu0 0
        %2765 = vmatpush1.bf16.msra.mxu0 %v2741
        %2766 = vmatprep.subr.bf16.mxu0 0
        %2767 = vmatpush1.bf16.msra.mxu0 %v2743
        %2768 = vmatprep.subr.bf16.mxu0 0
        %2769 = vmatpush1.bf16.msra.mxu0 %v2745
        %2770 = vmatprep.subr.bf16.mxu0 0
        %2771 = vmatpush1.bf16.msra.mxu0 %v2747
        %2772 = vmatprep.subr.bf16.mxu0 0
        %2773 = vmatpush1.bf16.msra.mxu0 %v2749
        %2774 = vmatprep.subr.bf16.mxu0 0
        %2775 = vmatpush1.bf16.msra.mxu0 %v2751
        %2776 = vmatprep.subr.bf16.mxu0 0
        %2777 = vmatpush1.bf16.msra.mxu0 %v2753
        %2778 = vmatprep.subr.bf16.mxu0 0
        %2779 = vmatpush1.bf16.msra.mxu0 %v2755
        %2780 = vmatprep.subr.bf16.mxu0 0
        %2781 = vmatpush1.bf16.msra.mxu0 0
        %2782 = vmatprep.subr.bf16.mxu0 0
        %2783 = vmatpush1.bf16.msra.mxu0 0
        %2784 = vmatprep.subr.bf16.mxu0 0
        %2785 = vmatpush1.bf16.msra.mxu0 0
        %2786 = vmatprep.subr.bf16.mxu0 0
        %2787 = vmatpush1.bf16.msra.mxu0 0
        %2788 = vmatprep.subr.bf16.mxu0 0
        %2789 = vmatpush1.bf16.msra.mxu0 0
        %2790 = vmatprep.subr.bf16.mxu0 0
        %2791 = vmatpush1.bf16.msra.mxu0 0
        %2792 = vmatprep.subr.bf16.mxu0 0
        %2793 = vmatpush1.bf16.msra.mxu0 0
        %2794 = vmatprep.subr.bf16.mxu0 0
        %2795 = vmatpush1.bf16.msra.mxu0 0
        %2796 = vmatprep.mubr.bf16.mxu0 0
        %2797 = vmatmul.mubr.bf16.gmra.mrb[0].mxu0 %v2732
        %v2798 = vpop.f32.mrb[0].mxu0
        %v2799 = vadd.f32 0.0, %v2798
        %v2800 = vpop.f32.mrb[0].mxu0
        %v2801 = vpop.f32.mrb[0].mxu0
        %v2802 = vadd.f32 0.0, %v2801
        %v2803 = vpop.f32.mrb[0].mxu0
        %2804 = vmatprep.mubr.bf16.mxu0 0
        %2805 = vmatmul.mubr.bf16.gmra.mrb[0].mxu0 %v2733
        %v2806 = vpop.f32.mrb[0].mxu0
        %v2807 = vadd.f32 0.0, %v2806
        %v2808 = vpop.f32.mrb[0].mxu0
        %v2809 = vpop.f32.mrb[0].mxu0
        %v2810 = vadd.f32 0.0, %v2809
        %v2811 = vpop.f32.mrb[0].mxu0
        %2812 = vmatprep.mubr.bf16.mxu0 0
        %2813 = vmatmul.mubr.bf16.gmra.mrb[0].mxu0 %v2734
        %v2814 = vpop.f32.mrb[0].mxu0
        %v2815 = vadd.f32 0.0, %v2814
        %v2816 = vpop.f32.mrb[0].mxu0
        %v2817 = vpop.f32.mrb[0].mxu0
        %v2818 = vadd.f32 0.0, %v2817
        %v2819 = vpop.f32.mrb[0].mxu0
        %2820 = vmatprep.mubr.bf16.mxu0 0
        %2821 = vmatmul.mubr.bf16.gmra.mrb[0].mxu0 %v2735
        %v2822 = vpop.f32.mrb[0].mxu0
        %v2823 = vadd.f32 0.0, %v2822
        %v2824 = vpop.f32.mrb[0].mxu0
        %v2825 = vpop.f32.mrb[0].mxu0
        %v2826 = vadd.f32 0.0, %v2825
        %v2827 = vpop.f32.mrb[0].mxu0
        %2828 = vmatprep.mubr.bf16.mxu0 0
        %2829 = vmatmul.mubr.bf16.gmra.mrb[0].mxu0 %v2736
        %v2830 = vpop.f32.mrb[0].mxu0
        %v2831 = vadd.f32 0.0, %v2830
        %v2832 = vpop.f32.mrb[0].mxu0
        %v2833 = vpop.f32.mrb[0].mxu0
        %v2834 = vadd.f32 0.0, %v2833
        %v2835 = vpop.f32.mrb[0].mxu0
        %2836 = vmatprep.mubr.bf16.mxu0 0
        %2837 = vmatmul.mubr.bf16.gmra.mrb[0].mxu0 %v2737
        %v2838 = vpop.f32.mrb[0].mxu0
        %v2839 = vadd.f32 0.0, %v2838
        %v2840 = vpop.f32.mrb[0].mxu0
        %v2841 = vpop.f32.mrb[0].mxu0
        %v2842 = vadd.f32 0.0, %v2841
        %v2843 = vpop.f32.mrb[0].mxu0
        %2844 = vmatprep.mubr.bf16.mxu0 0
        %2845 = vmatmul.mubr.bf16.gmra.mrb[0].mxu0 %v2738
        %v2846 = vpop.f32.mrb[0].mxu0
        %v2847 = vadd.f32 0.0, %v2846
        %v2848 = vpop.f32.mrb[0].mxu0
        %v2849 = vpop.f32.mrb[0].mxu0
        %v2850 = vadd.f32 0.0, %v2849
        %v2851 = vpop.f32.mrb[0].mxu0
        %2852 = vmatprep.mubr.bf16.mxu0 0
        %2853 = vmatmul.mubr.bf16.gmra.mrb[0].mxu0 %v2739
        %v2854 = vpop.f32.mrb[0].mxu0
        %v2855 = vadd.f32 0.0, %v2854
        %v2856 = vpop.f32.mrb[0].mxu0
        %v2857 = vpop.f32.mrb[0].mxu0
        %v2858 = vadd.f32 0.0, %v2857
        %v2859 = vpop.f32.mrb[0].mxu0
        %2860 = vdwg.mxu0
        %v2861 = vrcp.pop %v2701
        %v2862 = vrcp.pop %v2703
        %v2863 = vrcp.pop %v2705
        %v2864 = vrcp.pop %v2707
        %v2865 = vrcp.pop %v2709
        %v2866 = vrcp.pop %v2711
        %v2867 = vrcp.pop %v2713
        %v2868 = vrcp.pop %v2715
        %v2869 = vrcp.pop %v2717
        %v2870 = vrcp.pop %v2719
        %v2871 = vrcp.pop %v2721
        %v2872 = vrcp.pop %v2723
        %v2873 = vrcp.pop %v2725
        %v2874 = vrcp.pop %v2727
        %v2875 = vrcp.pop %v2729
        %v2876 = vrcp.pop %v2731
        %v2877 = vmul.f32 %v2799, %v2861
        %v2878 = vmul.f32 %v2802, %v2862
        %v2879 = vmul.f32 %v2807, %v2863
        %v2880 = vmul.f32 %v2810, %v2864
        %v2881 = vmul.f32 %v2815, %v2865
        %v2882 = vmul.f32 %v2818, %v2866
        %v2883 = vmul.f32 %v2823, %v2867
        %v2884 = vmul.f32 %v2826, %v2868
        %v2885 = vmul.f32 %v2831, %v2869
        %v2886 = vmul.f32 %v2834, %v2870
        %v2887 = vmul.f32 %v2839, %v2871
        %v2888 = vmul.f32 %v2842, %v2872
        %v2889 = vmul.f32 %v2847, %v2873
        %v2890 = vmul.f32 %v2850, %v2874
        %v2891 = vmul.f32 %v2855, %v2875
        %v2892 = vmul.f32 %v2858, %v2876
        %v2893 = vpack.c.bf16 %v2878, %v2877
        %v2894 = vpack.c.bf16 %v2880, %v2879
        %v2895 = vpack.c.bf16 %v2882, %v2881
        %v2896 = vpack.c.bf16 %v2884, %v2883
        %v2897 = vpack.c.bf16 %v2886, %v2885
        %v2898 = vpack.c.bf16 %v2888, %v2887
        %v2899 = vpack.c.bf16 %v2890, %v2889
        %v2900 = vpack.c.bf16 %v2892, %v2891
        %v2905 = vunpack.c.l.b16 %v1260
        %v2906 = vunpack.c.l.b16 %v1261
        %v2907 = vunpack.c.l.b16 %v1262
        %v2908 = vunpack.c.l.b16 %v1263
        %v2909 = vpack.c.b16 %v2906, %v2905
        %v2910 = vpack.c.b16 %v2908, %v2907
        %v2914 = vsel %vm1292, %v2893, 0
        %v2917 = vsel %vm1292, %v2894, 0
        %v2920 = vsel %vm1292, %v2895, 0
        %v2923 = vsel %vm1292, %v2896, 0
        %v2926 = vsel %vm1292, %v2897, 0
        %v2929 = vsel %vm1292, %v2898, 0
        %v2932 = vsel %vm1292, %v2899, 0
        %v2935 = vsel %vm1292, %v2900, 0
        %2937 = vmatprep.subr.bf16.mxu0 0
        %2938 = vmatpush1.bf16.msra.mxu0 %v2909
        %2939 = vmatprep.subr.bf16.mxu0 0
        %2940 = vmatpush1.bf16.msra.mxu0 %v2910
        %2941 = vmatprep.subr.bf16.mxu0 0
        %2942 = vmatpush1.bf16.msra.mxu0 0
        %2943 = vmatprep.subr.bf16.mxu0 0
        %2944 = vmatpush1.bf16.msra.mxu0 0
        %2945 = vmatprep.subr.bf16.mxu0 0
        %2946 = vmatpush1.bf16.msra.mxu0 0
        %2947 = vmatprep.subr.bf16.mxu0 0
        %2948 = vmatpush1.bf16.msra.mxu0 0
        %2949 = vmatprep.subr.bf16.mxu0 0
        %2950 = vmatpush1.bf16.msra.mxu0 0
        %2951 = vmatprep.subr.bf16.mxu0 0
        %2952 = vmatpush1.bf16.msra.mxu0 0
        %2953 = vmatprep.subr.bf16.mxu0 0
        %2954 = vmatpush1.bf16.msra.mxu0 0
        %2955 = vmatprep.subr.bf16.mxu0 0
        %2956 = vmatpush1.bf16.msra.mxu0 0
        %2957 = vmatprep.subr.bf16.mxu0 0
        %2958 = vmatpush1.bf16.msra.mxu0 0
        %2959 = vmatprep.subr.bf16.mxu0 0
        %2960 = vmatpush1.bf16.msra.mxu0 0
        %2961 = vmatprep.subr.bf16.mxu0 0
        %2962 = vmatpush1.bf16.msra.mxu0 0
        %2963 = vmatprep.subr.bf16.mxu0 0
        %2964 = vmatpush1.bf16.msra.mxu0 0
        %2965 = vmatprep.subr.bf16.mxu0 0
        %2966 = vmatpush1.bf16.msra.mxu0 0
        %2967 = vmatprep.subr.bf16.mxu0 0
        %2968 = vmatpush1.bf16.msra.mxu0 0
        %2969 = vmatprep.mubr.bf16.mxu0 0
        %2970 = vmatmul.mubr.bf16.gmra.mrb[0].mxu0 %v2914
        %v2971 = vpop.f32.mrb[0].mxu0
        %v2972 = vadd.f32 0.0, %v2971
        %v2973 = vpop.f32.mrb[0].mxu0
        %v2974 = vpop.f32.mrb[0].mxu0
        %v2975 = vadd.f32 0.0, %v2974
        %v2976 = vpop.f32.mrb[0].mxu0
        %2977 = vmatprep.mubr.bf16.mxu0 0
        %2978 = vmatmul.mubr.bf16.gmra.mrb[0].mxu0 %v2917
        %v2979 = vpop.f32.mrb[0].mxu0
        %v2980 = vadd.f32 0.0, %v2979
        %v2981 = vpop.f32.mrb[0].mxu0
        %v2982 = vpop.f32.mrb[0].mxu0
        %v2983 = vadd.f32 0.0, %v2982
        %v2984 = vpop.f32.mrb[0].mxu0
        %2985 = vmatprep.mubr.bf16.mxu0 0
        %2986 = vmatmul.mubr.bf16.gmra.mrb[0].mxu0 %v2920
        %v2987 = vpop.f32.mrb[0].mxu0
        %v2988 = vadd.f32 0.0, %v2987
        %v2989 = vpop.f32.mrb[0].mxu0
        %v2990 = vpop.f32.mrb[0].mxu0
        %v2991 = vadd.f32 0.0, %v2990
        %v2992 = vpop.f32.mrb[0].mxu0
        %2993 = vmatprep.mubr.bf16.mxu0 0
        %2994 = vmatmul.mubr.bf16.gmra.mrb[0].mxu0 %v2923
        %v2995 = vpop.f32.mrb[0].mxu0
        %v2996 = vadd.f32 0.0, %v2995
        %v2997 = vpop.f32.mrb[0].mxu0
        %v2998 = vpop.f32.mrb[0].mxu0
        %v2999 = vadd.f32 0.0, %v2998
        %v3000 = vpop.f32.mrb[0].mxu0
        %3001 = vmatprep.mubr.bf16.mxu0 0
        %3002 = vmatmul.mubr.bf16.gmra.mrb[0].mxu0 %v2926
        %v3003 = vpop.f32.mrb[0].mxu0
        %v3004 = vadd.f32 0.0, %v3003
        %v3005 = vpop.f32.mrb[0].mxu0
        %v3006 = vpop.f32.mrb[0].mxu0
        %v3007 = vadd.f32 0.0, %v3006
        %v3008 = vpop.f32.mrb[0].mxu0
        %3009 = vmatprep.mubr.bf16.mxu0 0
        %3010 = vmatmul.mubr.bf16.gmra.mrb[0].mxu0 %v2929
        %v3011 = vpop.f32.mrb[0].mxu0
        %v3012 = vadd.f32 0.0, %v3011
        %v3013 = vpop.f32.mrb[0].mxu0
        %v3014 = vpop.f32.mrb[0].mxu0
        %v3015 = vadd.f32 0.0, %v3014
        %v3016 = vpop.f32.mrb[0].mxu0
        %3017 = vmatprep.mubr.bf16.mxu0 0
        %3018 = vmatmul.mubr.bf16.gmra.mrb[0].mxu0 %v2932
        %v3019 = vpop.f32.mrb[0].mxu0
        %v3020 = vadd.f32 0.0, %v3019
        %v3021 = vpop.f32.mrb[0].mxu0
        %v3022 = vpop.f32.mrb[0].mxu0
        %v3023 = vadd.f32 0.0, %v3022
        %v3024 = vpop.f32.mrb[0].mxu0
        %3025 = vmatprep.mubr.bf16.mxu0 0
        %3026 = vmatmul.mubr.bf16.gmra.mrb[0].mxu0 %v2935
        %v3027 = vpop.f32.mrb[0].mxu0
        %v3028 = vadd.f32 0.0, %v3027
        %v3029 = vpop.f32.mrb[0].mxu0
        %v3030 = vpop.f32.mrb[0].mxu0
        %v3031 = vadd.f32 0.0, %v3030
        %v3032 = vpop.f32.mrb[0].mxu0
        %3033 = vdwg.mxu0
        %v3034 = vadd.f32 %v2381, %v2972
        %v3035 = vadd.f32 %v2384, %v2975
        %v3036 = vadd.f32 %v2389, %v2980
        %v3037 = vadd.f32 %v2392, %v2983
        %v3038 = vadd.f32 %v2397, %v2988
        %v3039 = vadd.f32 %v2400, %v2991
        %v3040 = vadd.f32 %v2405, %v2996
        %v3041 = vadd.f32 %v2408, %v2999
        %v3042 = vadd.f32 %v2413, %v3004
        %v3043 = vadd.f32 %v2416, %v3007
        %v3044 = vadd.f32 %v2421, %v3012
        %v3045 = vadd.f32 %v2424, %v3015
        %v3046 = vadd.f32 %v2429, %v3020
        %v3047 = vadd.f32 %v2432, %v3023
        %v3048 = vadd.f32 %v2437, %v3028
        %v3049 = vadd.f32 %v2440, %v3031
        %3050 = vrot.lane.b32.xlu0 %v1268, 32
        %v3051 = vpop.permute.xlu0 %3050
        %3052 = vrot.lane.b32.xlu0 %v1269, 32
        %v3053 = vpop.permute.xlu0 %3052
        %3054 = vrot.lane.b32.xlu0 %v1270, 32
        %v3055 = vpop.permute.xlu0 %3054
        %3056 = vrot.lane.b32.xlu0 %v1271, 32
        %v3057 = vpop.permute.xlu0 %3056
        %3058 = vrot.lane.b32.xlu0 %v1272, 32
        %v3059 = vpop.permute.xlu0 %3058
        %3060 = vrot.lane.b32.xlu0 %v1273, 32
        %v3061 = vpop.permute.xlu0 %3060
        %3062 = vrot.lane.b32.xlu0 %v1274, 32
        %v3063 = vpop.permute.xlu0 %3062
        %3064 = vrot.lane.b32.xlu0 %v1275, 32
        %v3065 = vpop.permute.xlu0 %3064
        %3066 = vrot.lane.b32.xlu0 %v1276, 32
        %v3067 = vpop.permute.xlu0 %3066
        %3068 = vrot.lane.b32.xlu0 %v1277, 32
        %v3069 = vpop.permute.xlu0 %3068
        %3070 = vrot.lane.b32.xlu0 %v1278, 32
        %v3071 = vpop.permute.xlu0 %3070
        %3072 = vrot.lane.b32.xlu0 %v1279, 32
        %v3073 = vpop.permute.xlu0 %3072
        %3074 = vrot.lane.b32.xlu0 %v1280, 32
        %v3075 = vpop.permute.xlu0 %3074
        %3076 = vrot.lane.b32.xlu0 %v1281, 32
        %v3077 = vpop.permute.xlu0 %3076
        %3078 = vrot.lane.b32.xlu0 %v1282, 32
        %v3079 = vpop.permute.xlu0 %3078
        %3080 = vrot.lane.b32.xlu0 %v1283, 32
        %v3081 = vpop.permute.xlu0 %3080
        %v3083 = vsel %vm1292, %v3051, 0
        %v3086 = vsel %vm1292, %v3053, 0
        %v3089 = vsel %vm1292, %v3055, 0
        %v3092 = vsel %vm1292, %v3057, 0
        %v3095 = vsel %vm1292, %v3059, 0
        %v3098 = vsel %vm1292, %v3061, 0
        %v3101 = vsel %vm1292, %v3063, 0
        %v3104 = vsel %vm1292, %v3065, 0
        %v3107 = vsel %vm1292, %v3067, 0
        %v3110 = vsel %vm1292, %v3069, 0
        %v3113 = vsel %vm1292, %v3071, 0
        %v3116 = vsel %vm1292, %v3073, 0
        %v3119 = vsel %vm1292, %v3075, 0
        %v3122 = vsel %vm1292, %v3077, 0
        %v3125 = vsel %vm1292, %v3079, 0
        %v3128 = vsel %vm1292, %v3081, 0
        %3130 = vmatprep.subr.bf16.mxu0 0
        %3131 = vmatpush1.bf16.xpose.msra.mxu0 %v3107
        %3132 = vmatprep.subr.bf16.mxu0 0
        %3133 = vmatpush1.bf16.xpose.msra.mxu0 %v3110
        %3134 = vmatprep.subr.bf16.mxu0 0
        %3135 = vmatpush1.bf16.xpose.msra.mxu0 %v3113
        %3136 = vmatprep.subr.bf16.mxu0 0
        %3137 = vmatpush1.bf16.xpose.msra.mxu0 %v3116
        %3138 = vmatprep.subr.bf16.mxu0 0
        %3139 = vmatpush1.bf16.xpose.msra.mxu0 %v3119
        %3140 = vmatprep.subr.bf16.mxu0 0
        %3141 = vmatpush1.bf16.xpose.msra.mxu0 %v3122
        %3142 = vmatprep.subr.bf16.mxu0 0
        %3143 = vmatpush1.bf16.xpose.msra.mxu0 %v3125
        %3144 = vmatprep.subr.bf16.mxu0 0
        %3145 = vmatpush1.bf16.xpose.msra.mxu0 %v3128
        %3146 = vmatprep.subr.bf16.mxu0 0
        %3147 = vmatpush1.bf16.xpose.msra.mxu0 0
        %3148 = vmatprep.subr.bf16.mxu0 0
        %3149 = vmatpush1.bf16.xpose.msra.mxu0 0
        %3150 = vmatprep.subr.bf16.mxu0 0
        %3151 = vmatpush1.bf16.xpose.msra.mxu0 0
        %3152 = vmatprep.subr.bf16.mxu0 0
        %3153 = vmatpush1.bf16.xpose.msra.mxu0 0
        %3154 = vmatprep.subr.bf16.mxu0 0
        %3155 = vmatpush1.bf16.xpose.msra.mxu0 0
        %3156 = vmatprep.subr.bf16.mxu0 0
        %3157 = vmatpush1.bf16.xpose.msra.mxu0 0
        %3158 = vmatprep.subr.bf16.mxu0 0
        %3159 = vmatpush1.bf16.xpose.msra.mxu0 0
        %3160 = vmatprep.subr.bf16.mxu0 0
        %3161 = vmatpush1.bf16.xpose.msra.mxu0 0
        %3162 = vmatprep.mubr.bf16.mxu0 0
        %3163 = vmatmul.mubr.bf16.gmra.mrb[0].mxu0 %v3083
        %v3164 = vpop.f32.mrb[0].mxu0
        %v3165 = vadd.f32 0.0, %v3164
        %v3166 = vpop.f32.mrb[0].mxu0
        %v3167 = vpop.f32.mrb[0].mxu0
        %v3168 = vadd.f32 0.0, %v3167
        %v3169 = vpop.f32.mrb[0].mxu0
        %3170 = vmatprep.mubr.bf16.mxu0 0
        %3171 = vmatmul.mubr.bf16.gmra.mrb[0].mxu0 %v3086
        %v3172 = vpop.f32.mrb[0].mxu0
        %v3173 = vadd.f32 0.0, %v3172
        %v3174 = vpop.f32.mrb[0].mxu0
        %v3175 = vpop.f32.mrb[0].mxu0
        %v3176 = vadd.f32 0.0, %v3175
        %v3177 = vpop.f32.mrb[0].mxu0
        %3178 = vmatprep.mubr.bf16.mxu0 0
        %3179 = vmatmul.mubr.bf16.gmra.mrb[0].mxu0 %v3089
        %v3180 = vpop.f32.mrb[0].mxu0
        %v3181 = vadd.f32 0.0, %v3180
        %v3182 = vpop.f32.mrb[0].mxu0
        %v3183 = vpop.f32.mrb[0].mxu0
        %v3184 = vadd.f32 0.0, %v3183
        %v3185 = vpop.f32.mrb[0].mxu0
        %3186 = vmatprep.mubr.bf16.mxu0 0
        %3187 = vmatmul.mubr.bf16.gmra.mrb[0].mxu0 %v3092
        %v3188 = vpop.f32.mrb[0].mxu0
        %v3189 = vadd.f32 0.0, %v3188
        %v3190 = vpop.f32.mrb[0].mxu0
        %v3191 = vpop.f32.mrb[0].mxu0
        %v3192 = vadd.f32 0.0, %v3191
        %v3193 = vpop.f32.mrb[0].mxu0
        %3194 = vmatprep.mubr.bf16.mxu0 0
        %3195 = vmatmul.mubr.bf16.gmra.mrb[0].mxu0 %v3095
        %v3196 = vpop.f32.mrb[0].mxu0
        %v3197 = vadd.f32 0.0, %v3196
        %v3198 = vpop.f32.mrb[0].mxu0
        %v3199 = vpop.f32.mrb[0].mxu0
        %v3200 = vadd.f32 0.0, %v3199
        %v3201 = vpop.f32.mrb[0].mxu0
        %3202 = vmatprep.mubr.bf16.mxu0 0
        %3203 = vmatmul.mubr.bf16.gmra.mrb[0].mxu0 %v3098
        %v3204 = vpop.f32.mrb[0].mxu0
        %v3205 = vadd.f32 0.0, %v3204
        %v3206 = vpop.f32.mrb[0].mxu0
        %v3207 = vpop.f32.mrb[0].mxu0
        %v3208 = vadd.f32 0.0, %v3207
        %v3209 = vpop.f32.mrb[0].mxu0
        %3210 = vmatprep.mubr.bf16.mxu0 0
        %3211 = vmatmul.mubr.bf16.gmra.mrb[0].mxu0 %v3101
        %v3212 = vpop.f32.mrb[0].mxu0
        %v3213 = vadd.f32 0.0, %v3212
        %v3214 = vpop.f32.mrb[0].mxu0
        %v3215 = vpop.f32.mrb[0].mxu0
        %v3216 = vadd.f32 0.0, %v3215
        %v3217 = vpop.f32.mrb[0].mxu0
        %3218 = vmatprep.mubr.bf16.mxu0 0
        %3219 = vmatmul.mubr.bf16.gmra.mrb[0].mxu0 %v3104
        %v3220 = vpop.f32.mrb[0].mxu0
        %v3221 = vadd.f32 0.0, %v3220
        %v3222 = vpop.f32.mrb[0].mxu0
        %v3223 = vpop.f32.mrb[0].mxu0
        %v3224 = vadd.f32 0.0, %v3223
        %v3225 = vpop.f32.mrb[0].mxu0
        %3226 = vdwg.mxu0
        %3227 = vmax.xlane.f32.xlu0 %v3165
        %v3228 = vpop.xlane.xlu0 %3227
        %3229 = vmax.xlane.f32.xlu0 %v3168
        %v3230 = vpop.xlane.xlu0 %3229
        %3231 = vmax.xlane.f32.xlu0 %v3173
        %v3232 = vpop.xlane.xlu0 %3231
        %3233 = vmax.xlane.f32.xlu0 %v3176
        %v3234 = vpop.xlane.xlu0 %3233
        %3235 = vmax.xlane.f32.xlu0 %v3181
        %v3236 = vpop.xlane.xlu0 %3235
        %3237 = vmax.xlane.f32.xlu0 %v3184
        %v3238 = vpop.xlane.xlu0 %3237
        %3239 = vmax.xlane.f32.xlu0 %v3189
        %v3240 = vpop.xlane.xlu0 %3239
        %3241 = vmax.xlane.f32.xlu0 %v3192
        %v3242 = vpop.xlane.xlu0 %3241
        %3243 = vmax.xlane.f32.xlu0 %v3197
        %v3244 = vpop.xlane.xlu0 %3243
        %3245 = vmax.xlane.f32.xlu0 %v3200
        %v3246 = vpop.xlane.xlu0 %3245
        %3247 = vmax.xlane.f32.xlu0 %v3205
        %v3248 = vpop.xlane.xlu0 %3247
        %3249 = vmax.xlane.f32.xlu0 %v3208
        %v3250 = vpop.xlane.xlu0 %3249
        %3251 = vmax.xlane.f32.xlu0 %v3213
        %v3252 = vpop.xlane.xlu0 %3251
        %3253 = vmax.xlane.f32.xlu0 %v3216
        %v3254 = vpop.xlane.xlu0 %3253
        %3255 = vmax.xlane.f32.xlu0 %v3221
        %v3256 = vpop.xlane.xlu0 %3255
        %3257 = vmax.xlane.f32.xlu0 %v3224
        %v3258 = vpop.xlane.xlu0 %3257
        %v3259 = vsub.f32 %v3165, %v3228
        %v3260 = vsub.f32 %v3168, %v3230
        %v3261 = vsub.f32 %v3173, %v3232
        %v3262 = vsub.f32 %v3176, %v3234
        %v3263 = vsub.f32 %v3181, %v3236
        %v3264 = vsub.f32 %v3184, %v3238
        %v3265 = vsub.f32 %v3189, %v3240
        %v3266 = vsub.f32 %v3192, %v3242
        %v3267 = vsub.f32 %v3197, %v3244
        %v3268 = vsub.f32 %v3200, %v3246
        %v3269 = vsub.f32 %v3205, %v3248
        %v3270 = vsub.f32 %v3208, %v3250
        %v3271 = vsub.f32 %v3213, %v3252
        %v3272 = vsub.f32 %v3216, %v3254
        %v3273 = vsub.f32 %v3221, %v3256
        %v3274 = vsub.f32 %v3224, %v3258
        %v3275 = vmul.f32 %v3259, 1.442695
        %v3276 = vpow.pop %v3275
        %v3277 = vmul.f32 %v3260, 1.442695
        %v3278 = vpow.pop %v3277
        %v3279 = vmul.f32 %v3261, 1.442695
        %v3280 = vpow.pop %v3279
        %v3281 = vmul.f32 %v3262, 1.442695
        %v3282 = vpow.pop %v3281
        %v3283 = vmul.f32 %v3263, 1.442695
        %v3284 = vpow.pop %v3283
        %v3285 = vmul.f32 %v3264, 1.442695
        %v3286 = vpow.pop %v3285
        %v3287 = vmul.f32 %v3265, 1.442695
        %v3288 = vpow.pop %v3287
        %v3289 = vmul.f32 %v3266, 1.442695
        %v3290 = vpow.pop %v3289
        %v3291 = vmul.f32 %v3267, 1.442695
        %v3292 = vpow.pop %v3291
        %v3293 = vmul.f32 %v3268, 1.442695
        %v3294 = vpow.pop %v3293
        %v3295 = vmul.f32 %v3269, 1.442695
        %v3296 = vpow.pop %v3295
        %v3297 = vmul.f32 %v3270, 1.442695
        %v3298 = vpow.pop %v3297
        %v3299 = vmul.f32 %v3271, 1.442695
        %v3300 = vpow.pop %v3299
        %v3301 = vmul.f32 %v3272, 1.442695
        %v3302 = vpow.pop %v3301
        %v3303 = vmul.f32 %v3273, 1.442695
        %v3304 = vpow.pop %v3303
        %v3305 = vmul.f32 %v3274, 1.442695
        %v3306 = vpow.pop %v3305
        %3307 = vadd.xlane.f32.xlu0 %v3276
        %v3308 = vpop.xlane.xlu0 %3307
        %3309 = vadd.xlane.f32.xlu0 %v3278
        %v3310 = vpop.xlane.xlu0 %3309
        %3311 = vadd.xlane.f32.xlu0 %v3280
        %v3312 = vpop.xlane.xlu0 %3311
        %3313 = vadd.xlane.f32.xlu0 %v3282
        %v3314 = vpop.xlane.xlu0 %3313
        %3315 = vadd.xlane.f32.xlu0 %v3284
        %v3316 = vpop.xlane.xlu0 %3315
        %3317 = vadd.xlane.f32.xlu0 %v3286
        %v3318 = vpop.xlane.xlu0 %3317
        %3319 = vadd.xlane.f32.xlu0 %v3288
        %v3320 = vpop.xlane.xlu0 %3319
        %3321 = vadd.xlane.f32.xlu0 %v3290
        %v3322 = vpop.xlane.xlu0 %3321
        %3323 = vadd.xlane.f32.xlu0 %v3292
        %v3324 = vpop.xlane.xlu0 %3323
        %3325 = vadd.xlane.f32.xlu0 %v3294
        %v3326 = vpop.xlane.xlu0 %3325
        %3327 = vadd.xlane.f32.xlu0 %v3296
        %v3328 = vpop.xlane.xlu0 %3327
        %3329 = vadd.xlane.f32.xlu0 %v3298
        %v3330 = vpop.xlane.xlu0 %3329
        %3331 = vadd.xlane.f32.xlu0 %v3300
        %v3332 = vpop.xlane.xlu0 %3331
        %3333 = vadd.xlane.f32.xlu0 %v3302
        %v3334 = vpop.xlane.xlu0 %3333
        %3335 = vadd.xlane.f32.xlu0 %v3304
        %v3336 = vpop.xlane.xlu0 %3335
        %3337 = vadd.xlane.f32.xlu0 %v3306
        %v3338 = vpop.xlane.xlu0 %3337
        %v3339 = vpack.c.bf16 %v3278, %v3276
        %v3340 = vpack.c.bf16 %v3282, %v3280
        %v3341 = vpack.c.bf16 %v3286, %v3284
        %v3342 = vpack.c.bf16 %v3290, %v3288
        %v3343 = vpack.c.bf16 %v3294, %v3292
        %v3344 = vpack.c.bf16 %v3298, %v3296
        %v3345 = vpack.c.bf16 %v3302, %v3300
        %v3346 = vpack.c.bf16 %v3306, %v3304
        %3347 = vrot.lane.b32.xlu0 %v1284, 32
        %v3348 = vpop.permute.xlu0 %3347
        %3349 = vrot.lane.b32.xlu0 %v1285, 32
        %v3350 = vpop.permute.xlu0 %3349
        %3351 = vrot.lane.b32.xlu0 %v1286, 32
        %v3352 = vpop.permute.xlu0 %3351
        %3353 = vrot.lane.b32.xlu0 %v1287, 32
        %v3354 = vpop.permute.xlu0 %3353
        %3355 = vrot.lane.b32.xlu0 %v1288, 32
        %v3356 = vpop.permute.xlu0 %3355
        %3357 = vrot.lane.b32.xlu0 %v1289, 32
        %v3358 = vpop.permute.xlu0 %3357
        %3359 = vrot.lane.b32.xlu0 %v1290, 32
        %v3360 = vpop.permute.xlu0 %3359
        %3361 = vrot.lane.b32.xlu0 %v1291, 32
        %v3362 = vpop.permute.xlu0 %3361
        %3371 = vmatprep.subr.bf16.mxu0 0
        %3372 = vmatpush1.bf16.msra.mxu0 %v3348
        %3373 = vmatprep.subr.bf16.mxu0 0
        %3374 = vmatpush1.bf16.msra.mxu0 %v3350
        %3375 = vmatprep.subr.bf16.mxu0 0
        %3376 = vmatpush1.bf16.msra.mxu0 %v3352
        %3377 = vmatprep.subr.bf16.mxu0 0
        %3378 = vmatpush1.bf16.msra.mxu0 %v3354
        %3379 = vmatprep.subr.bf16.mxu0 0
        %3380 = vmatpush1.bf16.msra.mxu0 %v3356
        %3381 = vmatprep.subr.bf16.mxu0 0
        %3382 = vmatpush1.bf16.msra.mxu0 %v3358
        %3383 = vmatprep.subr.bf16.mxu0 0
        %3384 = vmatpush1.bf16.msra.mxu0 %v3360
        %3385 = vmatprep.subr.bf16.mxu0 0
        %3386 = vmatpush1.bf16.msra.mxu0 %v3362
        %3387 = vmatprep.subr.bf16.mxu0 0
        %3388 = vmatpush1.bf16.msra.mxu0 0
        %3389 = vmatprep.subr.bf16.mxu0 0
        %3390 = vmatpush1.bf16.msra.mxu0 0
        %3391 = vmatprep.subr.bf16.mxu0 0
        %3392 = vmatpush1.bf16.msra.mxu0 0
        %3393 = vmatprep.subr.bf16.mxu0 0
        %3394 = vmatpush1.bf16.msra.mxu0 0
        %3395 = vmatprep.subr.bf16.mxu0 0
        %3396 = vmatpush1.bf16.msra.mxu0 0
        %3397 = vmatprep.subr.bf16.mxu0 0
        %3398 = vmatpush1.bf16.msra.mxu0 0
        %3399 = vmatprep.subr.bf16.mxu0 0
        %3400 = vmatpush1.bf16.msra.mxu0 0
        %3401 = vmatprep.subr.bf16.mxu0 0
        %3402 = vmatpush1.bf16.msra.mxu0 0
        %3403 = vmatprep.mubr.bf16.mxu0 0
        %3404 = vmatmul.mubr.bf16.gmra.mrb[0].mxu0 %v3339
        %v3405 = vpop.f32.mrb[0].mxu0
        %v3406 = vadd.f32 0.0, %v3405
        %v3407 = vpop.f32.mrb[0].mxu0
        %v3408 = vpop.f32.mrb[0].mxu0
        %v3409 = vadd.f32 0.0, %v3408
        %v3410 = vpop.f32.mrb[0].mxu0
        %3411 = vmatprep.mubr.bf16.mxu0 0
        %3412 = vmatmul.mubr.bf16.gmra.mrb[0].mxu0 %v3340
        %v3413 = vpop.f32.mrb[0].mxu0
        %v3414 = vadd.f32 0.0, %v3413
        %v3415 = vpop.f32.mrb[0].mxu0
        %v3416 = vpop.f32.mrb[0].mxu0
        %v3417 = vadd.f32 0.0, %v3416
        %v3418 = vpop.f32.mrb[0].mxu0
        %3419 = vmatprep.mubr.bf16.mxu0 0
        %3420 = vmatmul.mubr.bf16.gmra.mrb[0].mxu0 %v3341
        %v3421 = vpop.f32.mrb[0].mxu0
        %v3422 = vadd.f32 0.0, %v3421
        %v3423 = vpop.f32.mrb[0].mxu0
        %v3424 = vpop.f32.mrb[0].mxu0
        %v3425 = vadd.f32 0.0, %v3424
        %v3426 = vpop.f32.mrb[0].mxu0
        %3427 = vmatprep.mubr.bf16.mxu0 0
        %3428 = vmatmul.mubr.bf16.gmra.mrb[0].mxu0 %v3342
        %v3429 = vpop.f32.mrb[0].mxu0
        %v3430 = vadd.f32 0.0, %v3429
        %v3431 = vpop.f32.mrb[0].mxu0
        %v3432 = vpop.f32.mrb[0].mxu0
        %v3433 = vadd.f32 0.0, %v3432
        %v3434 = vpop.f32.mrb[0].mxu0
        %3435 = vmatprep.mubr.bf16.mxu0 0
        %3436 = vmatmul.mubr.bf16.gmra.mrb[0].mxu0 %v3343
        %v3437 = vpop.f32.mrb[0].mxu0
        %v3438 = vadd.f32 0.0, %v3437
        %v3439 = vpop.f32.mrb[0].mxu0
        %v3440 = vpop.f32.mrb[0].mxu0
        %v3441 = vadd.f32 0.0, %v3440
        %v3442 = vpop.f32.mrb[0].mxu0
        %3443 = vmatprep.mubr.bf16.mxu0 0
        %3444 = vmatmul.mubr.bf16.gmra.mrb[0].mxu0 %v3344
        %v3445 = vpop.f32.mrb[0].mxu0
        %v3446 = vadd.f32 0.0, %v3445
        %v3447 = vpop.f32.mrb[0].mxu0
        %v3448 = vpop.f32.mrb[0].mxu0
        %v3449 = vadd.f32 0.0, %v3448
        %v3450 = vpop.f32.mrb[0].mxu0
        %3451 = vmatprep.mubr.bf16.mxu0 0
        %3452 = vmatmul.mubr.bf16.gmra.mrb[0].mxu0 %v3345
        %v3453 = vpop.f32.mrb[0].mxu0
        %v3454 = vadd.f32 0.0, %v3453
        %v3455 = vpop.f32.mrb[0].mxu0
        %v3456 = vpop.f32.mrb[0].mxu0
        %v3457 = vadd.f32 0.0, %v3456
        %v3458 = vpop.f32.mrb[0].mxu0
        %3459 = vmatprep.mubr.bf16.mxu0 0
        %3460 = vmatmul.mubr.bf16.gmra.mrb[0].mxu0 %v3346
        %v3461 = vpop.f32.mrb[0].mxu0
        %v3462 = vadd.f32 0.0, %v3461
        %v3463 = vpop.f32.mrb[0].mxu0
        %v3464 = vpop.f32.mrb[0].mxu0
        %v3465 = vadd.f32 0.0, %v3464
        %v3466 = vpop.f32.mrb[0].mxu0
        %3467 = vdwg.mxu0
        %v3468 = vrcp.pop %v3308
        %v3469 = vrcp.pop %v3310
        %v3470 = vrcp.pop %v3312
        %v3471 = vrcp.pop %v3314
        %v3472 = vrcp.pop %v3316
        %v3473 = vrcp.pop %v3318
        %v3474 = vrcp.pop %v3320
        %v3475 = vrcp.pop %v3322
        %v3476 = vrcp.pop %v3324
        %v3477 = vrcp.pop %v3326
        %v3478 = vrcp.pop %v3328
        %v3479 = vrcp.pop %v3330
        %v3480 = vrcp.pop %v3332
        %v3481 = vrcp.pop %v3334
        %v3482 = vrcp.pop %v3336
        %v3483 = vrcp.pop %v3338
        %v3484 = vmul.f32 %v3406, %v3468
        %v3485 = vmul.f32 %v3409, %v3469
        %v3486 = vmul.f32 %v3414, %v3470
        %v3487 = vmul.f32 %v3417, %v3471
        %v3488 = vmul.f32 %v3422, %v3472
        %v3489 = vmul.f32 %v3425, %v3473
        %v3490 = vmul.f32 %v3430, %v3474
        %v3491 = vmul.f32 %v3433, %v3475
        %v3492 = vmul.f32 %v3438, %v3476
        %v3493 = vmul.f32 %v3441, %v3477
        %v3494 = vmul.f32 %v3446, %v3478
        %v3495 = vmul.f32 %v3449, %v3479
        %v3496 = vmul.f32 %v3454, %v3480
        %v3497 = vmul.f32 %v3457, %v3481
        %v3498 = vmul.f32 %v3462, %v3482
        %v3499 = vmul.f32 %v3465, %v3483
        %v3500 = vpack.c.bf16 %v3485, %v3484
        %v3501 = vpack.c.bf16 %v3487, %v3486
        %v3502 = vpack.c.bf16 %v3489, %v3488
        %v3503 = vpack.c.bf16 %v3491, %v3490
        %v3504 = vpack.c.bf16 %v3493, %v3492
        %v3505 = vpack.c.bf16 %v3495, %v3494
        %v3506 = vpack.c.bf16 %v3497, %v3496
        %v3507 = vpack.c.bf16 %v3499, %v3498
        %v3512 = vunpack.c.l.b16 %v1264
        %v3513 = vunpack.c.l.b16 %v1265
        %v3514 = vunpack.c.l.b16 %v1266
        %v3515 = vunpack.c.l.b16 %v1267
        %v3516 = vpack.c.b16 %v3513, %v3512
        %v3517 = vpack.c.b16 %v3515, %v3514
        %v3521 = vsel %vm1292, %v3500, 0
        %v3524 = vsel %vm1292, %v3501, 0
        %v3527 = vsel %vm1292, %v3502, 0
        %v3530 = vsel %vm1292, %v3503, 0
        %v3533 = vsel %vm1292, %v3504, 0
        %v3536 = vsel %vm1292, %v3505, 0
        %v3539 = vsel %vm1292, %v3506, 0
        %v3542 = vsel %vm1292, %v3507, 0
        %3544 = vmatprep.subr.bf16.mxu0 0
        %3545 = vmatpush1.bf16.msra.mxu0 %v3516
        %3546 = vmatprep.subr.bf16.mxu0 0
        %3547 = vmatpush1.bf16.msra.mxu0 %v3517
        %3548 = vmatprep.subr.bf16.mxu0 0
        %3549 = vmatpush1.bf16.msra.mxu0 0
        %3550 = vmatprep.subr.bf16.mxu0 0
        %3551 = vmatpush1.bf16.msra.mxu0 0
        %3552 = vmatprep.subr.bf16.mxu0 0
        %3553 = vmatpush1.bf16.msra.mxu0 0
        %3554 = vmatprep.subr.bf16.mxu0 0
        %3555 = vmatpush1.bf16.msra.mxu0 0
        %3556 = vmatprep.subr.bf16.mxu0 0
        %3557 = vmatpush1.bf16.msra.mxu0 0
        %3558 = vmatprep.subr.bf16.mxu0 0
        %3559 = vmatpush1.bf16.msra.mxu0 0
        %3560 = vmatprep.subr.bf16.mxu0 0
        %3561 = vmatpush1.bf16.msra.mxu0 0
        %3562 = vmatprep.subr.bf16.mxu0 0
        %3563 = vmatpush1.bf16.msra.mxu0 0
        %3564 = vmatprep.subr.bf16.mxu0 0
        %3565 = vmatpush1.bf16.msra.mxu0 0
        %3566 = vmatprep.subr.bf16.mxu0 0
        %3567 = vmatpush1.bf16.msra.mxu0 0
        %3568 = vmatprep.subr.bf16.mxu0 0
        %3569 = vmatpush1.bf16.msra.mxu0 0
        %3570 = vmatprep.subr.bf16.mxu0 0
        %3571 = vmatpush1.bf16.msra.mxu0 0
        %3572 = vmatprep.subr.bf16.mxu0 0
        %3573 = vmatpush1.bf16.msra.mxu0 0
        %3574 = vmatprep.subr.bf16.mxu0 0
        %3575 = vmatpush1.bf16.msra.mxu0 0
        %3576 = vmatprep.mubr.bf16.mxu0 0
        %3577 = vmatmul.mubr.bf16.gmra.mrb[0].mxu0 %v3521
        %v3578 = vpop.f32.mrb[0].mxu0
        %v3579 = vadd.f32 0.0, %v3578
        %v3580 = vpop.f32.mrb[0].mxu0
        %v3581 = vpop.f32.mrb[0].mxu0
        %v3582 = vadd.f32 0.0, %v3581
        %v3583 = vpop.f32.mrb[0].mxu0
        %3584 = vmatprep.mubr.bf16.mxu0 0
        %3585 = vmatmul.mubr.bf16.gmra.mrb[0].mxu0 %v3524
        %v3586 = vpop.f32.mrb[0].mxu0
        %v3587 = vadd.f32 0.0, %v3586
        %v3588 = vpop.f32.mrb[0].mxu0
        %v3589 = vpop.f32.mrb[0].mxu0
        %v3590 = vadd.f32 0.0, %v3589
        %v3591 = vpop.f32.mrb[0].mxu0
        %3592 = vmatprep.mubr.bf16.mxu0 0
        %3593 = vmatmul.mubr.bf16.gmra.mrb[0].mxu0 %v3527
        %v3594 = vpop.f32.mrb[0].mxu0
        %v3595 = vadd.f32 0.0, %v3594
        %v3596 = vpop.f32.mrb[0].mxu0
        %v3597 = vpop.f32.mrb[0].mxu0
        %v3598 = vadd.f32 0.0, %v3597
        %v3599 = vpop.f32.mrb[0].mxu0
        %3600 = vmatprep.mubr.bf16.mxu0 0
        %3601 = vmatmul.mubr.bf16.gmra.mrb[0].mxu0 %v3530
        %v3602 = vpop.f32.mrb[0].mxu0
        %v3603 = vadd.f32 0.0, %v3602
        %v3604 = vpop.f32.mrb[0].mxu0
        %v3605 = vpop.f32.mrb[0].mxu0
        %v3606 = vadd.f32 0.0, %v3605
        %v3607 = vpop.f32.mrb[0].mxu0
        %3608 = vmatprep.mubr.bf16.mxu0 0
        %3609 = vmatmul.mubr.bf16.gmra.mrb[0].mxu0 %v3533
        %v3610 = vpop.f32.mrb[0].mxu0
        %v3611 = vadd.f32 0.0, %v3610
        %v3612 = vpop.f32.mrb[0].mxu0
        %v3613 = vpop.f32.mrb[0].mxu0
        %v3614 = vadd.f32 0.0, %v3613
        %v3615 = vpop.f32.mrb[0].mxu0
        %3616 = vmatprep.mubr.bf16.mxu0 0
        %3617 = vmatmul.mubr.bf16.gmra.mrb[0].mxu0 %v3536
        %v3618 = vpop.f32.mrb[0].mxu0
        %v3619 = vadd.f32 0.0, %v3618
        %v3620 = vpop.f32.mrb[0].mxu0
        %v3621 = vpop.f32.mrb[0].mxu0
        %v3622 = vadd.f32 0.0, %v3621
        %v3623 = vpop.f32.mrb[0].mxu0
        %3624 = vmatprep.mubr.bf16.mxu0 0
        %3625 = vmatmul.mubr.bf16.gmra.mrb[0].mxu0 %v3539
        %v3626 = vpop.f32.mrb[0].mxu0
        %v3627 = vadd.f32 0.0, %v3626
        %v3628 = vpop.f32.mrb[0].mxu0
        %v3629 = vpop.f32.mrb[0].mxu0
        %v3630 = vadd.f32 0.0, %v3629
        %v3631 = vpop.f32.mrb[0].mxu0
        %3632 = vmatprep.mubr.bf16.mxu0 0
        %3633 = vmatmul.mubr.bf16.gmra.mrb[0].mxu0 %v3542
        %v3634 = vpop.f32.mrb[0].mxu0
        %v3635 = vadd.f32 0.0, %v3634
        %v3636 = vpop.f32.mrb[0].mxu0
        %v3637 = vpop.f32.mrb[0].mxu0
        %v3638 = vadd.f32 0.0, %v3637
        %v3639 = vpop.f32.mrb[0].mxu0
        %3640 = vdwg.mxu0
        %v3641 = vadd.f32 %v3034, %v3579
        %v3642 = vadd.f32 %v3035, %v3582
        %v3643 = vadd.f32 %v3036, %v3587
        %v3644 = vadd.f32 %v3037, %v3590
        %v3645 = vadd.f32 %v3038, %v3595
        %v3646 = vadd.f32 %v3039, %v3598
        %v3647 = vadd.f32 %v3040, %v3603
        %v3648 = vadd.f32 %v3041, %v3606
        %v3649 = vadd.f32 %v3042, %v3611
        %v3650 = vadd.f32 %v3043, %v3614
        %v3651 = vadd.f32 %v3044, %v3619
        %v3652 = vadd.f32 %v3045, %v3622
        %v3653 = vadd.f32 %v3046, %v3627
        %v3654 = vadd.f32 %v3047, %v3630
        %v3655 = vadd.f32 %v3048, %v3635
        %v3656 = vadd.f32 %v3049, %v3638
        %v3657 = vadd.f32 %v618, %v3641
        %v3658 = vadd.f32 %v619, %v3642
        %v3659 = vadd.f32 %v620, %v3643
        %v3660 = vadd.f32 %v621, %v3644
        %v3661 = vadd.f32 %v622, %v3645
        %v3662 = vadd.f32 %v623, %v3646
        %v3663 = vadd.f32 %v624, %v3647
        %v3664 = vadd.f32 %v625, %v3648
        %v3665 = vadd.f32 %v626, %v3649
        %v3666 = vadd.f32 %v627, %v3650
        %v3667 = vadd.f32 %v628, %v3651
        %v3668 = vadd.f32 %v629, %v3652
        %v3669 = vadd.f32 %v630, %v3653
        %v3670 = vadd.f32 %v631, %v3654
        %v3671 = vadd.f32 %v632, %v3655
        %v3672 = vadd.f32 %v633, %v3656
        %v3673 = vld [vmem:[#allocation13] sm:$0x1]
        %v3675 = vlaneseq
        %v3676 = vshrl.u32 %v3675, 7
        %v3677 = vsub.s32 0, %v3676
        %v3678 = vrot.slane %v3673, %v3677
        %v3680 = vadd.f32 %v3657, %v3678
        %v3681 = vadd.f32 %v3658, %v3678
        %v3682 = vadd.f32 %v3659, %v3678
        %v3683 = vadd.f32 %v3660, %v3678
        %v3684 = vadd.f32 %v3661, %v3678
        %v3685 = vadd.f32 %v3662, %v3678
        %v3686 = vadd.f32 %v3663, %v3678
        %v3687 = vadd.f32 %v3664, %v3678
        %v3688 = vadd.f32 %v3665, %v3678
        %v3689 = vadd.f32 %v3666, %v3678
        %v3690 = vadd.f32 %v3667, %v3678
        %v3691 = vadd.f32 %v3668, %v3678
        %v3692 = vadd.f32 %v3669, %v3678
        %v3693 = vadd.f32 %v3670, %v3678
        %v3694 = vadd.f32 %v3671, %v3678
        %v3695 = vadd.f32 %v3672, %v3678
        %v3696 = vld [vmem:[#allocation14] sm:$0x1]
        %v3697 = vld [vmem:[#allocation16] sm:$0x1]
        %3698 = vadd.xlane.f32.xlu0 %v3680
        %v3699 = vpop.xlane.xlu0 %3698
        %3700 = vadd.xlane.f32.xlu0 %v3681
        %v3701 = vpop.xlane.xlu0 %3700
        %3702 = vadd.xlane.f32.xlu0 %v3682
        %v3703 = vpop.xlane.xlu0 %3702
        %3704 = vadd.xlane.f32.xlu0 %v3683
        %v3705 = vpop.xlane.xlu0 %3704
        %3706 = vadd.xlane.f32.xlu0 %v3684
        %v3707 = vpop.xlane.xlu0 %3706
        %3708 = vadd.xlane.f32.xlu0 %v3685
        %v3709 = vpop.xlane.xlu0 %3708
        %3710 = vadd.xlane.f32.xlu0 %v3686
        %v3711 = vpop.xlane.xlu0 %3710
        %3712 = vadd.xlane.f32.xlu0 %v3687
        %v3713 = vpop.xlane.xlu0 %3712
        %3714 = vadd.xlane.f32.xlu0 %v3688
        %v3715 = vpop.xlane.xlu0 %3714
        %3716 = vadd.xlane.f32.xlu0 %v3689
        %v3717 = vpop.xlane.xlu0 %3716
        %3718 = vadd.xlane.f32.xlu0 %v3690
        %v3719 = vpop.xlane.xlu0 %3718
        %3720 = vadd.xlane.f32.xlu0 %v3691
        %v3721 = vpop.xlane.xlu0 %3720
        %3722 = vadd.xlane.f32.xlu0 %v3692
        %v3723 = vpop.xlane.xlu0 %3722
        %3724 = vadd.xlane.f32.xlu0 %v3693
        %v3725 = vpop.xlane.xlu0 %3724
        %3726 = vadd.xlane.f32.xlu0 %v3694
        %v3727 = vpop.xlane.xlu0 %3726
        %3728 = vadd.xlane.f32.xlu0 %v3695
        %v3729 = vpop.xlane.xlu0 %3728
        %v3730 = vmul.f32 %v3699, %v668
        %v3731 = vmul.f32 %v3701, %v668
        %v3732 = vmul.f32 %v3703, %v668
        %v3733 = vmul.f32 %v3705, %v668
        %v3734 = vmul.f32 %v3707, %v668
        %v3735 = vmul.f32 %v3709, %v668
        %v3736 = vmul.f32 %v3711, %v668
        %v3737 = vmul.f32 %v3713, %v668
        %v3738 = vmul.f32 %v3715, %v668
        %v3739 = vmul.f32 %v3717, %v668
        %v3740 = vmul.f32 %v3719, %v668
        %v3741 = vmul.f32 %v3721, %v668
        %v3742 = vmul.f32 %v3723, %v668
        %v3743 = vmul.f32 %v3725, %v668
        %v3744 = vmul.f32 %v3727, %v668
        %v3745 = vmul.f32 %v3729, %v668
        %v3746 = vsub.f32 %v3680, %v3730
        %v3747 = vsub.f32 %v3681, %v3731
        %v3748 = vsub.f32 %v3682, %v3732
        %v3749 = vsub.f32 %v3683, %v3733
        %v3750 = vsub.f32 %v3684, %v3734
        %v3751 = vsub.f32 %v3685, %v3735
        %v3752 = vsub.f32 %v3686, %v3736
        %v3753 = vsub.f32 %v3687, %v3737
        %v3754 = vsub.f32 %v3688, %v3738
        %v3755 = vsub.f32 %v3689, %v3739
        %v3756 = vsub.f32 %v3690, %v3740
        %v3757 = vsub.f32 %v3691, %v3741
        %v3758 = vsub.f32 %v3692, %v3742
        %v3759 = vsub.f32 %v3693, %v3743
        %v3760 = vsub.f32 %v3694, %v3744
        %v3761 = vsub.f32 %v3695, %v3745
        %v3762 = vmul.f32 %v3746, %v3746
        %v3763 = vmul.f32 %v3747, %v3747
        %v3764 = vmul.f32 %v3748, %v3748
        %v3765 = vmul.f32 %v3749, %v3749
        %v3766 = vmul.f32 %v3750, %v3750
        %v3767 = vmul.f32 %v3751, %v3751
        %v3768 = vmul.f32 %v3752, %v3752
        %v3769 = vmul.f32 %v3753, %v3753
        %v3770 = vmul.f32 %v3754, %v3754
        %v3771 = vmul.f32 %v3755, %v3755
        %v3772 = vmul.f32 %v3756, %v3756
        %v3773 = vmul.f32 %v3757, %v3757
        %v3774 = vmul.f32 %v3758, %v3758
        %v3775 = vmul.f32 %v3759, %v3759
        %v3776 = vmul.f32 %v3760, %v3760
        %v3777 = vmul.f32 %v3761, %v3761
        %3778 = vadd.xlane.f32.xlu0 %v3762
        %v3779 = vpop.xlane.xlu0 %3778
        %3780 = vadd.xlane.f32.xlu0 %v3763
        %v3781 = vpop.xlane.xlu0 %3780
        %3782 = vadd.xlane.f32.xlu0 %v3764
        %v3783 = vpop.xlane.xlu0 %3782
        %3784 = vadd.xlane.f32.xlu0 %v3765
        %v3785 = vpop.xlane.xlu0 %3784
        %3786 = vadd.xlane.f32.xlu0 %v3766
        %v3787 = vpop.xlane.xlu0 %3786
        %3788 = vadd.xlane.f32.xlu0 %v3767
        %v3789 = vpop.xlane.xlu0 %3788
        %3790 = vadd.xlane.f32.xlu0 %v3768
        %v3791 = vpop.xlane.xlu0 %3790
        %3792 = vadd.xlane.f32.xlu0 %v3769
        %v3793 = vpop.xlane.xlu0 %3792
        %3794 = vadd.xlane.f32.xlu0 %v3770
        %v3795 = vpop.xlane.xlu0 %3794
        %3796 = vadd.xlane.f32.xlu0 %v3771
        %v3797 = vpop.xlane.xlu0 %3796
        %3798 = vadd.xlane.f32.xlu0 %v3772
        %v3799 = vpop.xlane.xlu0 %3798
        %3800 = vadd.xlane.f32.xlu0 %v3773
        %v3801 = vpop.xlane.xlu0 %3800
        %3802 = vadd.xlane.f32.xlu0 %v3774
        %v3803 = vpop.xlane.xlu0 %3802
        %3804 = vadd.xlane.f32.xlu0 %v3775
        %v3805 = vpop.xlane.xlu0 %3804
        %3806 = vadd.xlane.f32.xlu0 %v3776
        %v3807 = vpop.xlane.xlu0 %3806
        %3808 = vadd.xlane.f32.xlu0 %v3777
        %v3809 = vpop.xlane.xlu0 %3808
        %v3810 = vmul.f32 %v3779, %v668
        %v3811 = vmul.f32 %v3781, %v668
        %v3812 = vmul.f32 %v3783, %v668
        %v3813 = vmul.f32 %v3785, %v668
        %v3814 = vmul.f32 %v3787, %v668
        %v3815 = vmul.f32 %v3789, %v668
        %v3816 = vmul.f32 %v3791, %v668
        %v3817 = vmul.f32 %v3793, %v668
        %v3818 = vmul.f32 %v3795, %v668
        %v3819 = vmul.f32 %v3797, %v668
        %v3820 = vmul.f32 %v3799, %v668
        %v3821 = vmul.f32 %v3801, %v668
        %v3822 = vmul.f32 %v3803, %v668
        %v3823 = vmul.f32 %v3805, %v668
        %v3824 = vmul.f32 %v3807, %v668
        %v3825 = vmul.f32 %v3809, %v668
        %v3826 = vadd.f32 %v3810, 1e-06
        %v3827 = vadd.f32 %v3811, 1e-06
        %v3828 = vadd.f32 %v3812, 1e-06
        %v3829 = vadd.f32 %v3813, 1e-06
        %v3830 = vadd.f32 %v3814, 1e-06
        %v3831 = vadd.f32 %v3815, 1e-06
        %v3832 = vadd.f32 %v3816, 1e-06
        %v3833 = vadd.f32 %v3817, 1e-06
        %v3834 = vadd.f32 %v3818, 1e-06
        %v3835 = vadd.f32 %v3819, 1e-06
        %v3836 = vadd.f32 %v3820, 1e-06
        %v3837 = vadd.f32 %v3821, 1e-06
        %v3838 = vadd.f32 %v3822, 1e-06
        %v3839 = vadd.f32 %v3823, 1e-06
        %v3840 = vadd.f32 %v3824, 1e-06
        %v3841 = vadd.f32 %v3825, 1e-06
        %v3842 = vrsqrt.pop %v3826
        %v3843 = vrsqrt.pop %v3827
        %v3844 = vrsqrt.pop %v3828
        %v3845 = vrsqrt.pop %v3829
        %v3846 = vrsqrt.pop %v3830
        %v3847 = vrsqrt.pop %v3831
        %v3848 = vrsqrt.pop %v3832
        %v3849 = vrsqrt.pop %v3833
        %v3850 = vrsqrt.pop %v3834
        %v3851 = vrsqrt.pop %v3835
        %v3852 = vrsqrt.pop %v3836
        %v3853 = vrsqrt.pop %v3837
        %v3854 = vrsqrt.pop %v3838
        %v3855 = vrsqrt.pop %v3839
        %v3856 = vrsqrt.pop %v3840
        %v3857 = vrsqrt.pop %v3841
        %v3858 = vmul.f32 %v3746, %v3842
        %v3859 = vmul.f32 %v3747, %v3843
        %v3860 = vmul.f32 %v3748, %v3844
        %v3861 = vmul.f32 %v3749, %v3845
        %v3862 = vmul.f32 %v3750, %v3846
        %v3863 = vmul.f32 %v3751, %v3847
        %v3864 = vmul.f32 %v3752, %v3848
        %v3865 = vmul.f32 %v3753, %v3849
        %v3866 = vmul.f32 %v3754, %v3850
        %v3867 = vmul.f32 %v3755, %v3851
        %v3868 = vmul.f32 %v3756, %v3852
        %v3869 = vmul.f32 %v3757, %v3853
        %v3870 = vmul.f32 %v3758, %v3854
        %v3871 = vmul.f32 %v3759, %v3855
        %v3872 = vmul.f32 %v3760, %v3856
        %v3873 = vmul.f32 %v3761, %v3857
        %v3875 = vlaneseq
        %v3876 = vshrl.u32 %v3875, 7
        %v3877 = vsub.s32 0, %v3876
        %v3878 = vrot.slane %v3696, %v3877
        %v3880 = vmul.f32 %v3858, %v3878
        %v3881 = vmul.f32 %v3859, %v3878
        %v3882 = vmul.f32 %v3860, %v3878
        %v3883 = vmul.f32 %v3861, %v3878
        %v3884 = vmul.f32 %v3862, %v3878
        %v3885 = vmul.f32 %v3863, %v3878
        %v3886 = vmul.f32 %v3864, %v3878
        %v3887 = vmul.f32 %v3865, %v3878
        %v3888 = vmul.f32 %v3866, %v3878
        %v3889 = vmul.f32 %v3867, %v3878
        %v3890 = vmul.f32 %v3868, %v3878
        %v3891 = vmul.f32 %v3869, %v3878
        %v3892 = vmul.f32 %v3870, %v3878
        %v3893 = vmul.f32 %v3871, %v3878
        %v3894 = vmul.f32 %v3872, %v3878
        %v3895 = vmul.f32 %v3873, %v3878
        %v3897 = vlaneseq
        %v3898 = vshrl.u32 %v3897, 7
        %v3899 = vsub.s32 0, %v3898
        %v3900 = vrot.slane %v3697, %v3899
        %v3902 = vadd.f32 %v3880, %v3900
        %v3903 = vadd.f32 %v3881, %v3900
        %v3904 = vadd.f32 %v3882, %v3900
        %v3905 = vadd.f32 %v3883, %v3900
        %v3906 = vadd.f32 %v3884, %v3900
        %v3907 = vadd.f32 %v3885, %v3900
        %v3908 = vadd.f32 %v3886, %v3900
        %v3909 = vadd.f32 %v3887, %v3900
        %v3910 = vadd.f32 %v3888, %v3900
        %v3911 = vadd.f32 %v3889, %v3900
        %v3912 = vadd.f32 %v3890, %v3900
        %v3913 = vadd.f32 %v3891, %v3900
        %v3914 = vadd.f32 %v3892, %v3900
        %v3915 = vadd.f32 %v3893, %v3900
        %v3916 = vadd.f32 %v3894, %v3900
        %v3917 = vadd.f32 %v3895, %v3900
        %v3918 = vpack.c.bf16 %v3903, %v3902
        %v3919 = vpack.c.bf16 %v3905, %v3904
        %v3920 = vpack.c.bf16 %v3907, %v3906
        %v3921 = vpack.c.bf16 %v3909, %v3908
        %v3922 = vpack.c.bf16 %v3911, %v3910
        %v3923 = vpack.c.bf16 %v3913, %v3912
        %v3924 = vpack.c.bf16 %v3915, %v3914
        %v3925 = vpack.c.bf16 %v3917, %v3916
        %v3926 = vld [vmem:[#allocation17] sm:$0xff]
        %v3927 = vld [vmem:[#allocation17 + $0x8] sm:$0xff]
        %v3928 = vld [vmem:[#allocation17 + $0x10] sm:$0xff]
        %v3929 = vld [vmem:[#allocation17 + $0x18] sm:$0xff]
        %v3930 = vld [vmem:[#allocation17 + $0x20] sm:$0xff]
        %v3931 = vld [vmem:[#allocation17 + $0x28] sm:$0xff]
        %v3932 = vld [vmem:[#allocation17 + $0x30] sm:$0xff]
        %v3933 = vld [vmem:[#allocation17 + $0x38] sm:$0xff]
        %v3934 = vld [vmem:[#allocation17 + $0x40] sm:$0xff]
        %v3935 = vld [vmem:[#allocation17 + $0x48] sm:$0xff]
        %v3936 = vld [vmem:[#allocation17 + $0x50] sm:$0xff]
        %v3937 = vld [vmem:[#allocation17 + $0x58] sm:$0xff]
        %v3938 = vld [vmem:[#allocation17 + $0x60] sm:$0xff]
        %v3939 = vld [vmem:[#allocation17 + $0x68] sm:$0xff]
        %v3940 = vld [vmem:[#allocation17 + $0x70] sm:$0xff]
        %v3941 = vld [vmem:[#allocation17 + $0x78] sm:$0xff]
        %v3942 = vld [vmem:[#allocation19] sm:$0x3]
        %v3944 = vlaneseq
        %v3945 = vshrl.u32 %v3944, 7
        %v3946 = vsub.s32 0, %v3945
        %v3947 = vrot.slane %v3942, %v3946
        %v3948 = vlaneseq
        %v3949 = vshrl.u32 %v3948, 7
        %v3950 = vsub.s32 1, %v3949
        %v3951 = vrot.slane %v3942, %v3950
        %v3970 = vunpack.c.l.b16 %v3926
        %v3971 = vunpack.c.h.b16 %v3926
        %v3972 = vunpack.c.l.b16 %v3927
        %v3973 = vunpack.c.h.b16 %v3927
        %v3974 = vunpack.c.l.b16 %v3928
        %v3975 = vunpack.c.h.b16 %v3928
        %v3976 = vunpack.c.l.b16 %v3929
        %v3977 = vunpack.c.h.b16 %v3929
        %v3978 = vunpack.c.l.b16 %v3930
        %v3979 = vunpack.c.h.b16 %v3930
        %v3980 = vunpack.c.l.b16 %v3931
        %v3981 = vunpack.c.h.b16 %v3931
        %v3982 = vunpack.c.l.b16 %v3932
        %v3983 = vunpack.c.h.b16 %v3932
        %v3984 = vunpack.c.l.b16 %v3933
        %v3985 = vunpack.c.h.b16 %v3933
        %v3986 = vunpack.c.l.b16 %v3934
        %v3987 = vunpack.c.h.b16 %v3934
        %v3988 = vunpack.c.l.b16 %v3935
        %v3989 = vunpack.c.h.b16 %v3935
        %v3990 = vunpack.c.l.b16 %v3936
        %v3991 = vunpack.c.h.b16 %v3936
        %v3992 = vunpack.c.l.b16 %v3937
        %v3993 = vunpack.c.h.b16 %v3937
        %v3994 = vunpack.c.l.b16 %v3938
        %v3995 = vunpack.c.h.b16 %v3938
        %v3996 = vunpack.c.l.b16 %v3939
        %v3997 = vunpack.c.h.b16 %v3939
        %v3998 = vunpack.c.l.b16 %v3940
        %v3999 = vunpack.c.h.b16 %v3940
        %v4000 = vunpack.c.l.b16 %v3941
        %v4001 = vunpack.c.h.b16 %v3941
        %v4002 = vpack.c.b16 %v3972, %v3970
        %v4003 = vpack.c.b16 %v3973, %v3971
        %v4004 = vpack.c.b16 %v3976, %v3974
        %v4005 = vpack.c.b16 %v3977, %v3975
        %v4006 = vpack.c.b16 %v3980, %v3978
        %v4007 = vpack.c.b16 %v3981, %v3979
        %v4008 = vpack.c.b16 %v3984, %v3982
        %v4009 = vpack.c.b16 %v3985, %v3983
        %v4010 = vpack.c.b16 %v3988, %v3986
        %v4011 = vpack.c.b16 %v3989, %v3987
        %v4012 = vpack.c.b16 %v3992, %v3990
        %v4013 = vpack.c.b16 %v3993, %v3991
        %v4014 = vpack.c.b16 %v3996, %v3994
        %v4015 = vpack.c.b16 %v3997, %v3995
        %v4016 = vpack.c.b16 %v4000, %v3998
        %v4017 = vpack.c.b16 %v4001, %v3999
        %4034 = vmatprep.subr.bf16.mxu0 %v4003
        %4035 = vmatpush1.bf16.msra.mxu0 %v4002
        %4036 = vmatprep.subr.bf16.mxu0 %v4005
        %4037 = vmatpush1.bf16.msra.mxu0 %v4004
        %4038 = vmatprep.subr.bf16.mxu0 %v4007
        %4039 = vmatpush1.bf16.msra.mxu0 %v4006
        %4040 = vmatprep.subr.bf16.mxu0 %v4009
        %4041 = vmatpush1.bf16.msra.mxu0 %v4008
        %4042 = vmatprep.subr.bf16.mxu0 %v4011
        %4043 = vmatpush1.bf16.msra.mxu0 %v4010
        %4044 = vmatprep.subr.bf16.mxu0 %v4013
        %4045 = vmatpush1.bf16.msra.mxu0 %v4012
        %4046 = vmatprep.subr.bf16.mxu0 %v4015
        %4047 = vmatpush1.bf16.msra.mxu0 %v4014
        %4048 = vmatprep.subr.bf16.mxu0 %v4017
        %4049 = vmatpush1.bf16.msra.mxu0 %v4016
        %4050 = vmatprep.subr.bf16.mxu0 0
        %4051 = vmatpush1.bf16.msra.mxu0 0
        %4052 = vmatprep.subr.bf16.mxu0 0
        %4053 = vmatpush1.bf16.msra.mxu0 0
        %4054 = vmatprep.subr.bf16.mxu0 0
        %4055 = vmatpush1.bf16.msra.mxu0 0
        %4056 = vmatprep.subr.bf16.mxu0 0
        %4057 = vmatpush1.bf16.msra.mxu0 0
        %4058 = vmatprep.subr.bf16.mxu0 0
        %4059 = vmatpush1.bf16.msra.mxu0 0
        %4060 = vmatprep.subr.bf16.mxu0 0
        %4061 = vmatpush1.bf16.msra.mxu0 0
        %4062 = vmatprep.subr.bf16.mxu0 0
        %4063 = vmatpush1.bf16.msra.mxu0 0
        %4064 = vmatprep.subr.bf16.mxu0 0
        %4065 = vmatpush1.bf16.msra.mxu0 0
        %4066 = vmatprep.mubr.bf16.mxu0 0
        %4067 = vmatmul.mubr.bf16.gmra.mrb[0].mxu0 %v3918
        %v4068 = vpop.f32.mrb[0].mxu0
        %v4069 = vadd.f32 %v3947, %v4068
        %v4070 = vpop.f32.mrb[0].mxu0
        %v4071 = vadd.f32 %v3951, %v4070
        %v4072 = vpop.f32.mrb[0].mxu0
        %v4073 = vadd.f32 %v3947, %v4072
        %v4074 = vpop.f32.mrb[0].mxu0
        %v4075 = vadd.f32 %v3951, %v4074
        %4076 = vmatprep.mubr.bf16.mxu0 0
        %4077 = vmatmul.mubr.bf16.gmra.mrb[0].mxu0 %v3919
        %v4078 = vpop.f32.mrb[0].mxu0
        %v4079 = vadd.f32 %v3947, %v4078
        %v4080 = vpop.f32.mrb[0].mxu0
        %v4081 = vadd.f32 %v3951, %v4080
        %v4082 = vpop.f32.mrb[0].mxu0
        %v4083 = vadd.f32 %v3947, %v4082
        %v4084 = vpop.f32.mrb[0].mxu0
        %v4085 = vadd.f32 %v3951, %v4084
        %4086 = vmatprep.mubr.bf16.mxu0 0
        %4087 = vmatmul.mubr.bf16.gmra.mrb[0].mxu0 %v3920
        %v4088 = vpop.f32.mrb[0].mxu0
        %v4089 = vadd.f32 %v3947, %v4088
        %v4090 = vpop.f32.mrb[0].mxu0
        %v4091 = vadd.f32 %v3951, %v4090
        %v4092 = vpop.f32.mrb[0].mxu0
        %v4093 = vadd.f32 %v3947, %v4092
        %v4094 = vpop.f32.mrb[0].mxu0
        %v4095 = vadd.f32 %v3951, %v4094
        %4096 = vmatprep.mubr.bf16.mxu0 0
        %4097 = vmatmul.mubr.bf16.gmra.mrb[0].mxu0 %v3921
        %v4098 = vpop.f32.mrb[0].mxu0
        %v4099 = vadd.f32 %v3947, %v4098
        %v4100 = vpop.f32.mrb[0].mxu0
        %v4101 = vadd.f32 %v3951, %v4100
        %v4102 = vpop.f32.mrb[0].mxu0
        %v4103 = vadd.f32 %v3947, %v4102
        %v4104 = vpop.f32.mrb[0].mxu0
        %v4105 = vadd.f32 %v3951, %v4104
        %4106 = vmatprep.mubr.bf16.mxu0 0
        %4107 = vmatmul.mubr.bf16.gmra.mrb[0].mxu0 %v3922
        %v4108 = vpop.f32.mrb[0].mxu0
        %v4109 = vadd.f32 %v3947, %v4108
        %v4110 = vpop.f32.mrb[0].mxu0
        %v4111 = vadd.f32 %v3951, %v4110
        %v4112 = vpop.f32.mrb[0].mxu0
        %v4113 = vadd.f32 %v3947, %v4112
        %v4114 = vpop.f32.mrb[0].mxu0
        %v4115 = vadd.f32 %v3951, %v4114
        %4116 = vmatprep.mubr.bf16.mxu0 0
        %4117 = vmatmul.mubr.bf16.gmra.mrb[0].mxu0 %v3923
        %v4118 = vpop.f32.mrb[0].mxu0
        %v4119 = vadd.f32 %v3947, %v4118
        %v4120 = vpop.f32.mrb[0].mxu0
        %v4121 = vadd.f32 %v3951, %v4120
        %v4122 = vpop.f32.mrb[0].mxu0
        %v4123 = vadd.f32 %v3947, %v4122
        %v4124 = vpop.f32.mrb[0].mxu0
        %v4125 = vadd.f32 %v3951, %v4124
        %4126 = vmatprep.mubr.bf16.mxu0 0
        %4127 = vmatmul.mubr.bf16.gmra.mrb[0].mxu0 %v3924
        %v4128 = vpop.f32.mrb[0].mxu0
        %v4129 = vadd.f32 %v3947, %v4128
        %v4130 = vpop.f32.mrb[0].mxu0
        %v4131 = vadd.f32 %v3951, %v4130
        %v4132 = vpop.f32.mrb[0].mxu0
        %v4133 = vadd.f32 %v3947, %v4132
        %v4134 = vpop.f32.mrb[0].mxu0
        %v4135 = vadd.f32 %v3951, %v4134
        %4136 = vmatprep.mubr.bf16.mxu0 0
        %4137 = vmatmul.mubr.bf16.gmra.mrb[0].mxu0 %v3925
        %v4138 = vpop.f32.mrb[0].mxu0
        %v4139 = vadd.f32 %v3947, %v4138
        %v4140 = vpop.f32.mrb[0].mxu0
        %v4141 = vadd.f32 %v3951, %v4140
        %v4142 = vpop.f32.mrb[0].mxu0
        %v4143 = vadd.f32 %v3947, %v4142
        %v4144 = vpop.f32.mrb[0].mxu0
        %v4145 = vadd.f32 %v3951, %v4144
        %4146 = vdwg.mxu0
        %v4147 = vmul.f32 %v4069, 0.5
        %v4148 = vmul.f32 %v4071, 0.5
        %v4149 = vmul.f32 %v4073, 0.5
        %v4150 = vmul.f32 %v4075, 0.5
        %v4151 = vmul.f32 %v4079, 0.5
        %v4152 = vmul.f32 %v4081, 0.5
        %v4153 = vmul.f32 %v4083, 0.5
        %v4154 = vmul.f32 %v4085, 0.5
        %v4155 = vmul.f32 %v4089, 0.5
        %v4156 = vmul.f32 %v4091, 0.5
        %v4157 = vmul.f32 %v4093, 0.5
        %v4158 = vmul.f32 %v4095, 0.5
        %v4159 = vmul.f32 %v4099, 0.5
        %v4160 = vmul.f32 %v4101, 0.5
        %v4161 = vmul.f32 %v4103, 0.5
        %v4162 = vmul.f32 %v4105, 0.5
        %v4163 = vmul.f32 %v4109, 0.5
        %v4164 = vmul.f32 %v4111, 0.5
        %v4165 = vmul.f32 %v4113, 0.5
        %v4166 = vmul.f32 %v4115, 0.5
        %v4167 = vmul.f32 %v4119, 0.5
        %v4168 = vmul.f32 %v4121, 0.5
        %v4169 = vmul.f32 %v4123, 0.5
        %v4170 = vmul.f32 %v4125, 0.5
        %v4171 = vmul.f32 %v4129, 0.5
        %v4172 = vmul.f32 %v4131, 0.5
        %v4173 = vmul.f32 %v4133, 0.5
        %v4174 = vmul.f32 %v4135, 0.5
        %v4175 = vmul.f32 %v4139, 0.5
        %v4176 = vmul.f32 %v4141, 0.5
        %v4177 = vmul.f32 %v4143, 0.5
        %v4178 = vmul.f32 %v4145, 0.5
        %v4179 = vmul.f32 %v4069, 0.044715
        %v4180 = vmul.f32 %v4071, 0.044715
        %v4181 = vmul.f32 %v4073, 0.044715
        %v4182 = vmul.f32 %v4075, 0.044715
        %v4183 = vmul.f32 %v4079, 0.044715
        %v4184 = vmul.f32 %v4081, 0.044715
        %v4185 = vmul.f32 %v4083, 0.044715
        %v4186 = vmul.f32 %v4085, 0.044715
        %v4187 = vmul.f32 %v4089, 0.044715
        %v4188 = vmul.f32 %v4091, 0.044715
        %v4189 = vmul.f32 %v4093, 0.044715
        %v4190 = vmul.f32 %v4095, 0.044715
        %v4191 = vmul.f32 %v4099, 0.044715
        %v4192 = vmul.f32 %v4101, 0.044715
        %v4193 = vmul.f32 %v4103, 0.044715
        %v4194 = vmul.f32 %v4105, 0.044715
        %v4195 = vmul.f32 %v4109, 0.044715
        %v4196 = vmul.f32 %v4111, 0.044715
        %v4197 = vmul.f32 %v4113, 0.044715
        %v4198 = vmul.f32 %v4115, 0.044715
        %v4199 = vmul.f32 %v4119, 0.044715
        %v4200 = vmul.f32 %v4121, 0.044715
        %v4201 = vmul.f32 %v4123, 0.044715
        %v4202 = vmul.f32 %v4125, 0.044715
        %v4203 = vmul.f32 %v4129, 0.044715
        %v4204 = vmul.f32 %v4131, 0.044715
        %v4205 = vmul.f32 %v4133, 0.044715
        %v4206 = vmul.f32 %v4135, 0.044715
        %v4207 = vmul.f32 %v4139, 0.044715
        %v4208 = vmul.f32 %v4141, 0.044715
        %v4209 = vmul.f32 %v4143, 0.044715
        %v4210 = vmul.f32 %v4145, 0.044715
        %v4211 = vmul.f32 %v4179, %v4069
        %v4212 = vmul.f32 %v4180, %v4071
        %v4213 = vmul.f32 %v4181, %v4073
        %v4214 = vmul.f32 %v4182, %v4075
        %v4215 = vmul.f32 %v4183, %v4079
        %v4216 = vmul.f32 %v4184, %v4081
        %v4217 = vmul.f32 %v4185, %v4083
        %v4218 = vmul.f32 %v4186, %v4085
        %v4219 = vmul.f32 %v4187, %v4089
        %v4220 = vmul.f32 %v4188, %v4091
        %v4221 = vmul.f32 %v4189, %v4093
        %v4222 = vmul.f32 %v4190, %v4095
        %v4223 = vmul.f32 %v4191, %v4099
        %v4224 = vmul.f32 %v4192, %v4101
        %v4225 = vmul.f32 %v4193, %v4103
        %v4226 = vmul.f32 %v4194, %v4105
        %v4227 = vmul.f32 %v4195, %v4109
        %v4228 = vmul.f32 %v4196, %v4111
        %v4229 = vmul.f32 %v4197, %v4113
        %v4230 = vmul.f32 %v4198, %v4115
        %v4231 = vmul.f32 %v4199, %v4119
        %v4232 = vmul.f32 %v4200, %v4121
        %v4233 = vmul.f32 %v4201, %v4123
        %v4234 = vmul.f32 %v4202, %v4125
        %v4235 = vmul.f32 %v4203, %v4129
        %v4236 = vmul.f32 %v4204, %v4131
        %v4237 = vmul.f32 %v4205, %v4133
        %v4238 = vmul.f32 %v4206, %v4135
        %v4239 = vmul.f32 %v4207, %v4139
        %v4240 = vmul.f32 %v4208, %v4141
        %v4241 = vmul.f32 %v4209, %v4143
        %v4242 = vmul.f32 %v4210, %v4145
        %v4243 = vmul.f32 %v4211, %v4069
        %v4244 = vmul.f32 %v4212, %v4071
        %v4245 = vmul.f32 %v4213, %v4073
        %v4246 = vmul.f32 %v4214, %v4075
        %v4247 = vmul.f32 %v4215, %v4079
        %v4248 = vmul.f32 %v4216, %v4081
        %v4249 = vmul.f32 %v4217, %v4083
        %v4250 = vmul.f32 %v4218, %v4085
        %v4251 = vmul.f32 %v4219, %v4089
        %v4252 = vmul.f32 %v4220, %v4091
        %v4253 = vmul.f32 %v4221, %v4093
        %v4254 = vmul.f32 %v4222, %v4095
        %v4255 = vmul.f32 %v4223, %v4099
        %v4256 = vmul.f32 %v4224, %v4101
        %v4257 = vmul.f32 %v4225, %v4103
        %v4258 = vmul.f32 %v4226, %v4105
        %v4259 = vmul.f32 %v4227, %v4109
        %v4260 = vmul.f32 %v4228, %v4111
        %v4261 = vmul.f32 %v4229, %v4113
        %v4262 = vmul.f32 %v4230, %v4115
        %v4263 = vmul.f32 %v4231, %v4119
        %v4264 = vmul.f32 %v4232, %v4121
        %v4265 = vmul.f32 %v4233, %v4123
        %v4266 = vmul.f32 %v4234, %v4125
        %v4267 = vmul.f32 %v4235, %v4129
        %v4268 = vmul.f32 %v4236, %v4131
        %v4269 = vmul.f32 %v4237, %v4133
        %v4270 = vmul.f32 %v4238, %v4135
        %v4271 = vmul.f32 %v4239, %v4139
        %v4272 = vmul.f32 %v4240, %v4141
        %v4273 = vmul.f32 %v4241, %v4143
        %v4274 = vmul.f32 %v4242, %v4145
        %v4275 = vadd.f32 %v4069, %v4243
        %v4276 = vadd.f32 %v4071, %v4244
        %v4277 = vadd.f32 %v4073, %v4245
        %v4278 = vadd.f32 %v4075, %v4246
        %v4279 = vadd.f32 %v4079, %v4247
        %v4280 = vadd.f32 %v4081, %v4248
        %v4281 = vadd.f32 %v4083, %v4249
        %v4282 = vadd.f32 %v4085, %v4250
        %v4283 = vadd.f32 %v4089, %v4251
        %v4284 = vadd.f32 %v4091, %v4252
        %v4285 = vadd.f32 %v4093, %v4253
        %v4286 = vadd.f32 %v4095, %v4254
        %v4287 = vadd.f32 %v4099, %v4255
        %v4288 = vadd.f32 %v4101, %v4256
        %v4289 = vadd.f32 %v4103, %v4257
        %v4290 = vadd.f32 %v4105, %v4258
        %v4291 = vadd.f32 %v4109, %v4259
        %v4292 = vadd.f32 %v4111, %v4260
        %v4293 = vadd.f32 %v4113, %v4261
        %v4294 = vadd.f32 %v4115, %v4262
        %v4295 = vadd.f32 %v4119, %v4263
        %v4296 = vadd.f32 %v4121, %v4264
        %v4297 = vadd.f32 %v4123, %v4265
        %v4298 = vadd.f32 %v4125, %v4266
        %v4299 = vadd.f32 %v4129, %v4267
        %v4300 = vadd.f32 %v4131, %v4268
        %v4301 = vadd.f32 %v4133, %v4269
        %v4302 = vadd.f32 %v4135, %v4270
        %v4303 = vadd.f32 %v4139, %v4271
        %v4304 = vadd.f32 %v4141, %v4272
        %v4305 = vadd.f32 %v4143, %v4273
        %v4306 = vadd.f32 %v4145, %v4274
        %v4307 = vmul.f32 %v4275, 0.7978845
        %v4308 = vmul.f32 %v4276, 0.7978845
        %v4309 = vmul.f32 %v4277, 0.7978845
        %v4310 = vmul.f32 %v4278, 0.7978845
        %v4311 = vmul.f32 %v4279, 0.7978845
        %v4312 = vmul.f32 %v4280, 0.7978845
        %v4313 = vmul.f32 %v4281, 0.7978845
        %v4314 = vmul.f32 %v4282, 0.7978845
        %v4315 = vmul.f32 %v4283, 0.7978845
        %v4316 = vmul.f32 %v4284, 0.7978845
        %v4317 = vmul.f32 %v4285, 0.7978845
        %v4318 = vmul.f32 %v4286, 0.7978845
        %v4319 = vmul.f32 %v4287, 0.7978845
        %v4320 = vmul.f32 %v4288, 0.7978845
        %v4321 = vmul.f32 %v4289, 0.7978845
        %v4322 = vmul.f32 %v4290, 0.7978845
        %v4323 = vmul.f32 %v4291, 0.7978845
        %v4324 = vmul.f32 %v4292, 0.7978845
        %v4325 = vmul.f32 %v4293, 0.7978845
        %v4326 = vmul.f32 %v4294, 0.7978845
        %v4327 = vmul.f32 %v4295, 0.7978845
        %v4328 = vmul.f32 %v4296, 0.7978845
        %v4329 = vmul.f32 %v4297, 0.7978845
        %v4330 = vmul.f32 %v4298, 0.7978845
        %v4331 = vmul.f32 %v4299, 0.7978845
        %v4332 = vmul.f32 %v4300, 0.7978845
        %v4333 = vmul.f32 %v4301, 0.7978845
        %v4334 = vmul.f32 %v4302, 0.7978845
        %v4335 = vmul.f32 %v4303, 0.7978845
        %v4336 = vmul.f32 %v4304, 0.7978845
        %v4337 = vmul.f32 %v4305, 0.7978845
        %v4338 = vmul.f32 %v4306, 0.7978845
        %v4339 = vtanh.pop %v4307
        %v4340 = vtanh.pop %v4308
        %v4341 = vtanh.pop %v4309
        %v4342 = vtanh.pop %v4310
        %v4343 = vtanh.pop %v4311
        %v4344 = vtanh.pop %v4312
        %v4345 = vtanh.pop %v4313
        %v4346 = vtanh.pop %v4314
        %v4347 = vtanh.pop %v4315
        %v4348 = vtanh.pop %v4316
        %v4349 = vtanh.pop %v4317
        %v4350 = vtanh.pop %v4318
        %v4351 = vtanh.pop %v4319
        %v4352 = vtanh.pop %v4320
        %v4353 = vtanh.pop %v4321
        %v4354 = vtanh.pop %v4322
        %v4355 = vtanh.pop %v4323
        %v4356 = vtanh.pop %v4324
        %v4357 = vtanh.pop %v4325
        %v4358 = vtanh.pop %v4326
        %v4359 = vtanh.pop %v4327
        %v4360 = vtanh.pop %v4328
        %v4361 = vtanh.pop %v4329
        %v4362 = vtanh.pop %v4330
        %v4363 = vtanh.pop %v4331
        %v4364 = vtanh.pop %v4332
        %v4365 = vtanh.pop %v4333
        %v4366 = vtanh.pop %v4334
        %v4367 = vtanh.pop %v4335
        %v4368 = vtanh.pop %v4336
        %v4369 = vtanh.pop %v4337
        %v4370 = vtanh.pop %v4338
        %v4371 = vadd.f32 %v4339, 1.0
        %v4372 = vadd.f32 %v4340, 1.0
        %v4373 = vadd.f32 %v4341, 1.0
        %v4374 = vadd.f32 %v4342, 1.0
        %v4375 = vadd.f32 %v4343, 1.0
        %v4376 = vadd.f32 %v4344, 1.0
        %v4377 = vadd.f32 %v4345, 1.0
        %v4378 = vadd.f32 %v4346, 1.0
        %v4379 = vadd.f32 %v4347, 1.0
        %v4380 = vadd.f32 %v4348, 1.0
        %v4381 = vadd.f32 %v4349, 1.0
        %v4382 = vadd.f32 %v4350, 1.0
        %v4383 = vadd.f32 %v4351, 1.0
        %v4384 = vadd.f32 %v4352, 1.0
        %v4385 = vadd.f32 %v4353, 1.0
        %v4386 = vadd.f32 %v4354, 1.0
        %v4387 = vadd.f32 %v4355, 1.0
        %v4388 = vadd.f32 %v4356, 1.0
        %v4389 = vadd.f32 %v4357, 1.0
        %v4390 = vadd.f32 %v4358, 1.0
        %v4391 = vadd.f32 %v4359, 1.0
        %v4392 = vadd.f32 %v4360, 1.0
        %v4393 = vadd.f32 %v4361, 1.0
        %v4394 = vadd.f32 %v4362, 1.0
        %v4395 = vadd.f32 %v4363, 1.0
        %v4396 = vadd.f32 %v4364, 1.0
        %v4397 = vadd.f32 %v4365, 1.0
        %v4398 = vadd.f32 %v4366, 1.0
        %v4399 = vadd.f32 %v4367, 1.0
        %v4400 = vadd.f32 %v4368, 1.0
        %v4401 = vadd.f32 %v4369, 1.0
        %v4402 = vadd.f32 %v4370, 1.0
        %v4403 = vmul.f32 %v4147, %v4371
        %v4404 = vmul.f32 %v4148, %v4372
        %v4405 = vmul.f32 %v4149, %v4373
        %v4406 = vmul.f32 %v4150, %v4374
        %v4407 = vmul.f32 %v4151, %v4375
        %v4408 = vmul.f32 %v4152, %v4376
        %v4409 = vmul.f32 %v4153, %v4377
        %v4410 = vmul.f32 %v4154, %v4378
        %v4411 = vmul.f32 %v4155, %v4379
        %v4412 = vmul.f32 %v4156, %v4380
        %v4413 = vmul.f32 %v4157, %v4381
        %v4414 = vmul.f32 %v4158, %v4382
        %v4415 = vmul.f32 %v4159, %v4383
        %v4416 = vmul.f32 %v4160, %v4384
        %v4417 = vmul.f32 %v4161, %v4385
        %v4418 = vmul.f32 %v4162, %v4386
        %v4419 = vmul.f32 %v4163, %v4387
        %v4420 = vmul.f32 %v4164, %v4388
        %v4421 = vmul.f32 %v4165, %v4389
        %v4422 = vmul.f32 %v4166, %v4390
        %v4423 = vmul.f32 %v4167, %v4391
        %v4424 = vmul.f32 %v4168, %v4392
        %v4425 = vmul.f32 %v4169, %v4393
        %v4426 = vmul.f32 %v4170, %v4394
        %v4427 = vmul.f32 %v4171, %v4395
        %v4428 = vmul.f32 %v4172, %v4396
        %v4429 = vmul.f32 %v4173, %v4397
        %v4430 = vmul.f32 %v4174, %v4398
        %v4431 = vmul.f32 %v4175, %v4399
        %v4432 = vmul.f32 %v4176, %v4400
        %v4433 = vmul.f32 %v4177, %v4401
        %v4434 = vmul.f32 %v4178, %v4402
        %v4435 = vpack.c.bf16 %v4405, %v4403
        %v4436 = vpack.c.bf16 %v4406, %v4404
        %v4437 = vpack.c.bf16 %v4409, %v4407
        %v4438 = vpack.c.bf16 %v4410, %v4408
        %v4439 = vpack.c.bf16 %v4413, %v4411
        %v4440 = vpack.c.bf16 %v4414, %v4412
        %v4441 = vpack.c.bf16 %v4417, %v4415
        %v4442 = vpack.c.bf16 %v4418, %v4416
        %v4443 = vpack.c.bf16 %v4421, %v4419
        %v4444 = vpack.c.bf16 %v4422, %v4420
        %v4445 = vpack.c.bf16 %v4425, %v4423
        %v4446 = vpack.c.bf16 %v4426, %v4424
        %v4447 = vpack.c.bf16 %v4429, %v4427
        %v4448 = vpack.c.bf16 %v4430, %v4428
        %v4449 = vpack.c.bf16 %v4433, %v4431
        %v4450 = vpack.c.bf16 %v4434, %v4432
        %v4451 = vld [vmem:[#allocation20] sm:$0xf]
        %v4452 = vld [vmem:[#allocation20 + $0x4] sm:$0xf]
        %v4453 = vld [vmem:[#allocation20 + $0x8] sm:$0xf]
        %v4454 = vld [vmem:[#allocation20 + $0xc] sm:$0xf]
        %v4455 = vld [vmem:[#allocation20 + $0x10] sm:$0xf]
        %v4456 = vld [vmem:[#allocation20 + $0x14] sm:$0xf]
        %v4457 = vld [vmem:[#allocation20 + $0x18] sm:$0xf]
        %v4458 = vld [vmem:[#allocation20 + $0x1c] sm:$0xf]
        %v4459 = vld [vmem:[#allocation20 + $0x20] sm:$0xf]
        %v4460 = vld [vmem:[#allocation20 + $0x24] sm:$0xf]
        %v4461 = vld [vmem:[#allocation20 + $0x28] sm:$0xf]
        %v4462 = vld [vmem:[#allocation20 + $0x2c] sm:$0xf]
        %v4463 = vld [vmem:[#allocation20 + $0x30] sm:$0xf]
        %v4464 = vld [vmem:[#allocation20 + $0x34] sm:$0xf]
        %v4465 = vld [vmem:[#allocation20 + $0x38] sm:$0xf]
        %v4466 = vld [vmem:[#allocation20 + $0x3c] sm:$0xf]
        %v4467 = vld [vmem:[#allocation20 + $0x40] sm:$0xf]
        %v4468 = vld [vmem:[#allocation20 + $0x44] sm:$0xf]
        %v4469 = vld [vmem:[#allocation20 + $0x48] sm:$0xf]
        %v4470 = vld [vmem:[#allocation20 + $0x4c] sm:$0xf]
        %v4471 = vld [vmem:[#allocation20 + $0x50] sm:$0xf]
        %v4472 = vld [vmem:[#allocation20 + $0x54] sm:$0xf]
        %v4473 = vld [vmem:[#allocation20 + $0x58] sm:$0xf]
        %v4474 = vld [vmem:[#allocation20 + $0x5c] sm:$0xf]
        %v4475 = vld [vmem:[#allocation20 + $0x60] sm:$0xf]
        %v4476 = vld [vmem:[#allocation20 + $0x64] sm:$0xf]
        %v4477 = vld [vmem:[#allocation20 + $0x68] sm:$0xf]
        %v4478 = vld [vmem:[#allocation20 + $0x6c] sm:$0xf]
        %v4479 = vld [vmem:[#allocation20 + $0x70] sm:$0xf]
        %v4480 = vld [vmem:[#allocation20 + $0x74] sm:$0xf]
        %v4481 = vld [vmem:[#allocation20 + $0x78] sm:$0xf]
        %v4482 = vld [vmem:[#allocation20 + $0x7c] sm:$0xf]
        %v4483 = vld [vmem:[#allocation22] sm:$0x1]
        %v4485 = vlaneseq
        %v4486 = vshrl.u32 %v4485, 7
        %v4487 = vsub.s32 0, %v4486
        %v4488 = vrot.slane %v4483, %v4487
        %v4522 = vunpack.c.l.b16 %v4451
        %v4523 = vunpack.c.l.b16 %v4452
        %v4524 = vunpack.c.l.b16 %v4453
        %v4525 = vunpack.c.l.b16 %v4454
        %v4526 = vunpack.c.l.b16 %v4455
        %v4527 = vunpack.c.l.b16 %v4456
        %v4528 = vunpack.c.l.b16 %v4457
        %v4529 = vunpack.c.l.b16 %v4458
        %v4530 = vunpack.c.l.b16 %v4459
        %v4531 = vunpack.c.l.b16 %v4460
        %v4532 = vunpack.c.l.b16 %v4461
        %v4533 = vunpack.c.l.b16 %v4462
        %v4534 = vunpack.c.l.b16 %v4463
        %v4535 = vunpack.c.l.b16 %v4464
        %v4536 = vunpack.c.l.b16 %v4465
        %v4537 = vunpack.c.l.b16 %v4466
        %v4538 = vunpack.c.l.b16 %v4467
        %v4539 = vunpack.c.l.b16 %v4468
        %v4540 = vunpack.c.l.b16 %v4469
        %v4541 = vunpack.c.l.b16 %v4470
        %v4542 = vunpack.c.l.b16 %v4471
        %v4543 = vunpack.c.l.b16 %v4472
        %v4544 = vunpack.c.l.b16 %v4473
        %v4545 = vunpack.c.l.b16 %v4474
        %v4546 = vunpack.c.l.b16 %v4475
        %v4547 = vunpack.c.l.b16 %v4476
        %v4548 = vunpack.c.l.b16 %v4477
        %v4549 = vunpack.c.l.b16 %v4478
        %v4550 = vunpack.c.l.b16 %v4479
        %v4551 = vunpack.c.l.b16 %v4480
        %v4552 = vunpack.c.l.b16 %v4481
        %v4553 = vunpack.c.l.b16 %v4482
        %v4554 = vpack.c.b16 %v4523, %v4522
        %v4555 = vpack.c.b16 %v4525, %v4524
        %v4556 = vpack.c.b16 %v4527, %v4526
        %v4557 = vpack.c.b16 %v4529, %v4528
        %v4558 = vpack.c.b16 %v4531, %v4530
        %v4559 = vpack.c.b16 %v4533, %v4532
        %v4560 = vpack.c.b16 %v4535, %v4534
        %v4561 = vpack.c.b16 %v4537, %v4536
        %v4562 = vpack.c.b16 %v4539, %v4538
        %v4563 = vpack.c.b16 %v4541, %v4540
        %v4564 = vpack.c.b16 %v4543, %v4542
        %v4565 = vpack.c.b16 %v4545, %v4544
        %v4566 = vpack.c.b16 %v4547, %v4546
        %v4567 = vpack.c.b16 %v4549, %v4548
        %v4568 = vpack.c.b16 %v4551, %v4550
        %v4569 = vpack.c.b16 %v4553, %v4552
        %4586 = vmatprep.subr.bf16.mxu0 0
        %4587 = vmatpush1.bf16.msra.mxu0 %v4554
        %4588 = vmatprep.subr.bf16.mxu0 0
        %4589 = vmatpush1.bf16.msra.mxu0 %v4555
        %4590 = vmatprep.subr.bf16.mxu0 0
        %4591 = vmatpush1.bf16.msra.mxu0 %v4556
        %4592 = vmatprep.subr.bf16.mxu0 0
        %4593 = vmatpush1.bf16.msra.mxu0 %v4557
        %4594 = vmatprep.subr.bf16.mxu0 0
        %4595 = vmatpush1.bf16.msra.mxu0 %v4558
        %4596 = vmatprep.subr.bf16.mxu0 0
        %4597 = vmatpush1.bf16.msra.mxu0 %v4559
        %4598 = vmatprep.subr.bf16.mxu0 0
        %4599 = vmatpush1.bf16.msra.mxu0 %v4560
        %4600 = vmatprep.subr.bf16.mxu0 0
        %4601 = vmatpush1.bf16.msra.mxu0 %v4561
        %4602 = vmatprep.subr.bf16.mxu0 0
        %4603 = vmatpush1.bf16.msra.mxu0 %v4562
        %4604 = vmatprep.subr.bf16.mxu0 0
        %4605 = vmatpush1.bf16.msra.mxu0 %v4563
        %4606 = vmatprep.subr.bf16.mxu0 0
        %4607 = vmatpush1.bf16.msra.mxu0 %v4564
        %4608 = vmatprep.subr.bf16.mxu0 0
        %4609 = vmatpush1.bf16.msra.mxu0 %v4565
        %4610 = vmatprep.subr.bf16.mxu0 0
        %4611 = vmatpush1.bf16.msra.mxu0 %v4566
        %4612 = vmatprep.subr.bf16.mxu0 0
        %4613 = vmatpush1.bf16.msra.mxu0 %v4567
        %4614 = vmatprep.subr.bf16.mxu0 0
        %4615 = vmatpush1.bf16.msra.mxu0 %v4568
        %4616 = vmatprep.subr.bf16.mxu0 0
        %4617 = vmatpush1.bf16.msra.mxu0 %v4569
        %4618 = vmatprep.mubr.bf16.mxu0 %v4436
        %4619 = vmatmul.mubr.bf16.gmra.mrb[0].mxu0 %v4435
        %v4620 = vpop.f32.mrb[0].mxu0
        %v4621 = vadd.f32 %v4488, %v4620
        %v4622 = vpop.f32.mrb[0].mxu0
        %v4623 = vpop.f32.mrb[0].mxu0
        %v4624 = vadd.f32 %v4488, %v4623
        %v4625 = vpop.f32.mrb[0].mxu0
        %4626 = vmatprep.mubr.bf16.mxu0 %v4438
        %4627 = vmatmul.mubr.bf16.gmra.mrb[0].mxu0 %v4437
        %v4628 = vpop.f32.mrb[0].mxu0
        %v4629 = vadd.f32 %v4488, %v4628
        %v4630 = vpop.f32.mrb[0].mxu0
        %v4631 = vpop.f32.mrb[0].mxu0
        %v4632 = vadd.f32 %v4488, %v4631
        %v4633 = vpop.f32.mrb[0].mxu0
        %4634 = vmatprep.mubr.bf16.mxu0 %v4440
        %4635 = vmatmul.mubr.bf16.gmra.mrb[0].mxu0 %v4439
        %v4636 = vpop.f32.mrb[0].mxu0
        %v4637 = vadd.f32 %v4488, %v4636
        %v4638 = vpop.f32.mrb[0].mxu0
        %v4639 = vpop.f32.mrb[0].mxu0
        %v4640 = vadd.f32 %v4488, %v4639
        %v4641 = vpop.f32.mrb[0].mxu0
        %4642 = vmatprep.mubr.bf16.mxu0 %v4442
        %4643 = vmatmul.mubr.bf16.gmra.mrb[0].mxu0 %v4441
        %v4644 = vpop.f32.mrb[0].mxu0
        %v4645 = vadd.f32 %v4488, %v4644
        %v4646 = vpop.f32.mrb[0].mxu0
        %v4647 = vpop.f32.mrb[0].mxu0
        %v4648 = vadd.f32 %v4488, %v4647
        %v4649 = vpop.f32.mrb[0].mxu0
        %4650 = vmatprep.mubr.bf16.mxu0 %v4444
        %4651 = vmatmul.mubr.bf16.gmra.mrb[0].mxu0 %v4443
        %v4652 = vpop.f32.mrb[0].mxu0
        %v4653 = vadd.f32 %v4488, %v4652
        %v4654 = vpop.f32.mrb[0].mxu0
        %v4655 = vpop.f32.mrb[0].mxu0
        %v4656 = vadd.f32 %v4488, %v4655
        %v4657 = vpop.f32.mrb[0].mxu0
        %4658 = vmatprep.mubr.bf16.mxu0 %v4446
        %4659 = vmatmul.mubr.bf16.gmra.mrb[0].mxu0 %v4445
        %v4660 = vpop.f32.mrb[0].mxu0
        %v4661 = vadd.f32 %v4488, %v4660
        %v4662 = vpop.f32.mrb[0].mxu0
        %v4663 = vpop.f32.mrb[0].mxu0
        %v4664 = vadd.f32 %v4488, %v4663
        %v4665 = vpop.f32.mrb[0].mxu0
        %4666 = vmatprep.mubr.bf16.mxu0 %v4448
        %4667 = vmatmul.mubr.bf16.gmra.mrb[0].mxu0 %v4447
        %v4668 = vpop.f32.mrb[0].mxu0
        %v4669 = vadd.f32 %v4488, %v4668
        %v4670 = vpop.f32.mrb[0].mxu0
        %v4671 = vpop.f32.mrb[0].mxu0
        %v4672 = vadd.f32 %v4488, %v4671
        %v4673 = vpop.f32.mrb[0].mxu0
        %4674 = vmatprep.mubr.bf16.mxu0 %v4450
        %4675 = vmatmul.mubr.bf16.gmra.mrb[0].mxu0 %v4449
        %v4676 = vpop.f32.mrb[0].mxu0
        %v4677 = vadd.f32 %v4488, %v4676
        %v4678 = vpop.f32.mrb[0].mxu0
        %v4679 = vpop.f32.mrb[0].mxu0
        %v4680 = vadd.f32 %v4488, %v4679
        %v4681 = vpop.f32.mrb[0].mxu0
        %4682 = vdwg.mxu0
        %v4683 = vadd.f32 %v3680, %v4621
        %v4684 = vadd.f32 %v3681, %v4624
        %v4685 = vadd.f32 %v3682, %v4629
        %v4686 = vadd.f32 %v3683, %v4632
        %v4687 = vadd.f32 %v3684, %v4637
        %v4688 = vadd.f32 %v3685, %v4640
        %v4689 = vadd.f32 %v3686, %v4645
        %v4690 = vadd.f32 %v3687, %v4648
        %v4691 = vadd.f32 %v3688, %v4653
        %v4692 = vadd.f32 %v3689, %v4656
        %v4693 = vadd.f32 %v3690, %v4661
        %v4694 = vadd.f32 %v3691, %v4664
        %v4695 = vadd.f32 %v3692, %v4669
        %v4696 = vadd.f32 %v3693, %v4672
        %v4697 = vadd.f32 %v3694, %v4677
        %v4698 = vadd.f32 %v3695, %v4680
        %4699 = vst [vmem:[%s616] sm:$0xff] %v4683
        %4700 = vst [vmem:[%s616 + $0x8] sm:$0xff] %v4684
        %4701 = vst [vmem:[%s616 + $0x10] sm:$0xff] %v4685
        %4702 = vst [vmem:[%s616 + $0x18] sm:$0xff] %v4686
        %4703 = vst [vmem:[%s616 + $0x20] sm:$0xff] %v4687
        %4704 = vst [vmem:[%s616 + $0x28] sm:$0xff] %v4688
        %4705 = vst [vmem:[%s616 + $0x30] sm:$0xff] %v4689
        %4706 = vst [vmem:[%s616 + $0x38] sm:$0xff] %v4690
        %4707 = vst [vmem:[%s616 + $0x40] sm:$0xff] %v4691
        %4708 = vst [vmem:[%s616 + $0x48] sm:$0xff] %v4692
        %4709 = vst [vmem:[%s616 + $0x50] sm:$0xff] %v4693
        %4710 = vst [vmem:[%s616 + $0x58] sm:$0xff] %v4694
        %4711 = vst [vmem:[%s616 + $0x60] sm:$0xff] %v4695
        %4712 = vst [vmem:[%s616 + $0x68] sm:$0xff] %v4696
        %4713 = vst [vmem:[%s616 + $0x70] sm:$0xff] %v4697
        %4714 = vst [vmem:[%s616 + $0x78] sm:$0xff] %v4698
        %s4715 = sand.u32 %s322, 1
        %s4716 = scalar_lea.sflag [#allocation4], %s4715
        %s4717 = sand.u32 %s322, 1
        %s4718 = smul.addr %s4717, 128
        %s4719 = scalar_lea.vmem [#allocation23], %s4718
        // Predicated region
        $region125: #{tpu_custom_call.1} parent=71 // pred_check
          %p4720 = pneg %p332
        $region126: #{tpu_custom_call.1} parent=71 // pred_check_branch
          %4722 = sbr.rel (%p4720) target = $region128
        $region127: #{tpu_custom_call.1} parent=71 // pred_region
          %s4724 = ssub.s32 2048, 2048
          %4725 = vsyncadd %s4716, %s4724
          %s4726 = smul.addr %s36, 16
          %s4727 = smul.addr %s4726, 128
          %s4728 = scalar_lea.hbm %s13, %s4727
          %s4729 = sshll.u32 %s4719, 4
          %s4730 = int_to_ptr.vmem [resolvable:$true] %s4729
          %4735 = dma.vmem_to_hbm [thread:$0]  %s4730, 2048, %s4728, %s4716, 128, 128, 8
        $region128: #{tpu_custom_call.1} parent=71 // pred_fallthru
          _
      $region72: #{tpu_custom_call.1} parent=5 // pred_fallthru
        _
      %p4736 = scmp.le.s32.totalorder 2, %s31
      // Predicated region
      $region129: #{tpu_custom_call.1} parent=5 // pred_check
        %p4737 = pneg %p4736
      $region130: #{tpu_custom_call.1} parent=5 // pred_check_branch
        %4739 = sbr.rel (%p4737) target = $region132
      $region131: #{tpu_custom_call.1} parent=5 // pred_region
        %s4740 = ssub.s32 %s31, 2
        // Predicated region
        $region133: #{tpu_custom_call.1} parent=131 // pred_check
          %p4741 = pneg %p338
        $region134: #{tpu_custom_call.1} parent=131 // pred_check_branch
          %4743 = sbr.rel (%p4741) target = $region136
        $region135: #{tpu_custom_call.1} parent=131 // pred_region
          %s4744 = sand.u32 %s323, 1
          %s4745 = scalar_lea.sflag [#allocation4], %s4744
          %s4746 = sand.u32 %s323, 1
          %s4747 = smul.addr %s4746, 128
          %s4748 = scalar_lea.vmem [#allocation23], %s4747
          %4749 = dma.done %s4745, 2048
        $region136: #{tpu_custom_call.1} parent=131 // pred_fallthru
          _
      $region132: #{tpu_custom_call.1} parent=5 // pred_fallthru
        _
    $region6: #{tpu_custom_call.1} parent=1 // loop_footer
      %s35 = sadd.s32 1, %s31
    $region7: #{tpu_custom_call.1} parent=1 // loop_footer_branch
      %30 = sbr.rel target = $region3
    $region8: #{tpu_custom_call.1} parent=1 // loop_exit
      _
    %4750 = vsyncpa [#allocation3], 1
    %s4751 = scalar_lea.sflag [#allocation3], 1
    %4752 = vsyncpa %s4751, 1
    %4753 = vsyncpa [#allocation6], 1
    %4754 = vsyncpa [#allocation9], 1
    %4755 = vsyncpa [#allocation12], 1
    %4756 = vsyncpa [#allocation15], 1
    %4757 = vsyncpa [#allocation18], 1
    %4758 = vsyncpa [#allocation21], 1
    %4759 = vsyncpa [#allocation4], 1
    %s4760 = scalar_lea.sflag [#allocation4], 1
    %4761 = vsyncpa %s4760, 1

</llo_original>
